<compile_context>
chip_gen: v7x
topology: tpu7x:2x2x1
jax: 0.10.0
libtpu: 0.0.40
codegen_flags: <defaults>
</compile_context>

<pallas_src>
import math

import jax
import jax.numpy as jnp
from jax.experimental import pallas as pl
from jax.experimental.pallas import tpu as pltpu

# ---- static network dimensions (input length 4 so the flatten hits 128*5 = 640) ----
C_IN, L0 = 32, 4
C1, C1P, K1, PAD1 = 64, 128, 8, 8            # conv1: 32->64 (zero-padded to 128 lanes), k=8, pad=8, s=1
L1 = L0 + 2 * PAD1 - K1 + 1                  # 13
L1P = (L1 - 3) // 2 + 1                      # 6   (maxpool k=3, s=2)
C2, K2, PAD2, S2 = 128, 16, 16, 2            # conv2: 64->128, k=16, pad=16, s=2
L2 = (L1P + 2 * PAD2 - K2) // S2 + 1         # 12
L2P = (L2 - 3) // 2 + 1                      # 5   (maxpool k=3, s=2)
H1, NCLS = 256, 2


def net_small_kernel(x_ref, w1_ref, b1_ref, w2_ref, b2_ref, w3_ref, b3_ref,
                     w4_ref, b4_ref, o_ref, xpad_scr, y1_scr, h1pad_scr, y2_scr):
    # ---- conv1 (sum of K shifted matmuls) + bias + ReLU ----
    xpad_scr[...] = jnp.zeros_like(xpad_scr)
    xpad_scr[pl.ds(PAD1, L0), :] = x_ref[0]                       # (4, 32) -> rows 8..11
    y1 = jnp.zeros((L1, C1P), jnp.float32)
    for k in range(K1):
        y1 = y1 + jnp.dot(xpad_scr[pl.ds(k, L1), :], w1_ref[k],
                          preferred_element_type=jnp.float32)
    y1_scr[...] = jnp.maximum(y1 + b1_ref[...], 0.0)              # (13, 128) lane-dense

    # ---- maxpool(3, 2): vectorized, one dense store into conv2's zero-padded buffer ----
    h1pad_scr[...] = jnp.zeros_like(h1pad_scr)
    p1 = jnp.maximum(jnp.maximum(y1_scr[pl.ds(0, L1P, stride=2), :],
                                 y1_scr[pl.ds(1, L1P, stride=2), :]),
                     y1_scr[pl.ds(2, L1P, stride=2), :])          # (6, 128)
    h1pad_scr[pl.ds(PAD2, L1P), :] = p1

    # ---- conv2 (stride 2) as one im2col matmul + bias + ReLU ----
    patches = jnp.concatenate(
        [h1pad_scr[pl.ds(k, L2, stride=2), :] for k in range(K2)], axis=1)  # (12, 2048)
    y2 = jnp.dot(patches, w2_ref[...], preferred_element_type=jnp.float32)
    y2_scr[...] = jnp.maximum(y2 + b2_ref[...], 0.0)              # (12, 128)

    # ---- maxpool(3, 2): vectorized ----
    p2 = jnp.maximum(jnp.maximum(y2_scr[pl.ds(0, L2P, stride=2), :],
                                 y2_scr[pl.ds(1, L2P, stride=2), :]),
                     y2_scr[pl.ds(2, L2P, stride=2), :])          # (5, 128)

    # ---- fc1 + ReLU; PyTorch (C, L) flatten order is folded into w3's (L, C, H) layout ----
    h = jnp.zeros((1, H1), jnp.float32)
    for li in range(L2P):
        h = h + jnp.dot(p2[li:li + 1, :], w3_ref[li],
                        preferred_element_type=jnp.float32)
    h = jnp.maximum(h + b3_ref[...], 0.0)
    # TODO(synk): nn.Dropout(p=0.5) treated as eval-mode identity (no RNG mask applied).

    # ---- fc2 + log_softmax ----
    z = jnp.dot(h, w4_ref[...], preferred_element_type=jnp.float32) + b4_ref[...]
    z = z - jnp.max(z, axis=1, keepdims=True)
    z = z - jnp.log(jnp.sum(jnp.exp(z), axis=1, keepdims=True))
    o_ref[...] = z.reshape(1, 1, NCLS)


def prepare_params(params):
    """One-time re-layout of PyTorch-style parameters into kernel-friendly form."""
    # conv1: pad C_out 64 -> 128 (zeros), layout (K, C_in, C_out)
    w1 = jnp.pad(params['conv1_w'], ((0, C1P - C1), (0, 0), (0, 0)))      # (128, 32, 8)
    w1 = jnp.transpose(w1, (2, 1, 0))                                     # (8, 32, 128)
    b1 = jnp.pad(params['conv1_b'], (0, C1P - C1)).reshape(1, C1P)
    # conv2: pad C_in 64 -> 128 (zeros, matches conv1 padding), im2col matrix (K*C_in, C_out)
    w2 = jnp.pad(params['conv2_w'], ((0, 0), (0, C1P - C1), (0, 0)))      # (128, 128, 16)
    w2 = jnp.transpose(w2, (2, 1, 0)).reshape(K2 * C1P, C2)               # (2048, 128)
    b2 = params['conv2_b'].reshape(1, C2)
    # fc1: PyTorch flatten index is c*L2P + l; re-layout to (l, c, hidden)
    w3 = jnp.transpose(params['fc1_w'].reshape(H1, C2, L2P), (2, 1, 0))   # (5, 128, 256)
    b3 = params['fc1_b'].reshape(1, H1)
    w4 = params['fc2_w'].T                                                # (256, 2)
    b4 = params['fc2_b'].reshape(1, NCLS)
    return dict(w1=w1, b1=b1, w2=w2, b2=b2, w3=w3, b3=b3, w4=w4, b4=b4)


def _resident_spec(arr):
    zeros = (0,) * arr.ndim
    return pl.BlockSpec(arr.shape, lambda n, _z=zeros: _z)


def net_small_forward(x_ncl, kp):
    """x_ncl: (N, 32, 4) float32 in PyTorch NCL layout. Returns (N, 2) log-probabilities."""
    N = x_ncl.shape[0]
    x_nlc = jnp.transpose(x_ncl, (0, 2, 1))                               # (N, 4, 32)
    weights = (kp['w1'], kp['b1'], kp['w2'], kp['b2'],
               kp['w3'], kp['b3'], kp['w4'], kp['b4'])
    out = pl.pallas_call(
        net_small_kernel,
        out_shape=jax.ShapeDtypeStruct((N, 1, NCLS), jnp.float32),
        grid_spec=pltpu.PrefetchScalarGridSpec(
            num_scalar_prefetch=0,
            grid=(N,),
            in_specs=[pl.BlockSpec((1, L0, C_IN), lambda n: (n, 0, 0))]
                     + [_resident_spec(w) for w in weights],
            out_specs=pl.BlockSpec((1, 1, NCLS), lambda n: (n, 0, 0)),
            scratch_shapes=[pltpu.VMEM((L0 + 2 * PAD1, C_IN), jnp.float32),     # padded conv1 input
                            pltpu.VMEM((L1, C1P), jnp.float32),                 # conv1+ReLU out
                            pltpu.VMEM((L1P + 2 * PAD2, C1P), jnp.float32),     # padded pool1 out
                            pltpu.VMEM((L2, C2), jnp.float32)]),                # conv2+ReLU out
        compiler_params=pltpu.CompilerParams(
            dimension_semantics=("parallel",)),
    )(x_nlc, *weights)
    return out.reshape(N, NCLS)


def init_params(key):
    def unif(k, shape, fan_in):
        bound = 1.0 / math.sqrt(fan_in)
        return jax.random.uniform(k, shape, jnp.float32, -bound, bound)

    ks = jax.random.split(key, 8)
    return {
        'conv1_w': unif(ks[0], (64, 32, 8), 32 * 8),
        'conv1_b': unif(ks[1], (64,), 32 * 8),
        'conv2_w': unif(ks[2], (128, 64, 16), 64 * 16),
        'conv2_b': unif(ks[3], (128,), 64 * 16),
        'fc1_w': unif(ks[4], (256, 128 * 5), 128 * 5),
        'fc1_b': unif(ks[5], (256,), 128 * 5),
        'fc2_w': unif(ks[6], (2, 256), 256),
        'fc2_b': unif(ks[7], (2,), 256),
    }


if __name__ == "__main__":
    key = jax.random.PRNGKey(0)
    pkey, xkey = jax.random.split(key)
    params = init_params(pkey)
    kparams = prepare_params(params)          # one-time weight re-layout (hoisted out of forward)
    # Length chain: L0=4 -> conv1(pad8,k8,s1): 13 -> pool(3,2): 6
    #               -> conv2(pad16,k16,s2): 12 -> pool(3,2): 5  => flatten 128*5 = 640.
    x = jax.random.normal(xkey, (2, C_IN, L0), jnp.float32)   # (2, 32, 4), PyTorch NCL
    fwd = jax.jit(net_small_forward)
    out = jax.block_until_ready(fwd(x, kparams))
    assert out.shape == (2, NCLS)
    assert bool(jnp.all(jnp.isfinite(out)))
    print("KERNEL_OK")
</pallas_src>

<mosaic_0001>
module attributes {stable_mosaic.version = 11 : i64} {
  func.func @net_small_kernel(%arg0: i32, %arg1: memref<1x4x32xf32, #tpu.memory_space<vmem>>, %arg2: memref<8x32x128xf32, #tpu.memory_space<vmem>>, %arg3: memref<1x128xf32, #tpu.memory_space<vmem>>, %arg4: memref<2048x128xf32, #tpu.memory_space<vmem>>, %arg5: memref<1x128xf32, #tpu.memory_space<vmem>>, %arg6: memref<5x128x256xf32, #tpu.memory_space<vmem>>, %arg7: memref<1x256xf32, #tpu.memory_space<vmem>>, %arg8: memref<256x2xf32, #tpu.memory_space<vmem>>, %arg9: memref<1x2xf32, #tpu.memory_space<vmem>>, %arg10: memref<1x1x2xf32, #tpu.memory_space<vmem>>, %arg11: memref<20x32xf32, #tpu.memory_space<vmem>>, %arg12: memref<13x128xf32, #tpu.memory_space<vmem>>, %arg13: memref<38x128xf32, #tpu.memory_space<vmem>>, %arg14: memref<12x128xf32, #tpu.memory_space<vmem>>) attributes {dimension_semantics = [#tpu.dimension_semantics<parallel>], iteration_bounds = array<i64: 2>, scalar_prefetch = 0 : i64, scratch_operands = 4 : i64, tpu.core_type = #tpu.core_type<tc>, window_params = [{transform_indices = @transform_0, window_bounds = array<i64: 1, 4, 32>}, {pipeline_mode = #tpu.pipeline_mode<synchronous>, transform_indices = @transform_1, window_bounds = array<i64: 8, 32, 128>}, {pipeline_mode = #tpu.pipeline_mode<synchronous>, transform_indices = @transform_2, window_bounds = array<i64: 1, 128>}, {pipeline_mode = #tpu.pipeline_mode<synchronous>, transform_indices = @transform_3, window_bounds = array<i64: 2048, 128>}, {pipeline_mode = #tpu.pipeline_mode<synchronous>, transform_indices = @transform_4, window_bounds = array<i64: 1, 128>}, {pipeline_mode = #tpu.pipeline_mode<synchronous>, transform_indices = @transform_5, window_bounds = array<i64: 5, 128, 256>}, {pipeline_mode = #tpu.pipeline_mode<synchronous>, transform_indices = @transform_6, window_bounds = array<i64: 1, 256>}, {pipeline_mode = #tpu.pipeline_mode<synchronous>, transform_indices = @transform_7, window_bounds = array<i64: 256, 2>}, {pipeline_mode = #tpu.pipeline_mode<synchronous>, transform_indices = @transform_8, window_bounds = array<i64: 1, 2>}, {transform_indices = @transform_9, window_bounds = array<i64: 1, 1, 2>}]} {
    %cst = arith.constant 0.000000e+00 : f32
    %0 = vector.broadcast %cst : f32 to vector<20x32xf32>
    %c0 = arith.constant 0 : index
    %c0_0 = arith.constant 0 : index
    %1 = vector.load %arg11[%c0, %c0_0] : memref<20x32xf32, #tpu.memory_space<vmem>>, vector<20x32xf32>
    tpu.vector_store %arg11[%c0, %c0_0], %0 {strides = array<i32>} : memref<20x32xf32, #tpu.memory_space<vmem>>, vector<20x32xf32>,
    %c0_1 = arith.constant 0 : index
    %c0_2 = arith.constant 0 : index
    %c0_3 = arith.constant 0 : index
    %2 = vector.load %arg1[%c0_1, %c0_2, %c0_3] : memref<1x4x32xf32, #tpu.memory_space<vmem>>, vector<1x4x32xf32>
    %3 = vector.shape_cast %2 : vector<1x4x32xf32> to vector<4x32xf32>
    %c8 = arith.constant 8 : index
    %c0_4 = arith.constant 0 : index
    %4 = vector.load %arg11[%c8, %c0_4] : memref<20x32xf32, #tpu.memory_space<vmem>>, vector<4x32xf32>
    tpu.vector_store %arg11[%c8, %c0_4], %3 {strides = array<i32>} : memref<20x32xf32, #tpu.memory_space<vmem>>, vector<4x32xf32>,
    %cst_5 = arith.constant 0.000000e+00 : f32
    %5 = vector.broadcast %cst_5 : f32 to vector<13x128xf32>
    %c0_6 = arith.constant 0 : index
    %c0_7 = arith.constant 0 : index
    %6 = vector.load %arg11[%c0_6, %c0_7] : memref<20x32xf32, #tpu.memory_space<vmem>>, vector<13x32xf32>
    %c0_8 = arith.constant 0 : index
    %c0_9 = arith.constant 0 : index
    %c0_10 = arith.constant 0 : index
    %7 = vector.load %arg2[%c0_8, %c0_9, %c0_10] : memref<8x32x128xf32, #tpu.memory_space<vmem>>, vector<1x32x128xf32>
    %8 = vector.shape_cast %7 : vector<1x32x128xf32> to vector<32x128xf32>
    %cst_11 = arith.constant dense<0.000000e+00> : vector<13x128xf32>
    %9 = tpu.matmul %6, %8, %cst_11 {dimension_numbers = #tpu.dot_dimension_numbers<[1], [0], [0], [1], [0, 0, 1, 1], [], []>} : vector<13x32xf32>, vector<32x128xf32>, vector<13x128xf32> -> vector<13x128xf32>
    %10 = arith.addf %5, %9 : vector<13x128xf32>
    %c1 = arith.constant 1 : index
    %c0_12 = arith.constant 0 : index
    %11 = vector.load %arg11[%c1, %c0_12] : memref<20x32xf32, #tpu.memory_space<vmem>>, vector<13x32xf32>
    %c1_13 = arith.constant 1 : index
    %c0_14 = arith.constant 0 : index
    %c0_15 = arith.constant 0 : index
    %12 = vector.load %arg2[%c1_13, %c0_14, %c0_15] : memref<8x32x128xf32, #tpu.memory_space<vmem>>, vector<1x32x128xf32>
    %13 = vector.shape_cast %12 : vector<1x32x128xf32> to vector<32x128xf32>
    %cst_16 = arith.constant dense<0.000000e+00> : vector<13x128xf32>
    %14 = tpu.matmul %11, %13, %cst_16 {dimension_numbers = #tpu.dot_dimension_numbers<[1], [0], [0], [1], [0, 0, 1, 1], [], []>} : vector<13x32xf32>, vector<32x128xf32>, vector<13x128xf32> -> vector<13x128xf32>
    %15 = arith.addf %10, %14 : vector<13x128xf32>
    %c2 = arith.constant 2 : index
    %c0_17 = arith.constant 0 : index
    %16 = vector.load %arg11[%c2, %c0_17] : memref<20x32xf32, #tpu.memory_space<vmem>>, vector<13x32xf32>
    %c2_18 = arith.constant 2 : index
    %c0_19 = arith.constant 0 : index
    %c0_20 = arith.constant 0 : index
    %17 = vector.load %arg2[%c2_18, %c0_19, %c0_20] : memref<8x32x128xf32, #tpu.memory_space<vmem>>, vector<1x32x128xf32>
    %18 = vector.shape_cast %17 : vector<1x32x128xf32> to vector<32x128xf32>
    %cst_21 = arith.constant dense<0.000000e+00> : vector<13x128xf32>
    %19 = tpu.matmul %16, %18, %cst_21 {dimension_numbers = #tpu.dot_dimension_numbers<[1], [0], [0], [1], [0, 0, 1, 1], [], []>} : vector<13x32xf32>, vector<32x128xf32>, vector<13x128xf32> -> vector<13x128xf32>
    %20 = arith.addf %15, %19 : vector<13x128xf32>
    %c3 = arith.constant 3 : index
    %c0_22 = arith.constant 0 : index
    %21 = vector.load %arg11[%c3, %c0_22] : memref<20x32xf32, #tpu.memory_space<vmem>>, vector<13x32xf32>
    %c3_23 = arith.constant 3 : index
    %c0_24 = arith.constant 0 : index
    %c0_25 = arith.constant 0 : index
    %22 = vector.load %arg2[%c3_23, %c0_24, %c0_25] : memref<8x32x128xf32, #tpu.memory_space<vmem>>, vector<1x32x128xf32>
    %23 = vector.shape_cast %22 : vector<1x32x128xf32> to vector<32x128xf32>
    %cst_26 = arith.constant dense<0.000000e+00> : vector<13x128xf32>
    %24 = tpu.matmul %21, %23, %cst_26 {dimension_numbers = #tpu.dot_dimension_numbers<[1], [0], [0], [1], [0, 0, 1, 1], [], []>} : vector<13x32xf32>, vector<32x128xf32>, vector<13x128xf32> -> vector<13x128xf32>
    %25 = arith.addf %20, %24 : vector<13x128xf32>
    %c4 = arith.constant 4 : index
    %c0_27 = arith.constant 0 : index
    %26 = vector.load %arg11[%c4, %c0_27] : memref<20x32xf32, #tpu.memory_space<vmem>>, vector<13x32xf32>
    %c4_28 = arith.constant 4 : index
    %c0_29 = arith.constant 0 : index
    %c0_30 = arith.constant 0 : index
    %27 = vector.load %arg2[%c4_28, %c0_29, %c0_30] : memref<8x32x128xf32, #tpu.memory_space<vmem>>, vector<1x32x128xf32>
    %28 = vector.shape_cast %27 : vector<1x32x128xf32> to vector<32x128xf32>
    %cst_31 = arith.constant dense<0.000000e+00> : vector<13x128xf32>
    %29 = tpu.matmul %26, %28, %cst_31 {dimension_numbers = #tpu.dot_dimension_numbers<[1], [0], [0], [1], [0, 0, 1, 1], [], []>} : vector<13x32xf32>, vector<32x128xf32>, vector<13x128xf32> -> vector<13x128xf32>
    %30 = arith.addf %25, %29 : vector<13x128xf32>
    %c5 = arith.constant 5 : index
    %c0_32 = arith.constant 0 : index
    %31 = vector.load %arg11[%c5, %c0_32] : memref<20x32xf32, #tpu.memory_space<vmem>>, vector<13x32xf32>
    %c5_33 = arith.constant 5 : index
    %c0_34 = arith.constant 0 : index
    %c0_35 = arith.constant 0 : index
    %32 = vector.load %arg2[%c5_33, %c0_34, %c0_35] : memref<8x32x128xf32, #tpu.memory_space<vmem>>, vector<1x32x128xf32>
    %33 = vector.shape_cast %32 : vector<1x32x128xf32> to vector<32x128xf32>
    %cst_36 = arith.constant dense<0.000000e+00> : vector<13x128xf32>
    %34 = tpu.matmul %31, %33, %cst_36 {dimension_numbers = #tpu.dot_dimension_numbers<[1], [0], [0], [1], [0, 0, 1, 1], [], []>} : vector<13x32xf32>, vector<32x128xf32>, vector<13x128xf32> -> vector<13x128xf32>
    %35 = arith.addf %30, %34 : vector<13x128xf32>
    %c6 = arith.constant 6 : index
    %c0_37 = arith.constant 0 : index
    %36 = vector.load %arg11[%c6, %c0_37] : memref<20x32xf32, #tpu.memory_space<vmem>>, vector<13x32xf32>
    %c6_38 = arith.constant 6 : index
    %c0_39 = arith.constant 0 : index
    %c0_40 = arith.constant 0 : index
    %37 = vector.load %arg2[%c6_38, %c0_39, %c0_40] : memref<8x32x128xf32, #tpu.memory_space<vmem>>, vector<1x32x128xf32>
    %38 = vector.shape_cast %37 : vector<1x32x128xf32> to vector<32x128xf32>
    %cst_41 = arith.constant dense<0.000000e+00> : vector<13x128xf32>
    %39 = tpu.matmul %36, %38, %cst_41 {dimension_numbers = #tpu.dot_dimension_numbers<[1], [0], [0], [1], [0, 0, 1, 1], [], []>} : vector<13x32xf32>, vector<32x128xf32>, vector<13x128xf32> -> vector<13x128xf32>
    %40 = arith.addf %35, %39 : vector<13x128xf32>
    %c7 = arith.constant 7 : index
    %c0_42 = arith.constant 0 : index
    %41 = vector.load %arg11[%c7, %c0_42] : memref<20x32xf32, #tpu.memory_space<vmem>>, vector<13x32xf32>
    %c7_43 = arith.constant 7 : index
    %c0_44 = arith.constant 0 : index
    %c0_45 = arith.constant 0 : index
    %42 = vector.load %arg2[%c7_43, %c0_44, %c0_45] : memref<8x32x128xf32, #tpu.memory_space<vmem>>, vector<1x32x128xf32>
    %43 = vector.shape_cast %42 : vector<1x32x128xf32> to vector<32x128xf32>
    %cst_46 = arith.constant dense<0.000000e+00> : vector<13x128xf32>
    %44 = tpu.matmul %41, %43, %cst_46 {dimension_numbers = #tpu.dot_dimension_numbers<[1], [0], [0], [1], [0, 0, 1, 1], [], []>} : vector<13x32xf32>, vector<32x128xf32>, vector<13x128xf32> -> vector<13x128xf32>
    %45 = arith.addf %40, %44 : vector<13x128xf32>
    %c0_47 = arith.constant 0 : index
    %c0_48 = arith.constant 0 : index
    %46 = vector.load %arg3[%c0_47, %c0_48] : memref<1x128xf32, #tpu.memory_space<vmem>>, vector<1x128xf32>
    %47 = vector.broadcast %46 : vector<1x128xf32> to vector<13x128xf32>
    %48 = arith.addf %45, %47 : vector<13x128xf32>
    %cst_49 = arith.constant 0.000000e+00 : f32
    %49 = vector.broadcast %cst_49 : f32 to vector<13x128xf32>
    %50 = arith.maximumf %48, %49 : vector<13x128xf32>
    %c0_50 = arith.constant 0 : index
    %c0_51 = arith.constant 0 : index
    %51 = vector.load %arg12[%c0_50, %c0_51] : memref<13x128xf32, #tpu.memory_space<vmem>>, vector<13x128xf32>
    tpu.vector_store %arg12[%c0_50, %c0_51], %50 {strides = array<i32>} : memref<13x128xf32, #tpu.memory_space<vmem>>, vector<13x128xf32>,
    %cst_52 = arith.constant 0.000000e+00 : f32
    %52 = vector.broadcast %cst_52 : f32 to vector<38x128xf32>
    %c0_53 = arith.constant 0 : index
    %c0_54 = arith.constant 0 : index
    %53 = vector.load %arg13[%c0_53, %c0_54] : memref<38x128xf32, #tpu.memory_space<vmem>>, vector<38x128xf32>
    tpu.vector_store %arg13[%c0_53, %c0_54], %52 {strides = array<i32>} : memref<38x128xf32, #tpu.memory_space<vmem>>, vector<38x128xf32>,
    %c0_55 = arith.constant 0 : index
    %c0_56 = arith.constant 0 : index
    %54 = tpu.strided_load %arg12[%c0_55, %c0_56] {strides = array<i32: 2, 1>} : memref<13x128xf32, #tpu.memory_space<vmem>>, vector<6x128xf32>
    %c1_57 = arith.constant 1 : index
    %c0_58 = arith.constant 0 : index
    %55 = tpu.strided_load %arg12[%c1_57, %c0_58] {strides = array<i32: 2, 1>} : memref<13x128xf32, #tpu.memory_space<vmem>>, vector<6x128xf32>
    %56 = arith.maximumf %54, %55 : vector<6x128xf32>
    %c2_59 = arith.constant 2 : index
    %c0_60 = arith.constant 0 : index
    %57 = tpu.strided_load %arg12[%c2_59, %c0_60] {strides = array<i32: 2, 1>} : memref<13x128xf32, #tpu.memory_space<vmem>>, vector<6x128xf32>
    %58 = arith.maximumf %56, %57 : vector<6x128xf32>
    %c16 = arith.constant 16 : index
    %c0_61 = arith.constant 0 : index
    %59 = vector.load %arg13[%c16, %c0_61] : memref<38x128xf32, #tpu.memory_space<vmem>>, vector<6x128xf32>
    tpu.vector_store %arg13[%c16, %c0_61], %58 {strides = array<i32>} : memref<38x128xf32, #tpu.memory_space<vmem>>, vector<6x128xf32>,
    %c0_62 = arith.constant 0 : index
    %c0_63 = arith.constant 0 : index
    %60 = tpu.strided_load %arg13[%c0_62, %c0_63] {strides = array<i32: 2, 1>} : memref<38x128xf32, #tpu.memory_space<vmem>>, vector<12x128xf32>
    %c1_64 = arith.constant 1 : index
    %c0_65 = arith.constant 0 : index
    %61 = tpu.strided_load %arg13[%c1_64, %c0_65] {strides = array<i32: 2, 1>} : memref<38x128xf32, #tpu.memory_space<vmem>>, vector<12x128xf32>
    %c2_66 = arith.constant 2 : index
    %c0_67 = arith.constant 0 : index
    %62 = tpu.strided_load %arg13[%c2_66, %c0_67] {strides = array<i32: 2, 1>} : memref<38x128xf32, #tpu.memory_space<vmem>>, vector<12x128xf32>
    %c3_68 = arith.constant 3 : index
    %c0_69 = arith.constant 0 : index
    %63 = tpu.strided_load %arg13[%c3_68, %c0_69] {strides = array<i32: 2, 1>} : memref<38x128xf32, #tpu.memory_space<vmem>>, vector<12x128xf32>
    %c4_70 = arith.constant 4 : index
    %c0_71 = arith.constant 0 : index
    %64 = tpu.strided_load %arg13[%c4_70, %c0_71] {strides = array<i32: 2, 1>} : memref<38x128xf32, #tpu.memory_space<vmem>>, vector<12x128xf32>
    %c5_72 = arith.constant 5 : index
    %c0_73 = arith.constant 0 : index
    %65 = tpu.strided_load %arg13[%c5_72, %c0_73] {strides = array<i32: 2, 1>} : memref<38x128xf32, #tpu.memory_space<vmem>>, vector<12x128xf32>
    %c6_74 = arith.constant 6 : index
    %c0_75 = arith.constant 0 : index
    %66 = tpu.strided_load %arg13[%c6_74, %c0_75] {strides = array<i32: 2, 1>} : memref<38x128xf32, #tpu.memory_space<vmem>>, vector<12x128xf32>
    %c7_76 = arith.constant 7 : index
    %c0_77 = arith.constant 0 : index
    %67 = tpu.strided_load %arg13[%c7_76, %c0_77] {strides = array<i32: 2, 1>} : memref<38x128xf32, #tpu.memory_space<vmem>>, vector<12x128xf32>
    %c8_78 = arith.constant 8 : index
    %c0_79 = arith.constant 0 : index
    %68 = tpu.strided_load %arg13[%c8_78, %c0_79] {strides = array<i32: 2, 1>} : memref<38x128xf32, #tpu.memory_space<vmem>>, vector<12x128xf32>
    %c9 = arith.constant 9 : index
    %c0_80 = arith.constant 0 : index
    %69 = tpu.strided_load %arg13[%c9, %c0_80] {strides = array<i32: 2, 1>} : memref<38x128xf32, #tpu.memory_space<vmem>>, vector<12x128xf32>
    %c10 = arith.constant 10 : index
    %c0_81 = arith.constant 0 : index
    %70 = tpu.strided_load %arg13[%c10, %c0_81] {strides = array<i32: 2, 1>} : memref<38x128xf32, #tpu.memory_space<vmem>>, vector<12x128xf32>
    %c11 = arith.constant 11 : index
    %c0_82 = arith.constant 0 : index
    %71 = tpu.strided_load %arg13[%c11, %c0_82] {strides = array<i32: 2, 1>} : memref<38x128xf32, #tpu.memory_space<vmem>>, vector<12x128xf32>
    %c12 = arith.constant 12 : index
    %c0_83 = arith.constant 0 : index
    %72 = tpu.strided_load %arg13[%c12, %c0_83] {strides = array<i32: 2, 1>} : memref<38x128xf32, #tpu.memory_space<vmem>>, vector<12x128xf32>
    %c13 = arith.constant 13 : index
    %c0_84 = arith.constant 0 : index
    %73 = tpu.strided_load %arg13[%c13, %c0_84] {strides = array<i32: 2, 1>} : memref<38x128xf32, #tpu.memory_space<vmem>>, vector<12x128xf32>
    %c14 = arith.constant 14 : index
    %c0_85 = arith.constant 0 : index
    %74 = tpu.strided_load %arg13[%c14, %c0_85] {strides = array<i32: 2, 1>} : memref<38x128xf32, #tpu.memory_space<vmem>>, vector<12x128xf32>
    %c15 = arith.constant 15 : index
    %c0_86 = arith.constant 0 : index
    %75 = tpu.strided_load %arg13[%c15, %c0_86] {strides = array<i32: 2, 1>} : memref<38x128xf32, #tpu.memory_space<vmem>>, vector<12x128xf32>
    %76 = tpu.concatenate %60, %61, %62, %63, %64, %65, %66, %67, %68, %69, %70, %71, %72, %73, %74, %75 in 1 : vector<12x128xf32>, vector<12x128xf32>, vector<12x128xf32>, vector<12x128xf32>, vector<12x128xf32>, vector<12x128xf32>, vector<12x128xf32>, vector<12x128xf32>, vector<12x128xf32>, vector<12x128xf32>, vector<12x128xf32>, vector<12x128xf32>, vector<12x128xf32>, vector<12x128xf32>, vector<12x128xf32>, vector<12x128xf32> -> vector<12x2048xf32>
    %c0_87 = arith.constant 0 : index
    %c0_88 = arith.constant 0 : index
    %77 = vector.load %arg4[%c0_87, %c0_88] : memref<2048x128xf32, #tpu.memory_space<vmem>>, vector<2048x128xf32>
    %cst_89 = arith.constant dense<0.000000e+00> : vector<12x128xf32>
    %78 = tpu.matmul %76, %77, %cst_89 {dimension_numbers = #tpu.dot_dimension_numbers<[1], [0], [0], [1], [0, 0, 1, 1], [], []>} : vector<12x2048xf32>, vector<2048x128xf32>, vector<12x128xf32> -> vector<12x128xf32>
    %c0_90 = arith.constant 0 : index
    %c0_91 = arith.constant 0 : index
    %79 = vector.load %arg5[%c0_90, %c0_91] : memref<1x128xf32, #tpu.memory_space<vmem>>, vector<1x128xf32>
    %80 = vector.broadcast %79 : vector<1x128xf32> to vector<12x128xf32>
    %81 = arith.addf %78, %80 : vector<12x128xf32>
    %cst_92 = arith.constant 0.000000e+00 : f32
    %82 = vector.broadcast %cst_92 : f32 to vector<12x128xf32>
    %83 = arith.maximumf %81, %82 : vector<12x128xf32>
    %c0_93 = arith.constant 0 : index
    %c0_94 = arith.constant 0 : index
    %84 = vector.load %arg14[%c0_93, %c0_94] : memref<12x128xf32, #tpu.memory_space<vmem>>, vector<12x128xf32>
    tpu.vector_store %arg14[%c0_93, %c0_94], %83 {strides = array<i32>} : memref<12x128xf32, #tpu.memory_space<vmem>>, vector<12x128xf32>,
    %c0_95 = arith.constant 0 : index
    %c0_96 = arith.constant 0 : index
    %85 = tpu.strided_load %arg14[%c0_95, %c0_96] {strides = array<i32: 2, 1>} : memref<12x128xf32, #tpu.memory_space<vmem>>, vector<5x128xf32>
    %c1_97 = arith.constant 1 : index
    %c0_98 = arith.constant 0 : index
    %86 = tpu.strided_load %arg14[%c1_97, %c0_98] {strides = array<i32: 2, 1>} : memref<12x128xf32, #tpu.memory_space<vmem>>, vector<5x128xf32>
    %87 = arith.maximumf %85, %86 : vector<5x128xf32>
    %c2_99 = arith.constant 2 : index
    %c0_100 = arith.constant 0 : index
    %88 = tpu.strided_load %arg14[%c2_99, %c0_100] {strides = array<i32: 2, 1>} : memref<12x128xf32, #tpu.memory_space<vmem>>, vector<5x128xf32>
    %89 = arith.maximumf %87, %88 : vector<5x128xf32>
    %cst_101 = arith.constant 0.000000e+00 : f32
    %90 = vector.broadcast %cst_101 : f32 to vector<1x256xf32>
    %91 = vector.extract_strided_slice %89 {offsets = [0, 0], sizes = [1, 128], strides = [1, 1]} : vector<5x128xf32> to vector<1x128xf32>
    %c0_102 = arith.constant 0 : index
    %c0_103 = arith.constant 0 : index
    %c0_104 = arith.constant 0 : index
    %92 = vector.load %arg6[%c0_102, %c0_103, %c0_104] : memref<5x128x256xf32, #tpu.memory_space<vmem>>, vector<1x128x256xf32>
    %93 = vector.shape_cast %92 : vector<1x128x256xf32> to vector<128x256xf32>
    %cst_105 = arith.constant dense<0.000000e+00> : vector<1x256xf32>
    %94 = tpu.matmul %91, %93, %cst_105 {dimension_numbers = #tpu.dot_dimension_numbers<[1], [0], [0], [1], [0, 0, 1, 1], [], []>} : vector<1x128xf32>, vector<128x256xf32>, vector<1x256xf32> -> vector<1x256xf32>
    %95 = arith.addf %90, %94 : vector<1x256xf32>
    %96 = vector.extract_strided_slice %89 {offsets = [1, 0], sizes = [1, 128], strides = [1, 1]} : vector<5x128xf32> to vector<1x128xf32>
    %c1_106 = arith.constant 1 : index
    %c0_107 = arith.constant 0 : index
    %c0_108 = arith.constant 0 : index
    %97 = vector.load %arg6[%c1_106, %c0_107, %c0_108] : memref<5x128x256xf32, #tpu.memory_space<vmem>>, vector<1x128x256xf32>
    %98 = vector.shape_cast %97 : vector<1x128x256xf32> to vector<128x256xf32>
    %cst_109 = arith.constant dense<0.000000e+00> : vector<1x256xf32>
    %99 = tpu.matmul %96, %98, %cst_109 {dimension_numbers = #tpu.dot_dimension_numbers<[1], [0], [0], [1], [0, 0, 1, 1], [], []>} : vector<1x128xf32>, vector<128x256xf32>, vector<1x256xf32> -> vector<1x256xf32>
    %100 = arith.addf %95, %99 : vector<1x256xf32>
    %101 = vector.extract_strided_slice %89 {offsets = [2, 0], sizes = [1, 128], strides = [1, 1]} : vector<5x128xf32> to vector<1x128xf32>
    %c2_110 = arith.constant 2 : index
    %c0_111 = arith.constant 0 : index
    %c0_112 = arith.constant 0 : index
    %102 = vector.load %arg6[%c2_110, %c0_111, %c0_112] : memref<5x128x256xf32, #tpu.memory_space<vmem>>, vector<1x128x256xf32>
    %103 = vector.shape_cast %102 : vector<1x128x256xf32> to vector<128x256xf32>
    %cst_113 = arith.constant dense<0.000000e+00> : vector<1x256xf32>
    %104 = tpu.matmul %101, %103, %cst_113 {dimension_numbers = #tpu.dot_dimension_numbers<[1], [0], [0], [1], [0, 0, 1, 1], [], []>} : vector<1x128xf32>, vector<128x256xf32>, vector<1x256xf32> -> vector<1x256xf32>
    %105 = arith.addf %100, %104 : vector<1x256xf32>
    %106 = vector.extract_strided_slice %89 {offsets = [3, 0], sizes = [1, 128], strides = [1, 1]} : vector<5x128xf32> to vector<1x128xf32>
    %c3_114 = arith.constant 3 : index
    %c0_115 = arith.constant 0 : index
    %c0_116 = arith.constant 0 : index
    %107 = vector.load %arg6[%c3_114, %c0_115, %c0_116] : memref<5x128x256xf32, #tpu.memory_space<vmem>>, vector<1x128x256xf32>
    %108 = vector.shape_cast %107 : vector<1x128x256xf32> to vector<128x256xf32>
    %cst_117 = arith.constant dense<0.000000e+00> : vector<1x256xf32>
    %109 = tpu.matmul %106, %108, %cst_117 {dimension_numbers = #tpu.dot_dimension_numbers<[1], [0], [0], [1], [0, 0, 1, 1], [], []>} : vector<1x128xf32>, vector<128x256xf32>, vector<1x256xf32> -> vector<1x256xf32>
    %110 = arith.addf %105, %109 : vector<1x256xf32>
    %111 = vector.extract_strided_slice %89 {offsets = [4, 0], sizes = [1, 128], strides = [1, 1]} : vector<5x128xf32> to vector<1x128xf32>
    %c4_118 = arith.constant 4 : index
    %c0_119 = arith.constant 0 : index
    %c0_120 = arith.constant 0 : index
    %112 = vector.load %arg6[%c4_118, %c0_119, %c0_120] : memref<5x128x256xf32, #tpu.memory_space<vmem>>, vector<1x128x256xf32>
    %113 = vector.shape_cast %112 : vector<1x128x256xf32> to vector<128x256xf32>
    %cst_121 = arith.constant dense<0.000000e+00> : vector<1x256xf32>
    %114 = tpu.matmul %111, %113, %cst_121 {dimension_numbers = #tpu.dot_dimension_numbers<[1], [0], [0], [1], [0, 0, 1, 1], [], []>} : vector<1x128xf32>, vector<128x256xf32>, vector<1x256xf32> -> vector<1x256xf32>
    %115 = arith.addf %110, %114 : vector<1x256xf32>
    %c0_122 = arith.constant 0 : index
    %c0_123 = arith.constant 0 : index
    %116 = vector.load %arg7[%c0_122, %c0_123] : memref<1x256xf32, #tpu.memory_space<vmem>>, vector<1x256xf32>
    %117 = arith.addf %115, %116 : vector<1x256xf32>
    %cst_124 = arith.constant 0.000000e+00 : f32
    %118 = vector.broadcast %cst_124 : f32 to vector<1x256xf32>
    %119 = arith.maximumf %117, %118 : vector<1x256xf32>
    %c0_125 = arith.constant 0 : index
    %c0_126 = arith.constant 0 : index
    %120 = vector.load %arg8[%c0_125, %c0_126] : memref<256x2xf32, #tpu.memory_space<vmem>>, vector<256x2xf32>
    %cst_127 = arith.constant dense<0.000000e+00> : vector<1x2xf32>
    %121 = tpu.matmul %119, %120, %cst_127 {dimension_numbers = #tpu.dot_dimension_numbers<[1], [0], [0], [1], [0, 0, 1, 1], [], []>} : vector<1x256xf32>, vector<256x2xf32>, vector<1x2xf32> -> vector<1x2xf32>
    %c0_128 = arith.constant 0 : index
    %c0_129 = arith.constant 0 : index
    %122 = vector.load %arg9[%c0_128, %c0_129] : memref<1x2xf32, #tpu.memory_space<vmem>>, vector<1x2xf32>
    %123 = arith.addf %121, %122 : vector<1x2xf32>
    %cst_130 = arith.constant dense<0xFF800000> : vector<1xf32>
    %124 = vector.multi_reduction <maximumf>, %123, %cst_130 [1] : vector<1x2xf32> to vector<1xf32>
    %125 = vector.shape_cast %124 : vector<1xf32> to vector<1x1xf32>
    %126 = vector.broadcast %125 : vector<1x1xf32> to vector<1x2xf32>
    %127 = arith.subf %123, %126 : vector<1x2xf32>
    %128 = math.exp %127 : vector<1x2xf32>
    %cst_131 = arith.constant dense<0.000000e+00> : vector<1xf32>
    %129 = vector.multi_reduction <add>, %128, %cst_131 [1] : vector<1x2xf32> to vector<1xf32>
    %130 = vector.shape_cast %129 : vector<1xf32> to vector<1x1xf32>
    %131 = math.log %130 : vector<1x1xf32>
    %132 = vector.broadcast %131 : vector<1x1xf32> to vector<1x2xf32>
    %133 = arith.subf %127, %132 : vector<1x2xf32>
    %134 = vector.shape_cast %133 : vector<1x2xf32> to vector<1x1x2xf32>
    %c0_132 = arith.constant 0 : index
    %c0_133 = arith.constant 0 : index
    %c0_134 = arith.constant 0 : index
    %135 = vector.load %arg10[%c0_132, %c0_133, %c0_134] : memref<1x1x2xf32, #tpu.memory_space<vmem>>, vector<1x1x2xf32>
    tpu.vector_store %arg10[%c0_132, %c0_133, %c0_134], %134 {strides = array<i32>} : memref<1x1x2xf32, #tpu.memory_space<vmem>>, vector<1x1x2xf32>,
    return
  }
  func.func @transform_0(%arg0: i32) -> (i32, i32, i32) {
    %c0_i32 = arith.constant 0 : i32
    %c0_i32_0 = arith.constant 0 : i32
    %c0_i32_1 = arith.constant 0 : i32
    return %arg0, %c0_i32, %c0_i32_0 : i32, i32, i32
  }
  func.func @transform_1(%arg0: i32) -> (i32, i32, i32) {
    %c0_i32 = arith.constant 0 : i32
    %c0_i32_0 = arith.constant 0 : i32
    %c0_i32_1 = arith.constant 0 : i32
    %c0_i32_2 = arith.constant 0 : i32
    return %c0_i32, %c0_i32_0, %c0_i32_1 : i32, i32, i32
  }
  func.func @transform_2(%arg0: i32) -> (i32, i32) {
    %c0_i32 = arith.constant 0 : i32
    %c0_i32_0 = arith.constant 0 : i32
    %c0_i32_1 = arith.constant 0 : i32
    return %c0_i32, %c0_i32_0 : i32, i32
  }
  func.func @transform_3(%arg0: i32) -> (i32, i32) {
    %c0_i32 = arith.constant 0 : i32
    %c0_i32_0 = arith.constant 0 : i32
    %c0_i32_1 = arith.constant 0 : i32
    return %c0_i32, %c0_i32_0 : i32, i32
  }
  func.func @transform_4(%arg0: i32) -> (i32, i32) {
    %c0_i32 = arith.constant 0 : i32
    %c0_i32_0 = arith.constant 0 : i32
    %c0_i32_1 = arith.constant 0 : i32
    return %c0_i32, %c0_i32_0 : i32, i32
  }
  func.func @transform_5(%arg0: i32) -> (i32, i32, i32) {
    %c0_i32 = arith.constant 0 : i32
    %c0_i32_0 = arith.constant 0 : i32
    %c0_i32_1 = arith.constant 0 : i32
    %c0_i32_2 = arith.constant 0 : i32
    return %c0_i32, %c0_i32_0, %c0_i32_1 : i32, i32, i32
  }
  func.func @transform_6(%arg0: i32) -> (i32, i32) {
    %c0_i32 = arith.constant 0 : i32
    %c0_i32_0 = arith.constant 0 : i32
    %c0_i32_1 = arith.constant 0 : i32
    return %c0_i32, %c0_i32_0 : i32, i32
  }
  func.func @transform_7(%arg0: i32) -> (i32, i32) {
    %c0_i32 = arith.constant 0 : i32
    %c0_i32_0 = arith.constant 0 : i32
    %c0_i32_1 = arith.constant 0 : i32
    return %c0_i32, %c0_i32_0 : i32, i32
  }
  func.func @transform_8(%arg0: i32) -> (i32, i32) {
    %c0_i32 = arith.constant 0 : i32
    %c0_i32_0 = arith.constant 0 : i32
    %c0_i32_1 = arith.constant 0 : i32
    return %c0_i32, %c0_i32_0 : i32, i32
  }
  func.func @transform_9(%arg0: i32) -> (i32, i32, i32) {
    %c0_i32 = arith.constant 0 : i32
    %c0_i32_0 = arith.constant 0 : i32
    %c0_i32_1 = arith.constant 0 : i32
    return %arg0, %c0_i32, %c0_i32_0 : i32, i32, i32
  }
}

</mosaic_0001>

<llo_original>
// kernel: net_small_forward.1
$region0: #{net_small_forward.1}
  #allocation0 [shape = 'u32[]', space=smem, size = 0x4, offset = 0x4, fixed_abs, tag = 'smem constant byte address 0x4 - core index']
  #allocation1 [shape = 'u32[144,128]{1,0:T(1,128)}', space=vmem, size = 0x12000, scoped, tag = 'internal scratch']
  #allocation2 [shape = 'f32[20,32]{1,0:T(8,128)}', space=vmem, size = 0x3000, scoped, tag = 'scratch operand']
  #allocation3 [shape = 'f32[13,128]{1,0:T(8,128)}', space=vmem, size = 0x2000, scoped, tag = 'scratch operand']
  #allocation4 [shape = 'f32[38,128]{1,0:T(8,128)}', space=vmem, size = 0x5000, scoped, tag = 'scratch operand']
  #allocation5 [shape = 'f32[12,128]{1,0:T(8,128)}', space=vmem, size = 0x2000, scoped, tag = 'scratch operand']
  %s0 = inlined_call_operand.vmem [shape: f32[2,4,32], index: 0, kind: input, shape index: {}]
  %s1 = inlined_call_operand.vmem [shape: f32[8,32,128], index: 1, kind: input, shape index: {}]
  %s2 = inlined_call_operand.vmem [shape: f32[1,128], index: 2, kind: input, shape index: {}]
  %s3 = inlined_call_operand.hbm [shape: f32[2048,128], index: 3, kind: input, shape index: {}]
  %s4 = inlined_call_operand.vmem [shape: f32[1,128], index: 4, kind: input, shape index: {}]
  %s5 = inlined_call_operand.hbm [shape: f32[5,128,256], index: 5, kind: input, shape index: {}]
  %s6 = inlined_call_operand.vmem [shape: f32[1,256], index: 6, kind: input, shape index: {}]
  %s7 = inlined_call_operand.vmem [shape: f32[256,2], index: 7, kind: input, shape index: {}]
  %s8 = inlined_call_operand.vmem [shape: f32[1,2], index: 8, kind: input, shape index: {}]
  %s9 = inlined_call_operand.hbm [shape: f32[2,1,2], index: 9, kind: output, shape index: {}]
  %s10 = sld [smem:[#allocation0]]
  $region77: #{net_small_forward.1} parent=0
    _
  %s12 = ssub.s32 1, %s10
  %s13 = scalar_select 0, %s12, %s10
  $region1: #{net_small_forward.1} parent=0
    #allocation6 [shape = 'u8[1048576]{0}', space=vmem, size = 0x100000, scoped, tag = 'input window, operand 3, single buffered']
    #allocation7 [shape = 's32[2]{0}', space=sflag, size = 0x8, scoped, tag = 'scoped memory for net_small_forward.1']
    #allocation8 [shape = 's32[2]{0}', space=sflag, size = 0x8, scoped, tag = 'scoped memory for net_small_forward.1']
    #allocation9 [shape = 'u8[655360]{0}', space=vmem, size = 0xa0000, scoped, tag = 'input window, operand 5, single buffered']
    #allocation10 [shape = 's32[1]{0}', space=sflag, size = 0x4, scoped, tag = 'scoped memory for net_small_forward.1']
    #allocation11 [shape = 'u8[1024]{0}', space=vmem, size = 0x400, scoped, tag = 'output window, operand 0']
    %14 = vsyncpa [#allocation7], 0
    %15 = vsyncpa [#allocation10], 0
    %16 = vsyncpa [#allocation8], 0
    %s17 = scalar_lea.sflag [#allocation8], 1
    %18 = vsyncpa %s17, 0
    loop: start=0, step=1, limit=4
    $region2: #{net_small_forward.1} parent=1 // loop_pre_header
      _
    $region3: #{net_small_forward.1} parent=1 // loop_header
      %s20 = sphi 0, %s24
      %p21 = scmp.ge.s32.totalorder %s20, 4
      %s30 = sphi 0, %s32
      %s33 = sphi 0, %s30
      %s34 = sphi 0, %s33
      %s50 = sphi 0, %s34
      %s54 = sphi 0, %s54
      %s56 = sphi 0, %s54
      %s57 = sphi 0, %s56
      %s71 = sphi 0, %s57
      %s75 = sphi 0, %s75
      %s77 = sphi 0, %s75
      %s78 = sphi 0, %s77
      %s92 = sphi 0, %s78
      %s96 = sphi 0, %s96
      %s98 = sphi 0, %s96
      %s99 = sphi 0, %s98
      %s113 = sphi 0, %s99
      %s117 = sphi 0, %s117
      %s119 = sphi 0, %s117
      %s120 = sphi 0, %s119
      %s134 = sphi 0, %s120
      %s138 = sphi 0, %s138
      %s140 = sphi 0, %s138
      %s141 = sphi 0, %s140
      %s155 = sphi 0, %s141
      %s159 = sphi 0, %s159
      %s161 = sphi 0, %s159
      %s162 = sphi 0, %s161
      %s176 = sphi 0, %s162
      %s180 = sphi 0, %s180
      %s182 = sphi 0, %s180
      %s183 = sphi 0, %s182
      %s197 = sphi 0, %s183
      %s201 = sphi 0, %s201
      %s203 = sphi 0, %s201
      %s204 = sphi 0, %s203
      %s218 = sphi 0, %s204
      %s224 = sphi 0, %s226
      %s227 = sphi 0, %s224
      %s228 = sphi 0, %s227
      %s244 = sphi 0, %s228
    $region4: #{net_small_forward.1} parent=1 // loop_header_branch
      %23 = sbr.rel (%p21) target = $region8
    $region5: #{net_small_forward.1} parent=1 // loop_body
      %s25 = ssub.s32 %s20, 1
      %s26 = ssub.s32 %s20, 2
      %s27 = sadd.s32 %s20, 1
      %s28 = ssub.s32 %s20, %s27
      %p29 = scmp.eq.s32.totalorder %s28, 0
      %s31 = sadd.s32 %s30, 1
      %s32 = scalar_select %p29, %s30, %s31
      %p35 = pneg %p29
      %p36 = scmp.eq.s32.totalorder %s20, 1
      %p37 = por %p35, %p36
      %p38 = scmp.ne.s32.totalorder %s30, %s33
      %p39 = scmp.eq.s32.totalorder %s20, 0
      %p40 = por %p38, %p39
      %p41 = scmp.ne.s32.totalorder %s30, %s33
      %p42 = scmp.eq.s32.totalorder %s25, 1
      %p43 = por %p41, %p42
      %p44 = scmp.ne.s32.totalorder %s33, %s34
      %p45 = scmp.eq.s32.totalorder %s25, 0
      %p46 = por %p44, %p45
      %p47 = scmp.ne.s32.totalorder %s33, %s34
      %p48 = scmp.eq.s32.totalorder %s26, 1
      %p49 = por %p47, %p48
      %p51 = scmp.ne.s32.totalorder %s34, %s50
      %p52 = scmp.eq.s32.totalorder %s26, 0
      %p53 = por %p51, %p52
      %s55 = sadd.s32 %s54, 1
      %p58 = scmp.eq.s32.totalorder %s20, 1
      %p59 = scmp.ne.s32.totalorder %s54, %s56
      %p60 = scmp.eq.s32.totalorder %s20, 0
      %p61 = por %p59, %p60
      %p62 = scmp.ne.s32.totalorder %s54, %s56
      %p63 = scmp.eq.s32.totalorder %s25, 1
      %p64 = por %p62, %p63
      %p65 = scmp.ne.s32.totalorder %s56, %s57
      %p66 = scmp.eq.s32.totalorder %s25, 0
      %p67 = por %p65, %p66
      %p68 = scmp.ne.s32.totalorder %s56, %s57
      %p69 = scmp.eq.s32.totalorder %s26, 1
      %p70 = por %p68, %p69
      %p72 = scmp.ne.s32.totalorder %s57, %s71
      %p73 = scmp.eq.s32.totalorder %s26, 0
      %p74 = por %p72, %p73
      %s76 = sadd.s32 %s75, 1
      %p79 = scmp.eq.s32.totalorder %s20, 1
      %p80 = scmp.ne.s32.totalorder %s75, %s77
      %p81 = scmp.eq.s32.totalorder %s20, 0
      %p82 = por %p80, %p81
      %p83 = scmp.ne.s32.totalorder %s75, %s77
      %p84 = scmp.eq.s32.totalorder %s25, 1
      %p85 = por %p83, %p84
      %p86 = scmp.ne.s32.totalorder %s77, %s78
      %p87 = scmp.eq.s32.totalorder %s25, 0
      %p88 = por %p86, %p87
      %p89 = scmp.ne.s32.totalorder %s77, %s78
      %p90 = scmp.eq.s32.totalorder %s26, 1
      %p91 = por %p89, %p90
      %p93 = scmp.ne.s32.totalorder %s78, %s92
      %p94 = scmp.eq.s32.totalorder %s26, 0
      %p95 = por %p93, %p94
      %s97 = sadd.s32 %s96, 1
      %p100 = scmp.eq.s32.totalorder %s20, 1
      %p101 = scmp.ne.s32.totalorder %s96, %s98
      %p102 = scmp.eq.s32.totalorder %s20, 0
      %p103 = por %p101, %p102
      %p104 = scmp.ne.s32.totalorder %s96, %s98
      %p105 = scmp.eq.s32.totalorder %s25, 1
      %p106 = por %p104, %p105
      %p107 = scmp.ne.s32.totalorder %s98, %s99
      %p108 = scmp.eq.s32.totalorder %s25, 0
      %p109 = por %p107, %p108
      %p110 = scmp.ne.s32.totalorder %s98, %s99
      %p111 = scmp.eq.s32.totalorder %s26, 1
      %p112 = por %p110, %p111
      %p114 = scmp.ne.s32.totalorder %s99, %s113
      %p115 = scmp.eq.s32.totalorder %s26, 0
      %p116 = por %p114, %p115
      %s118 = sadd.s32 %s117, 1
      %p121 = scmp.eq.s32.totalorder %s20, 1
      %p122 = scmp.ne.s32.totalorder %s117, %s119
      %p123 = scmp.eq.s32.totalorder %s20, 0
      %p124 = por %p122, %p123
      %p125 = scmp.ne.s32.totalorder %s117, %s119
      %p126 = scmp.eq.s32.totalorder %s25, 1
      %p127 = por %p125, %p126
      %p128 = scmp.ne.s32.totalorder %s119, %s120
      %p129 = scmp.eq.s32.totalorder %s25, 0
      %p130 = por %p128, %p129
      %p131 = scmp.ne.s32.totalorder %s119, %s120
      %p132 = scmp.eq.s32.totalorder %s26, 1
      %p133 = por %p131, %p132
      %p135 = scmp.ne.s32.totalorder %s120, %s134
      %p136 = scmp.eq.s32.totalorder %s26, 0
      %p137 = por %p135, %p136
      %s139 = sadd.s32 %s138, 1
      %p142 = scmp.eq.s32.totalorder %s20, 1
      %p143 = scmp.ne.s32.totalorder %s138, %s140
      %p144 = scmp.eq.s32.totalorder %s20, 0
      %p145 = por %p143, %p144
      %p146 = scmp.ne.s32.totalorder %s138, %s140
      %p147 = scmp.eq.s32.totalorder %s25, 1
      %p148 = por %p146, %p147
      %p149 = scmp.ne.s32.totalorder %s140, %s141
      %p150 = scmp.eq.s32.totalorder %s25, 0
      %p151 = por %p149, %p150
      %p152 = scmp.ne.s32.totalorder %s140, %s141
      %p153 = scmp.eq.s32.totalorder %s26, 1
      %p154 = por %p152, %p153
      %p156 = scmp.ne.s32.totalorder %s141, %s155
      %p157 = scmp.eq.s32.totalorder %s26, 0
      %p158 = por %p156, %p157
      %s160 = sadd.s32 %s159, 1
      %p163 = scmp.eq.s32.totalorder %s20, 1
      %p164 = scmp.ne.s32.totalorder %s159, %s161
      %p165 = scmp.eq.s32.totalorder %s20, 0
      %p166 = por %p164, %p165
      %p167 = scmp.ne.s32.totalorder %s159, %s161
      %p168 = scmp.eq.s32.totalorder %s25, 1
      %p169 = por %p167, %p168
      %p170 = scmp.ne.s32.totalorder %s161, %s162
      %p171 = scmp.eq.s32.totalorder %s25, 0
      %p172 = por %p170, %p171
      %p173 = scmp.ne.s32.totalorder %s161, %s162
      %p174 = scmp.eq.s32.totalorder %s26, 1
      %p175 = por %p173, %p174
      %p177 = scmp.ne.s32.totalorder %s162, %s176
      %p178 = scmp.eq.s32.totalorder %s26, 0
      %p179 = por %p177, %p178
      %s181 = sadd.s32 %s180, 1
      %p184 = scmp.eq.s32.totalorder %s20, 1
      %p185 = scmp.ne.s32.totalorder %s180, %s182
      %p186 = scmp.eq.s32.totalorder %s20, 0
      %p187 = por %p185, %p186
      %p188 = scmp.ne.s32.totalorder %s180, %s182
      %p189 = scmp.eq.s32.totalorder %s25, 1
      %p190 = por %p188, %p189
      %p191 = scmp.ne.s32.totalorder %s182, %s183
      %p192 = scmp.eq.s32.totalorder %s25, 0
      %p193 = por %p191, %p192
      %p194 = scmp.ne.s32.totalorder %s182, %s183
      %p195 = scmp.eq.s32.totalorder %s26, 1
      %p196 = por %p194, %p195
      %p198 = scmp.ne.s32.totalorder %s183, %s197
      %p199 = scmp.eq.s32.totalorder %s26, 0
      %p200 = por %p198, %p199
      %s202 = sadd.s32 %s201, 1
      %p205 = scmp.eq.s32.totalorder %s20, 1
      %p206 = scmp.ne.s32.totalorder %s201, %s203
      %p207 = scmp.eq.s32.totalorder %s20, 0
      %p208 = por %p206, %p207
      %p209 = scmp.ne.s32.totalorder %s201, %s203
      %p210 = scmp.eq.s32.totalorder %s25, 1
      %p211 = por %p209, %p210
      %p212 = scmp.ne.s32.totalorder %s203, %s204
      %p213 = scmp.eq.s32.totalorder %s25, 0
      %p214 = por %p212, %p213
      %p215 = scmp.ne.s32.totalorder %s203, %s204
      %p216 = scmp.eq.s32.totalorder %s26, 1
      %p217 = por %p215, %p216
      %p219 = scmp.ne.s32.totalorder %s204, %s218
      %p220 = scmp.eq.s32.totalorder %s26, 0
      %p221 = por %p219, %p220
      %s222 = ssub.s32 %s20, %s27
      %p223 = scmp.eq.s32.totalorder %s222, 0
      %s225 = sadd.s32 %s224, 1
      %s226 = scalar_select %p223, %s224, %s225
      %p229 = pneg %p223
      %p230 = scmp.eq.s32.totalorder %s20, 1
      %p231 = por %p229, %p230
      %p232 = scmp.ne.s32.totalorder %s224, %s227
      %p233 = scmp.eq.s32.totalorder %s20, 0
      %p234 = por %p232, %p233
      %p235 = scmp.ne.s32.totalorder %s224, %s227
      %p236 = scmp.eq.s32.totalorder %s25, 1
      %p237 = por %p235, %p236
      %p238 = scmp.ne.s32.totalorder %s227, %s228
      %p239 = scmp.eq.s32.totalorder %s25, 0
      %p240 = por %p238, %p239
      %p241 = scmp.ne.s32.totalorder %s227, %s228
      %p242 = scmp.eq.s32.totalorder %s26, 1
      %p243 = por %p241, %p242
      %p245 = scmp.ne.s32.totalorder %s228, %s244
      %p246 = scmp.eq.s32.totalorder %s26, 0
      %p247 = por %p245, %p246
      %p248 = scmp.le.s32.totalorder 1, %s20
      %p249 = scmp.lt.s32.totalorder %s20, 3
      %p250 = pnand %p248, %p249
      %p251 = pneg %p250
      // Predicated region
      $region9: #{net_small_forward.1} parent=5 // pred_check
        _
      $region10: #{net_small_forward.1} parent=5 // pred_check_branch
        %253 = sbr.rel (%p250) target = $region12
      $region11: #{net_small_forward.1} parent=5 // pred_region
        %s254 = ssub.s32 %s20, 1
        // Predicated region
        $region13: #{net_small_forward.1} parent=11 // pred_check
          %p255 = pneg %p67
        $region14: #{net_small_forward.1} parent=11 // pred_check_branch
          %257 = sbr.rel (%p255) target = $region16
        $region15: #{net_small_forward.1} parent=11 // pred_region
          _
        $region16: #{net_small_forward.1} parent=11 // pred_fallthru
          _
        // Predicated region
        $region17: #{net_small_forward.1} parent=11 // pred_check
          %p258 = pneg %p88
        $region18: #{net_small_forward.1} parent=11 // pred_check_branch
          %260 = sbr.rel (%p258) target = $region20
        $region19: #{net_small_forward.1} parent=11 // pred_region
          _
        $region20: #{net_small_forward.1} parent=11 // pred_fallthru
          _
        // Predicated region
        $region21: #{net_small_forward.1} parent=11 // pred_check
          %p261 = pneg %p109
        $region22: #{net_small_forward.1} parent=11 // pred_check_branch
          %263 = sbr.rel (%p261) target = $region24
        $region23: #{net_small_forward.1} parent=11 // pred_region
          %s265 = ssub.s32 32768, 32768
          %266 = vsyncadd [#allocation7], %s265
          %s267 = sshll.u32 [#allocation6], 4
          %s268 = int_to_ptr.vmem [resolvable:$true] %s267
          %273 = dma.hbm_to_vmem [thread:$0]  %s3, 32768, %s268, [#allocation7], 128, 128, 8
        $region24: #{net_small_forward.1} parent=11 // pred_fallthru
          _
        // Predicated region
        $region25: #{net_small_forward.1} parent=11 // pred_check
          %p274 = pneg %p130
        $region26: #{net_small_forward.1} parent=11 // pred_check_branch
          %276 = sbr.rel (%p274) target = $region28
        $region27: #{net_small_forward.1} parent=11 // pred_region
          _
        $region28: #{net_small_forward.1} parent=11 // pred_fallthru
          _
        // Predicated region
        $region29: #{net_small_forward.1} parent=11 // pred_check
          %p277 = pneg %p151
        $region30: #{net_small_forward.1} parent=11 // pred_check_branch
          %279 = sbr.rel (%p277) target = $region32
        $region31: #{net_small_forward.1} parent=11 // pred_region
          %s281 = ssub.s32 20480, 20480
          %282 = vsyncadd [#allocation10], %s281
          %s283 = sshll.u32 [#allocation9], 4
          %s284 = int_to_ptr.vmem [resolvable:$true] %s283
          %289 = dma.hbm_to_vmem [thread:$0]  %s5, 20480, %s284, [#allocation10], 256, 256, 16
        $region32: #{net_small_forward.1} parent=11 // pred_fallthru
          _
        // Predicated region
        $region33: #{net_small_forward.1} parent=11 // pred_check
          %p290 = pneg %p172
        $region34: #{net_small_forward.1} parent=11 // pred_check_branch
          %292 = sbr.rel (%p290) target = $region36
        $region35: #{net_small_forward.1} parent=11 // pred_region
          _
        $region36: #{net_small_forward.1} parent=11 // pred_fallthru
          _
        // Predicated region
        $region37: #{net_small_forward.1} parent=11 // pred_check
          %p293 = pneg %p193
        $region38: #{net_small_forward.1} parent=11 // pred_check_branch
          %295 = sbr.rel (%p293) target = $region40
        $region39: #{net_small_forward.1} parent=11 // pred_region
          _
        $region40: #{net_small_forward.1} parent=11 // pred_fallthru
          _
        // Predicated region
        $region41: #{net_small_forward.1} parent=11 // pred_check
          %p296 = pneg %p214
        $region42: #{net_small_forward.1} parent=11 // pred_check_branch
          %298 = sbr.rel (%p296) target = $region44
        $region43: #{net_small_forward.1} parent=11 // pred_region
          _
        $region44: #{net_small_forward.1} parent=11 // pred_fallthru
          _
      $region12: #{net_small_forward.1} parent=5 // pred_fallthru
        _
      %p299 = scmp.lt.s32.totalorder %s20, 2
      // Predicated region
      $region45: #{net_small_forward.1} parent=5 // pred_check
        %p300 = pneg %p299
      $region46: #{net_small_forward.1} parent=5 // pred_check_branch
        %302 = sbr.rel (%p300) target = $region48
      $region47: #{net_small_forward.1} parent=5 // pred_region
        // Predicated region
        $region49: #{net_small_forward.1} parent=47 // pred_check
          %p303 = pneg %p40
        $region50: #{net_small_forward.1} parent=47 // pred_check_branch
          %305 = sbr.rel (%p303) target = $region52
        $region51: #{net_small_forward.1} parent=47 // pred_region
          %p306 = scmp.lt.s32.totalorder %s20, 1
          %s307 = scalar_select %p306, %s20, 1
          %s308 = smul.addr %s307, 4
          %s309 = scalar_lea.vmem %s0, %s308
        $region52: #{net_small_forward.1} parent=47 // pred_fallthru
          _
      $region48: #{net_small_forward.1} parent=5 // pred_fallthru
        _
      %p310 = scmp.le.s32.totalorder 1, %s20
      %p311 = scmp.lt.s32.totalorder %s20, 3
      %p312 = pnand %p310, %p311
      %p313 = pneg %p312
      // Predicated region
      $region53: #{net_small_forward.1} parent=5 // pred_check
        _
      $region54: #{net_small_forward.1} parent=5 // pred_check_branch
        %315 = sbr.rel (%p312) target = $region56
      $region55: #{net_small_forward.1} parent=5 // pred_region
        %s316 = ssub.s32 %s20, 1
        // Predicated region
        $region57: #{net_small_forward.1} parent=55 // pred_check
          %p317 = pneg %p109
        $region58: #{net_small_forward.1} parent=55 // pred_check_branch
          %319 = sbr.rel (%p317) target = $region60
        $region59: #{net_small_forward.1} parent=55 // pred_region
          %320 = dma.done [#allocation7], 32768
        $region60: #{net_small_forward.1} parent=55 // pred_fallthru
          _
        // Predicated region
        $region61: #{net_small_forward.1} parent=55 // pred_check
          %p321 = pneg %p151
        $region62: #{net_small_forward.1} parent=55 // pred_check_branch
          %323 = sbr.rel (%p321) target = $region64
        $region63: #{net_small_forward.1} parent=55 // pred_region
          %324 = dma.done [#allocation10], 20480
        $region64: #{net_small_forward.1} parent=55 // pred_fallthru
          _
        %p325 = scmp.lt.s32.totalorder %s25, 1
        %s326 = scalar_select %p325, %s25, 1
        %s327 = smul.addr %s326, 4
        %s328 = scalar_lea.vmem %s0, %s327
        %p329 = pneg %p46
        %p330 = pneg %p43
        %p331 = pneg %p67
        %p332 = pneg %p64
        %p333 = pneg %p88
        %p334 = pneg %p85
        %p335 = pneg %p109
        %p336 = pneg %p106
        %p337 = pneg %p130
        %p338 = pneg %p127
        %p339 = pneg %p151
        %p340 = pneg %p148
        %p341 = pneg %p172
        %p342 = pneg %p169
        %p343 = pneg %p193
        %p344 = pneg %p190
        %p345 = pneg %p214
        %p346 = pneg %p211
        %p347 = pneg %p240
        %p348 = pneg %p237
        %s349 = sand.u32 %s227, 1
        %s350 = scalar_lea.sflag [#allocation8], %s349
        %s351 = sand.u32 %s227, 1
        %s352 = scalar_lea.vmem [#allocation11], %s351
        %p353 = scmp.lt.s32.totalorder %s25, 1
        %s354 = scalar_select %p353, %s25, 1
        %s355 = smul.addr %s354, 4
        %s356 = scalar_lea.vmem %s0, %s355
        %vm357 = vcmask 261120
        %358 = vst.msk [vmem:[#allocation2] sm:$0xff] %vm357, 0.0
        %359 = vst.msk [vmem:[#allocation2 + $0x8] sm:$0xff] %vm357, 0.0
        %vm360 = vcmask 257024
        %361 = vst.msk [vmem:[#allocation2 + $0x10] sm:$0xf] %vm360, 0.0
        %v362 = vld [vmem:[%s356] sm:$0xf]
        %363 = vst.msk [vmem:[#allocation2 + $0x8] sm:$0xf] %vm360, %v362
        %v364 = vld [vmem:[#allocation2] sm:$0xff]
        %v365 = vld [vmem:[#allocation2 + $0x8] sm:$0x1f]
        %v366 = vld [vmem:[%s1] sm:$0xff]
        %v367 = vld [vmem:[%s1 + $0x8] sm:$0xff]
        %v368 = vld [vmem:[%s1 + $0x10] sm:$0xff]
        %v369 = vld [vmem:[%s1 + $0x18] sm:$0xff]
        %v370 = vld [vmem:[#allocation2 + $0x1] sm:$0xff]
        %v371 = vld [vmem:[#allocation2 + $0x9] sm:$0x1f]
        %s372 = scalar_lea.vmem %s1, 32
        %v373 = vld [vmem:[%s372] sm:$0xff]
        %v374 = vld [vmem:[%s372 + $0x8] sm:$0xff]
        %v375 = vld [vmem:[%s372 + $0x10] sm:$0xff]
        %v376 = vld [vmem:[%s372 + $0x18] sm:$0xff]
        %v378 = vsel %vm357, %v370, 0
        %v381 = vsel %vm357, %v371, 0
        %383 = vmatprep.subr.mxu0 0.0
        %384 = vmatpush1.msra.mxu0 %v373
        %385 = vmatprep.subr.mxu0 0.0
        %386 = vmatpush1.msra.mxu0 %v374
        %387 = vmatprep.subr.mxu0 0.0
        %388 = vmatpush1.msra.mxu0 %v375
        %389 = vmatprep.subr.mxu0 0.0
        %390 = vmatpush1.msra.mxu0 %v376
        %391 = vmatprep.subr.mxu0 0.0
        %392 = vmatpush1.msra.mxu0 0.0
        %393 = vmatprep.subr.mxu0 0.0
        %394 = vmatpush1.msra.mxu0 0.0
        %395 = vmatprep.subr.mxu0 0.0
        %396 = vmatpush1.msra.mxu0 0.0
        %397 = vmatprep.subr.mxu0 0.0
        %398 = vmatpush1.msra.mxu0 0.0
        %399 = vmatprep.subr.mxu0 0.0
        %400 = vmatpush1.msra.mxu0 0.0
        %401 = vmatprep.subr.mxu0 0.0
        %402 = vmatpush1.msra.mxu0 0.0
        %403 = vmatprep.subr.mxu0 0.0
        %404 = vmatpush1.msra.mxu0 0.0
        %405 = vmatprep.subr.mxu0 0.0
        %406 = vmatpush1.msra.mxu0 0.0
        %407 = vmatprep.subr.mxu0 0.0
        %408 = vmatpush1.msra.mxu0 0.0
        %409 = vmatprep.subr.mxu0 0.0
        %410 = vmatpush1.msra.mxu0 0.0
        %411 = vmatprep.subr.mxu0 0.0
        %412 = vmatpush1.msra.mxu0 0.0
        %413 = vmatprep.subr.mxu0 0.0
        %414 = vmatpush1.msra.mxu0 0.0
        %415 = vmatprep.subr.mxu0 0.0
        %416 = vmatpush1.msra.mxu0 0.0
        %417 = vmatprep.subr.mxu0 0.0
        %418 = vmatpush1.msra.mxu0 0.0
        %419 = vmatprep.subr.mxu0 0.0
        %420 = vmatpush1.msra.mxu0 0.0
        %421 = vmatprep.subr.mxu0 0.0
        %422 = vmatpush1.msra.mxu0 0.0
        %423 = vmatprep.subr.mxu0 0.0
        %424 = vmatpush1.msra.mxu0 0.0
        %425 = vmatprep.subr.mxu0 0.0
        %426 = vmatpush1.msra.mxu0 0.0
        %427 = vmatprep.subr.mxu0 0.0
        %428 = vmatpush1.msra.mxu0 0.0
        %429 = vmatprep.subr.mxu0 0.0
        %430 = vmatpush1.msra.mxu0 0.0
        %431 = vmatprep.subr.mxu0 0.0
        %432 = vmatpush1.msra.mxu0 0.0
        %433 = vmatprep.subr.mxu0 0.0
        %434 = vmatpush1.msra.mxu0 0.0
        %435 = vmatprep.subr.mxu0 0.0
        %436 = vmatpush1.msra.mxu0 0.0
        %437 = vmatprep.subr.mxu0 0.0
        %438 = vmatpush1.msra.mxu0 0.0
        %439 = vmatprep.subr.mxu0 0.0
        %440 = vmatpush1.msra.mxu0 0.0
        %441 = vmatprep.subr.mxu0 0.0
        %442 = vmatpush1.msra.mxu0 0.0
        %443 = vmatprep.subr.mxu0 0.0
        %444 = vmatpush1.msra.mxu0 0.0
        %445 = vmatprep.subr.mxu0 0.0
        %446 = vmatpush1.msra.mxu0 0.0
        %447 = vmatprep.mubr.f32.mxu0 0.0
        %448 = vmatmul.mubr.f32.gmra.mrb[0].mxu0 %v378
        %v449 = vpop.f32.mrb[0].mxu0
        %v450 = vadd.f32 0.0, %v449
        %v451 = vpop.f32.mrb[0].mxu0
        %452 = vmatprep.mubr.f32.mxu0 0.0
        %453 = vmatmul.mubr.f32.gmra.mrb[0].mxu0 %v381
        %v454 = vpop.f32.mrb[0].mxu0
        %v455 = vadd.f32 0.0, %v454
        %v456 = vpop.f32.mrb[0].mxu0
        %457 = vdwg.mxu0
        %v459 = vsel %vm357, %v364, 0
        %v462 = vsel %vm357, %v365, 0
        %464 = vmatprep.subr.mxu0 0.0
        %465 = vmatpush1.msra.mxu0 %v366
        %466 = vmatprep.subr.mxu0 0.0
        %467 = vmatpush1.msra.mxu0 %v367
        %468 = vmatprep.subr.mxu0 0.0
        %469 = vmatpush1.msra.mxu0 %v368
        %470 = vmatprep.subr.mxu0 0.0
        %471 = vmatpush1.msra.mxu0 %v369
        %472 = vmatprep.subr.mxu0 0.0
        %473 = vmatpush1.msra.mxu0 0.0
        %474 = vmatprep.subr.mxu0 0.0
        %475 = vmatpush1.msra.mxu0 0.0
        %476 = vmatprep.subr.mxu0 0.0
        %477 = vmatpush1.msra.mxu0 0.0
        %478 = vmatprep.subr.mxu0 0.0
        %479 = vmatpush1.msra.mxu0 0.0
        %480 = vmatprep.subr.mxu0 0.0
        %481 = vmatpush1.msra.mxu0 0.0
        %482 = vmatprep.subr.mxu0 0.0
        %483 = vmatpush1.msra.mxu0 0.0
        %484 = vmatprep.subr.mxu0 0.0
        %485 = vmatpush1.msra.mxu0 0.0
        %486 = vmatprep.subr.mxu0 0.0
        %487 = vmatpush1.msra.mxu0 0.0
        %488 = vmatprep.subr.mxu0 0.0
        %489 = vmatpush1.msra.mxu0 0.0
        %490 = vmatprep.subr.mxu0 0.0
        %491 = vmatpush1.msra.mxu0 0.0
        %492 = vmatprep.subr.mxu0 0.0
        %493 = vmatpush1.msra.mxu0 0.0
        %494 = vmatprep.subr.mxu0 0.0
        %495 = vmatpush1.msra.mxu0 0.0
        %496 = vmatprep.subr.mxu0 0.0
        %497 = vmatpush1.msra.mxu0 0.0
        %498 = vmatprep.subr.mxu0 0.0
        %499 = vmatpush1.msra.mxu0 0.0
        %500 = vmatprep.subr.mxu0 0.0
        %501 = vmatpush1.msra.mxu0 0.0
        %502 = vmatprep.subr.mxu0 0.0
        %503 = vmatpush1.msra.mxu0 0.0
        %504 = vmatprep.subr.mxu0 0.0
        %505 = vmatpush1.msra.mxu0 0.0
        %506 = vmatprep.subr.mxu0 0.0
        %507 = vmatpush1.msra.mxu0 0.0
        %508 = vmatprep.subr.mxu0 0.0
        %509 = vmatpush1.msra.mxu0 0.0
        %510 = vmatprep.subr.mxu0 0.0
        %511 = vmatpush1.msra.mxu0 0.0
        %512 = vmatprep.subr.mxu0 0.0
        %513 = vmatpush1.msra.mxu0 0.0
        %514 = vmatprep.subr.mxu0 0.0
        %515 = vmatpush1.msra.mxu0 0.0
        %516 = vmatprep.subr.mxu0 0.0
        %517 = vmatpush1.msra.mxu0 0.0
        %518 = vmatprep.subr.mxu0 0.0
        %519 = vmatpush1.msra.mxu0 0.0
        %520 = vmatprep.subr.mxu0 0.0
        %521 = vmatpush1.msra.mxu0 0.0
        %522 = vmatprep.subr.mxu0 0.0
        %523 = vmatpush1.msra.mxu0 0.0
        %524 = vmatprep.subr.mxu0 0.0
        %525 = vmatpush1.msra.mxu0 0.0
        %526 = vmatprep.subr.mxu0 0.0
        %527 = vmatpush1.msra.mxu0 0.0
        %528 = vmatprep.mubr.f32.mxu0 0.0
        %529 = vmatmul.mubr.f32.gmra.mrb[0].mxu0 %v459
        %v530 = vpop.f32.mrb[0].mxu0
        %v531 = vadd.f32 %v450, %v530
        %v532 = vpop.f32.mrb[0].mxu0
        %533 = vmatprep.mubr.f32.mxu0 0.0
        %534 = vmatmul.mubr.f32.gmra.mrb[0].mxu0 %v462
        %v535 = vpop.f32.mrb[0].mxu0
        %v536 = vadd.f32 %v455, %v535
        %v537 = vpop.f32.mrb[0].mxu0
        %538 = vdwg.mxu0
        %v539 = vld [vmem:[#allocation2 + $0x2] sm:$0xff]
        %v540 = vld [vmem:[#allocation2 + $0xa] sm:$0x1f]
        %s541 = scalar_lea.vmem %s1, 64
        %v542 = vld [vmem:[%s541] sm:$0xff]
        %v543 = vld [vmem:[%s541 + $0x8] sm:$0xff]
        %v544 = vld [vmem:[%s541 + $0x10] sm:$0xff]
        %v545 = vld [vmem:[%s541 + $0x18] sm:$0xff]
        %v547 = vsel %vm357, %v539, 0
        %v550 = vsel %vm357, %v540, 0
        %552 = vmatprep.subr.mxu0 0.0
        %553 = vmatpush1.msra.mxu0 %v542
        %554 = vmatprep.subr.mxu0 0.0
        %555 = vmatpush1.msra.mxu0 %v543
        %556 = vmatprep.subr.mxu0 0.0
        %557 = vmatpush1.msra.mxu0 %v544
        %558 = vmatprep.subr.mxu0 0.0
        %559 = vmatpush1.msra.mxu0 %v545
        %560 = vmatprep.subr.mxu0 0.0
        %561 = vmatpush1.msra.mxu0 0.0
        %562 = vmatprep.subr.mxu0 0.0
        %563 = vmatpush1.msra.mxu0 0.0
        %564 = vmatprep.subr.mxu0 0.0
        %565 = vmatpush1.msra.mxu0 0.0
        %566 = vmatprep.subr.mxu0 0.0
        %567 = vmatpush1.msra.mxu0 0.0
        %568 = vmatprep.subr.mxu0 0.0
        %569 = vmatpush1.msra.mxu0 0.0
        %570 = vmatprep.subr.mxu0 0.0
        %571 = vmatpush1.msra.mxu0 0.0
        %572 = vmatprep.subr.mxu0 0.0
        %573 = vmatpush1.msra.mxu0 0.0
        %574 = vmatprep.subr.mxu0 0.0
        %575 = vmatpush1.msra.mxu0 0.0
        %576 = vmatprep.subr.mxu0 0.0
        %577 = vmatpush1.msra.mxu0 0.0
        %578 = vmatprep.subr.mxu0 0.0
        %579 = vmatpush1.msra.mxu0 0.0
        %580 = vmatprep.subr.mxu0 0.0
        %581 = vmatpush1.msra.mxu0 0.0
        %582 = vmatprep.subr.mxu0 0.0
        %583 = vmatpush1.msra.mxu0 0.0
        %584 = vmatprep.subr.mxu0 0.0
        %585 = vmatpush1.msra.mxu0 0.0
        %586 = vmatprep.subr.mxu0 0.0
        %587 = vmatpush1.msra.mxu0 0.0
        %588 = vmatprep.subr.mxu0 0.0
        %589 = vmatpush1.msra.mxu0 0.0
        %590 = vmatprep.subr.mxu0 0.0
        %591 = vmatpush1.msra.mxu0 0.0
        %592 = vmatprep.subr.mxu0 0.0
        %593 = vmatpush1.msra.mxu0 0.0
        %594 = vmatprep.subr.mxu0 0.0
        %595 = vmatpush1.msra.mxu0 0.0
        %596 = vmatprep.subr.mxu0 0.0
        %597 = vmatpush1.msra.mxu0 0.0
        %598 = vmatprep.subr.mxu0 0.0
        %599 = vmatpush1.msra.mxu0 0.0
        %600 = vmatprep.subr.mxu0 0.0
        %601 = vmatpush1.msra.mxu0 0.0
        %602 = vmatprep.subr.mxu0 0.0
        %603 = vmatpush1.msra.mxu0 0.0
        %604 = vmatprep.subr.mxu0 0.0
        %605 = vmatpush1.msra.mxu0 0.0
        %606 = vmatprep.subr.mxu0 0.0
        %607 = vmatpush1.msra.mxu0 0.0
        %608 = vmatprep.subr.mxu0 0.0
        %609 = vmatpush1.msra.mxu0 0.0
        %610 = vmatprep.subr.mxu0 0.0
        %611 = vmatpush1.msra.mxu0 0.0
        %612 = vmatprep.subr.mxu0 0.0
        %613 = vmatpush1.msra.mxu0 0.0
        %614 = vmatprep.subr.mxu0 0.0
        %615 = vmatpush1.msra.mxu0 0.0
        %616 = vmatprep.mubr.f32.mxu0 0.0
        %617 = vmatmul.mubr.f32.gmra.mrb[0].mxu0 %v547
        %v618 = vpop.f32.mrb[0].mxu0
        %v619 = vadd.f32 0.0, %v618
        %v620 = vpop.f32.mrb[0].mxu0
        %621 = vmatprep.mubr.f32.mxu0 0.0
        %622 = vmatmul.mubr.f32.gmra.mrb[0].mxu0 %v550
        %v623 = vpop.f32.mrb[0].mxu0
        %v624 = vadd.f32 0.0, %v623
        %v625 = vpop.f32.mrb[0].mxu0
        %626 = vdwg.mxu0
        %v627 = vadd.f32 %v531, %v619
        %v628 = vadd.f32 %v536, %v624
        %v629 = vld [vmem:[#allocation2 + $0x3] sm:$0xff]
        %v630 = vld [vmem:[#allocation2 + $0xb] sm:$0x1f]
        %s631 = scalar_lea.vmem %s1, 96
        %v632 = vld [vmem:[%s631] sm:$0xff]
        %v633 = vld [vmem:[%s631 + $0x8] sm:$0xff]
        %v634 = vld [vmem:[%s631 + $0x10] sm:$0xff]
        %v635 = vld [vmem:[%s631 + $0x18] sm:$0xff]
        %v637 = vsel %vm357, %v629, 0
        %v640 = vsel %vm357, %v630, 0
        %642 = vmatprep.subr.mxu0 0.0
        %643 = vmatpush1.msra.mxu0 %v632
        %644 = vmatprep.subr.mxu0 0.0
        %645 = vmatpush1.msra.mxu0 %v633
        %646 = vmatprep.subr.mxu0 0.0
        %647 = vmatpush1.msra.mxu0 %v634
        %648 = vmatprep.subr.mxu0 0.0
        %649 = vmatpush1.msra.mxu0 %v635
        %650 = vmatprep.subr.mxu0 0.0
        %651 = vmatpush1.msra.mxu0 0.0
        %652 = vmatprep.subr.mxu0 0.0
        %653 = vmatpush1.msra.mxu0 0.0
        %654 = vmatprep.subr.mxu0 0.0
        %655 = vmatpush1.msra.mxu0 0.0
        %656 = vmatprep.subr.mxu0 0.0
        %657 = vmatpush1.msra.mxu0 0.0
        %658 = vmatprep.subr.mxu0 0.0
        %659 = vmatpush1.msra.mxu0 0.0
        %660 = vmatprep.subr.mxu0 0.0
        %661 = vmatpush1.msra.mxu0 0.0
        %662 = vmatprep.subr.mxu0 0.0
        %663 = vmatpush1.msra.mxu0 0.0
        %664 = vmatprep.subr.mxu0 0.0
        %665 = vmatpush1.msra.mxu0 0.0
        %666 = vmatprep.subr.mxu0 0.0
        %667 = vmatpush1.msra.mxu0 0.0
        %668 = vmatprep.subr.mxu0 0.0
        %669 = vmatpush1.msra.mxu0 0.0
        %670 = vmatprep.subr.mxu0 0.0
        %671 = vmatpush1.msra.mxu0 0.0
        %672 = vmatprep.subr.mxu0 0.0
        %673 = vmatpush1.msra.mxu0 0.0
        %674 = vmatprep.subr.mxu0 0.0
        %675 = vmatpush1.msra.mxu0 0.0
        %676 = vmatprep.subr.mxu0 0.0
        %677 = vmatpush1.msra.mxu0 0.0
        %678 = vmatprep.subr.mxu0 0.0
        %679 = vmatpush1.msra.mxu0 0.0
        %680 = vmatprep.subr.mxu0 0.0
        %681 = vmatpush1.msra.mxu0 0.0
        %682 = vmatprep.subr.mxu0 0.0
        %683 = vmatpush1.msra.mxu0 0.0
        %684 = vmatprep.subr.mxu0 0.0
        %685 = vmatpush1.msra.mxu0 0.0
        %686 = vmatprep.subr.mxu0 0.0
        %687 = vmatpush1.msra.mxu0 0.0
        %688 = vmatprep.subr.mxu0 0.0
        %689 = vmatpush1.msra.mxu0 0.0
        %690 = vmatprep.subr.mxu0 0.0
        %691 = vmatpush1.msra.mxu0 0.0
        %692 = vmatprep.subr.mxu0 0.0
        %693 = vmatpush1.msra.mxu0 0.0
        %694 = vmatprep.subr.mxu0 0.0
        %695 = vmatpush1.msra.mxu0 0.0
        %696 = vmatprep.subr.mxu0 0.0
        %697 = vmatpush1.msra.mxu0 0.0
        %698 = vmatprep.subr.mxu0 0.0
        %699 = vmatpush1.msra.mxu0 0.0
        %700 = vmatprep.subr.mxu0 0.0
        %701 = vmatpush1.msra.mxu0 0.0
        %702 = vmatprep.subr.mxu0 0.0
        %703 = vmatpush1.msra.mxu0 0.0
        %704 = vmatprep.subr.mxu0 0.0
        %705 = vmatpush1.msra.mxu0 0.0
        %706 = vmatprep.mubr.f32.mxu0 0.0
        %707 = vmatmul.mubr.f32.gmra.mrb[0].mxu0 %v637
        %v708 = vpop.f32.mrb[0].mxu0
        %v709 = vadd.f32 0.0, %v708
        %v710 = vpop.f32.mrb[0].mxu0
        %711 = vmatprep.mubr.f32.mxu0 0.0
        %712 = vmatmul.mubr.f32.gmra.mrb[0].mxu0 %v640
        %v713 = vpop.f32.mrb[0].mxu0
        %v714 = vadd.f32 0.0, %v713
        %v715 = vpop.f32.mrb[0].mxu0
        %716 = vdwg.mxu0
        %v717 = vadd.f32 %v627, %v709
        %v718 = vadd.f32 %v628, %v714
        %v719 = vld [vmem:[#allocation2 + $0x4] sm:$0xff]
        %v720 = vld [vmem:[#allocation2 + $0xc] sm:$0x1f]
        %s721 = scalar_lea.vmem %s1, 128
        %v722 = vld [vmem:[%s721] sm:$0xff]
        %v723 = vld [vmem:[%s721 + $0x8] sm:$0xff]
        %v724 = vld [vmem:[%s721 + $0x10] sm:$0xff]
        %v725 = vld [vmem:[%s721 + $0x18] sm:$0xff]
        %v727 = vsel %vm357, %v719, 0
        %v730 = vsel %vm357, %v720, 0
        %732 = vmatprep.subr.mxu0 0.0
        %733 = vmatpush1.msra.mxu0 %v722
        %734 = vmatprep.subr.mxu0 0.0
        %735 = vmatpush1.msra.mxu0 %v723
        %736 = vmatprep.subr.mxu0 0.0
        %737 = vmatpush1.msra.mxu0 %v724
        %738 = vmatprep.subr.mxu0 0.0
        %739 = vmatpush1.msra.mxu0 %v725
        %740 = vmatprep.subr.mxu0 0.0
        %741 = vmatpush1.msra.mxu0 0.0
        %742 = vmatprep.subr.mxu0 0.0
        %743 = vmatpush1.msra.mxu0 0.0
        %744 = vmatprep.subr.mxu0 0.0
        %745 = vmatpush1.msra.mxu0 0.0
        %746 = vmatprep.subr.mxu0 0.0
        %747 = vmatpush1.msra.mxu0 0.0
        %748 = vmatprep.subr.mxu0 0.0
        %749 = vmatpush1.msra.mxu0 0.0
        %750 = vmatprep.subr.mxu0 0.0
        %751 = vmatpush1.msra.mxu0 0.0
        %752 = vmatprep.subr.mxu0 0.0
        %753 = vmatpush1.msra.mxu0 0.0
        %754 = vmatprep.subr.mxu0 0.0
        %755 = vmatpush1.msra.mxu0 0.0
        %756 = vmatprep.subr.mxu0 0.0
        %757 = vmatpush1.msra.mxu0 0.0
        %758 = vmatprep.subr.mxu0 0.0
        %759 = vmatpush1.msra.mxu0 0.0
        %760 = vmatprep.subr.mxu0 0.0
        %761 = vmatpush1.msra.mxu0 0.0
        %762 = vmatprep.subr.mxu0 0.0
        %763 = vmatpush1.msra.mxu0 0.0
        %764 = vmatprep.subr.mxu0 0.0
        %765 = vmatpush1.msra.mxu0 0.0
        %766 = vmatprep.subr.mxu0 0.0
        %767 = vmatpush1.msra.mxu0 0.0
        %768 = vmatprep.subr.mxu0 0.0
        %769 = vmatpush1.msra.mxu0 0.0
        %770 = vmatprep.subr.mxu0 0.0
        %771 = vmatpush1.msra.mxu0 0.0
        %772 = vmatprep.subr.mxu0 0.0
        %773 = vmatpush1.msra.mxu0 0.0
        %774 = vmatprep.subr.mxu0 0.0
        %775 = vmatpush1.msra.mxu0 0.0
        %776 = vmatprep.subr.mxu0 0.0
        %777 = vmatpush1.msra.mxu0 0.0
        %778 = vmatprep.subr.mxu0 0.0
        %779 = vmatpush1.msra.mxu0 0.0
        %780 = vmatprep.subr.mxu0 0.0
        %781 = vmatpush1.msra.mxu0 0.0
        %782 = vmatprep.subr.mxu0 0.0
        %783 = vmatpush1.msra.mxu0 0.0
        %784 = vmatprep.subr.mxu0 0.0
        %785 = vmatpush1.msra.mxu0 0.0
        %786 = vmatprep.subr.mxu0 0.0
        %787 = vmatpush1.msra.mxu0 0.0
        %788 = vmatprep.subr.mxu0 0.0
        %789 = vmatpush1.msra.mxu0 0.0
        %790 = vmatprep.subr.mxu0 0.0
        %791 = vmatpush1.msra.mxu0 0.0
        %792 = vmatprep.subr.mxu0 0.0
        %793 = vmatpush1.msra.mxu0 0.0
        %794 = vmatprep.subr.mxu0 0.0
        %795 = vmatpush1.msra.mxu0 0.0
        %796 = vmatprep.mubr.f32.mxu0 0.0
        %797 = vmatmul.mubr.f32.gmra.mrb[0].mxu0 %v727
        %v798 = vpop.f32.mrb[0].mxu0
        %v799 = vadd.f32 0.0, %v798
        %v800 = vpop.f32.mrb[0].mxu0
        %801 = vmatprep.mubr.f32.mxu0 0.0
        %802 = vmatmul.mubr.f32.gmra.mrb[0].mxu0 %v730
        %v803 = vpop.f32.mrb[0].mxu0
        %v804 = vadd.f32 0.0, %v803
        %v805 = vpop.f32.mrb[0].mxu0
        %806 = vdwg.mxu0
        %v807 = vadd.f32 %v717, %v799
        %v808 = vadd.f32 %v718, %v804
        %v809 = vld [vmem:[#allocation2 + $0x5] sm:$0xff]
        %v810 = vld [vmem:[#allocation2 + $0xd] sm:$0x1f]
        %s811 = scalar_lea.vmem %s1, 160
        %v812 = vld [vmem:[%s811] sm:$0xff]
        %v813 = vld [vmem:[%s811 + $0x8] sm:$0xff]
        %v814 = vld [vmem:[%s811 + $0x10] sm:$0xff]
        %v815 = vld [vmem:[%s811 + $0x18] sm:$0xff]
        %v817 = vsel %vm357, %v809, 0
        %v820 = vsel %vm357, %v810, 0
        %822 = vmatprep.subr.mxu0 0.0
        %823 = vmatpush1.msra.mxu0 %v812
        %824 = vmatprep.subr.mxu0 0.0
        %825 = vmatpush1.msra.mxu0 %v813
        %826 = vmatprep.subr.mxu0 0.0
        %827 = vmatpush1.msra.mxu0 %v814
        %828 = vmatprep.subr.mxu0 0.0
        %829 = vmatpush1.msra.mxu0 %v815
        %830 = vmatprep.subr.mxu0 0.0
        %831 = vmatpush1.msra.mxu0 0.0
        %832 = vmatprep.subr.mxu0 0.0
        %833 = vmatpush1.msra.mxu0 0.0
        %834 = vmatprep.subr.mxu0 0.0
        %835 = vmatpush1.msra.mxu0 0.0
        %836 = vmatprep.subr.mxu0 0.0
        %837 = vmatpush1.msra.mxu0 0.0
        %838 = vmatprep.subr.mxu0 0.0
        %839 = vmatpush1.msra.mxu0 0.0
        %840 = vmatprep.subr.mxu0 0.0
        %841 = vmatpush1.msra.mxu0 0.0
        %842 = vmatprep.subr.mxu0 0.0
        %843 = vmatpush1.msra.mxu0 0.0
        %844 = vmatprep.subr.mxu0 0.0
        %845 = vmatpush1.msra.mxu0 0.0
        %846 = vmatprep.subr.mxu0 0.0
        %847 = vmatpush1.msra.mxu0 0.0
        %848 = vmatprep.subr.mxu0 0.0
        %849 = vmatpush1.msra.mxu0 0.0
        %850 = vmatprep.subr.mxu0 0.0
        %851 = vmatpush1.msra.mxu0 0.0
        %852 = vmatprep.subr.mxu0 0.0
        %853 = vmatpush1.msra.mxu0 0.0
        %854 = vmatprep.subr.mxu0 0.0
        %855 = vmatpush1.msra.mxu0 0.0
        %856 = vmatprep.subr.mxu0 0.0
        %857 = vmatpush1.msra.mxu0 0.0
        %858 = vmatprep.subr.mxu0 0.0
        %859 = vmatpush1.msra.mxu0 0.0
        %860 = vmatprep.subr.mxu0 0.0
        %861 = vmatpush1.msra.mxu0 0.0
        %862 = vmatprep.subr.mxu0 0.0
        %863 = vmatpush1.msra.mxu0 0.0
        %864 = vmatprep.subr.mxu0 0.0
        %865 = vmatpush1.msra.mxu0 0.0
        %866 = vmatprep.subr.mxu0 0.0
        %867 = vmatpush1.msra.mxu0 0.0
        %868 = vmatprep.subr.mxu0 0.0
        %869 = vmatpush1.msra.mxu0 0.0
        %870 = vmatprep.subr.mxu0 0.0
        %871 = vmatpush1.msra.mxu0 0.0
        %872 = vmatprep.subr.mxu0 0.0
        %873 = vmatpush1.msra.mxu0 0.0
        %874 = vmatprep.subr.mxu0 0.0
        %875 = vmatpush1.msra.mxu0 0.0
        %876 = vmatprep.subr.mxu0 0.0
        %877 = vmatpush1.msra.mxu0 0.0
        %878 = vmatprep.subr.mxu0 0.0
        %879 = vmatpush1.msra.mxu0 0.0
        %880 = vmatprep.subr.mxu0 0.0
        %881 = vmatpush1.msra.mxu0 0.0
        %882 = vmatprep.subr.mxu0 0.0
        %883 = vmatpush1.msra.mxu0 0.0
        %884 = vmatprep.subr.mxu0 0.0
        %885 = vmatpush1.msra.mxu0 0.0
        %886 = vmatprep.mubr.f32.mxu0 0.0
        %887 = vmatmul.mubr.f32.gmra.mrb[0].mxu0 %v817
        %v888 = vpop.f32.mrb[0].mxu0
        %v889 = vadd.f32 0.0, %v888
        %v890 = vpop.f32.mrb[0].mxu0
        %891 = vmatprep.mubr.f32.mxu0 0.0
        %892 = vmatmul.mubr.f32.gmra.mrb[0].mxu0 %v820
        %v893 = vpop.f32.mrb[0].mxu0
        %v894 = vadd.f32 0.0, %v893
        %v895 = vpop.f32.mrb[0].mxu0
        %896 = vdwg.mxu0
        %v897 = vadd.f32 %v807, %v889
        %v898 = vadd.f32 %v808, %v894
        %v899 = vld [vmem:[#allocation2 + $0x6] sm:$0xff]
        %v900 = vld [vmem:[#allocation2 + $0xe] sm:$0x1f]
        %s901 = scalar_lea.vmem %s1, 192
        %v902 = vld [vmem:[%s901] sm:$0xff]
        %v903 = vld [vmem:[%s901 + $0x8] sm:$0xff]
        %v904 = vld [vmem:[%s901 + $0x10] sm:$0xff]
        %v905 = vld [vmem:[%s901 + $0x18] sm:$0xff]
        %v907 = vsel %vm357, %v899, 0
        %v910 = vsel %vm357, %v900, 0
        %912 = vmatprep.subr.mxu0 0.0
        %913 = vmatpush1.msra.mxu0 %v902
        %914 = vmatprep.subr.mxu0 0.0
        %915 = vmatpush1.msra.mxu0 %v903
        %916 = vmatprep.subr.mxu0 0.0
        %917 = vmatpush1.msra.mxu0 %v904
        %918 = vmatprep.subr.mxu0 0.0
        %919 = vmatpush1.msra.mxu0 %v905
        %920 = vmatprep.subr.mxu0 0.0
        %921 = vmatpush1.msra.mxu0 0.0
        %922 = vmatprep.subr.mxu0 0.0
        %923 = vmatpush1.msra.mxu0 0.0
        %924 = vmatprep.subr.mxu0 0.0
        %925 = vmatpush1.msra.mxu0 0.0
        %926 = vmatprep.subr.mxu0 0.0
        %927 = vmatpush1.msra.mxu0 0.0
        %928 = vmatprep.subr.mxu0 0.0
        %929 = vmatpush1.msra.mxu0 0.0
        %930 = vmatprep.subr.mxu0 0.0
        %931 = vmatpush1.msra.mxu0 0.0
        %932 = vmatprep.subr.mxu0 0.0
        %933 = vmatpush1.msra.mxu0 0.0
        %934 = vmatprep.subr.mxu0 0.0
        %935 = vmatpush1.msra.mxu0 0.0
        %936 = vmatprep.subr.mxu0 0.0
        %937 = vmatpush1.msra.mxu0 0.0
        %938 = vmatprep.subr.mxu0 0.0
        %939 = vmatpush1.msra.mxu0 0.0
        %940 = vmatprep.subr.mxu0 0.0
        %941 = vmatpush1.msra.mxu0 0.0
        %942 = vmatprep.subr.mxu0 0.0
        %943 = vmatpush1.msra.mxu0 0.0
        %944 = vmatprep.subr.mxu0 0.0
        %945 = vmatpush1.msra.mxu0 0.0
        %946 = vmatprep.subr.mxu0 0.0
        %947 = vmatpush1.msra.mxu0 0.0
        %948 = vmatprep.subr.mxu0 0.0
        %949 = vmatpush1.msra.mxu0 0.0
        %950 = vmatprep.subr.mxu0 0.0
        %951 = vmatpush1.msra.mxu0 0.0
        %952 = vmatprep.subr.mxu0 0.0
        %953 = vmatpush1.msra.mxu0 0.0
        %954 = vmatprep.subr.mxu0 0.0
        %955 = vmatpush1.msra.mxu0 0.0
        %956 = vmatprep.subr.mxu0 0.0
        %957 = vmatpush1.msra.mxu0 0.0
        %958 = vmatprep.subr.mxu0 0.0
        %959 = vmatpush1.msra.mxu0 0.0
        %960 = vmatprep.subr.mxu0 0.0
        %961 = vmatpush1.msra.mxu0 0.0
        %962 = vmatprep.subr.mxu0 0.0
        %963 = vmatpush1.msra.mxu0 0.0
        %964 = vmatprep.subr.mxu0 0.0
        %965 = vmatpush1.msra.mxu0 0.0
        %966 = vmatprep.subr.mxu0 0.0
        %967 = vmatpush1.msra.mxu0 0.0
        %968 = vmatprep.subr.mxu0 0.0
        %969 = vmatpush1.msra.mxu0 0.0
        %970 = vmatprep.subr.mxu0 0.0
        %971 = vmatpush1.msra.mxu0 0.0
        %972 = vmatprep.subr.mxu0 0.0
        %973 = vmatpush1.msra.mxu0 0.0
        %974 = vmatprep.subr.mxu0 0.0
        %975 = vmatpush1.msra.mxu0 0.0
        %976 = vmatprep.mubr.f32.mxu0 0.0
        %977 = vmatmul.mubr.f32.gmra.mrb[0].mxu0 %v907
        %v978 = vpop.f32.mrb[0].mxu0
        %v979 = vadd.f32 0.0, %v978
        %v980 = vpop.f32.mrb[0].mxu0
        %981 = vmatprep.mubr.f32.mxu0 0.0
        %982 = vmatmul.mubr.f32.gmra.mrb[0].mxu0 %v910
        %v983 = vpop.f32.mrb[0].mxu0
        %v984 = vadd.f32 0.0, %v983
        %v985 = vpop.f32.mrb[0].mxu0
        %986 = vdwg.mxu0
        %v987 = vadd.f32 %v897, %v979
        %v988 = vadd.f32 %v898, %v984
        %v989 = vld [vmem:[#allocation2 + $0x7] sm:$0xff]
        %v990 = vld [vmem:[#allocation2 + $0xf] sm:$0x1f]
        %s991 = scalar_lea.vmem %s1, 224
        %v992 = vld [vmem:[%s991] sm:$0xff]
        %v993 = vld [vmem:[%s991 + $0x8] sm:$0xff]
        %v994 = vld [vmem:[%s991 + $0x10] sm:$0xff]
        %v995 = vld [vmem:[%s991 + $0x18] sm:$0xff]
        %v997 = vsel %vm357, %v989, 0
        %v1000 = vsel %vm357, %v990, 0
        %1002 = vmatprep.subr.mxu0 0.0
        %1003 = vmatpush1.msra.mxu0 %v992
        %1004 = vmatprep.subr.mxu0 0.0
        %1005 = vmatpush1.msra.mxu0 %v993
        %1006 = vmatprep.subr.mxu0 0.0
        %1007 = vmatpush1.msra.mxu0 %v994
        %1008 = vmatprep.subr.mxu0 0.0
        %1009 = vmatpush1.msra.mxu0 %v995
        %1010 = vmatprep.subr.mxu0 0.0
        %1011 = vmatpush1.msra.mxu0 0.0
        %1012 = vmatprep.subr.mxu0 0.0
        %1013 = vmatpush1.msra.mxu0 0.0
        %1014 = vmatprep.subr.mxu0 0.0
        %1015 = vmatpush1.msra.mxu0 0.0
        %1016 = vmatprep.subr.mxu0 0.0
        %1017 = vmatpush1.msra.mxu0 0.0
        %1018 = vmatprep.subr.mxu0 0.0
        %1019 = vmatpush1.msra.mxu0 0.0
        %1020 = vmatprep.subr.mxu0 0.0
        %1021 = vmatpush1.msra.mxu0 0.0
        %1022 = vmatprep.subr.mxu0 0.0
        %1023 = vmatpush1.msra.mxu0 0.0
        %1024 = vmatprep.subr.mxu0 0.0
        %1025 = vmatpush1.msra.mxu0 0.0
        %1026 = vmatprep.subr.mxu0 0.0
        %1027 = vmatpush1.msra.mxu0 0.0
        %1028 = vmatprep.subr.mxu0 0.0
        %1029 = vmatpush1.msra.mxu0 0.0
        %1030 = vmatprep.subr.mxu0 0.0
        %1031 = vmatpush1.msra.mxu0 0.0
        %1032 = vmatprep.subr.mxu0 0.0
        %1033 = vmatpush1.msra.mxu0 0.0
        %1034 = vmatprep.subr.mxu0 0.0
        %1035 = vmatpush1.msra.mxu0 0.0
        %1036 = vmatprep.subr.mxu0 0.0
        %1037 = vmatpush1.msra.mxu0 0.0
        %1038 = vmatprep.subr.mxu0 0.0
        %1039 = vmatpush1.msra.mxu0 0.0
        %1040 = vmatprep.subr.mxu0 0.0
        %1041 = vmatpush1.msra.mxu0 0.0
        %1042 = vmatprep.subr.mxu0 0.0
        %1043 = vmatpush1.msra.mxu0 0.0
        %1044 = vmatprep.subr.mxu0 0.0
        %1045 = vmatpush1.msra.mxu0 0.0
        %1046 = vmatprep.subr.mxu0 0.0
        %1047 = vmatpush1.msra.mxu0 0.0
        %1048 = vmatprep.subr.mxu0 0.0
        %1049 = vmatpush1.msra.mxu0 0.0
        %1050 = vmatprep.subr.mxu0 0.0
        %1051 = vmatpush1.msra.mxu0 0.0
        %1052 = vmatprep.subr.mxu0 0.0
        %1053 = vmatpush1.msra.mxu0 0.0
        %1054 = vmatprep.subr.mxu0 0.0
        %1055 = vmatpush1.msra.mxu0 0.0
        %1056 = vmatprep.subr.mxu0 0.0
        %1057 = vmatpush1.msra.mxu0 0.0
        %1058 = vmatprep.subr.mxu0 0.0
        %1059 = vmatpush1.msra.mxu0 0.0
        %1060 = vmatprep.subr.mxu0 0.0
        %1061 = vmatpush1.msra.mxu0 0.0
        %1062 = vmatprep.subr.mxu0 0.0
        %1063 = vmatpush1.msra.mxu0 0.0
        %1064 = vmatprep.subr.mxu0 0.0
        %1065 = vmatpush1.msra.mxu0 0.0
        %1066 = vmatprep.mubr.f32.mxu0 0.0
        %1067 = vmatmul.mubr.f32.gmra.mrb[0].mxu0 %v997
        %v1068 = vpop.f32.mrb[0].mxu0
        %v1069 = vadd.f32 0.0, %v1068
        %v1070 = vpop.f32.mrb[0].mxu0
        %1071 = vmatprep.mubr.f32.mxu0 0.0
        %1072 = vmatmul.mubr.f32.gmra.mrb[0].mxu0 %v1000
        %v1073 = vpop.f32.mrb[0].mxu0
        %v1074 = vadd.f32 0.0, %v1073
        %v1075 = vpop.f32.mrb[0].mxu0
        %1076 = vdwg.mxu0
        %v1077 = vadd.f32 %v987, %v1069
        %v1078 = vadd.f32 %v988, %v1074
        %v1079 = vld [vmem:[%s2] sm:$0x1]
        %v1081 = vlaneseq
        %v1082 = vshrl.u32 %v1081, 7
        %v1083 = vsub.s32 0, %v1082
        %v1084 = vrot.slane %v1079, %v1083
        %v1086 = vadd.f32 %v1077, %v1084
        %v1087 = vadd.f32 %v1078, %v1084
        %v1088 = vmax.f32 %v1086, 0.0
        %v1089 = vmax.f32 %v1087, 0.0
        %1090 = vst [vmem:[#allocation3] sm:$0xff] %v1088
        %1091 = vst [vmem:[#allocation3 + $0x8] sm:$0x1f] %v1089
        %1092 = vst [vmem:[#allocation4] sm:$0xff] 0.0
        %1093 = vst [vmem:[#allocation4 + $0x8] sm:$0xff] 0.0
        %1094 = vst [vmem:[#allocation4 + $0x10] sm:$0xff] 0.0
        %1095 = vst [vmem:[#allocation4 + $0x18] sm:$0xff] 0.0
        %1096 = vst [vmem:[#allocation4 + $0x20] sm:$0x3f] 0.0
        %v1097 = vld [vmem:[#allocation3] ss:$2 sm:$0x3f]
        %s1098 = scalar_lea.vmem [#allocation3], 1
        %v1099 = vld [vmem:[%s1098] ss:$2 sm:$0x3f]
        %v1100 = vmax.f32 %v1097, %v1099
        %s1101 = scalar_lea.vmem [#allocation3], 2
        %v1102 = vld [vmem:[%s1101] ss:$2 sm:$0x3f]
        %v1103 = vmax.f32 %v1100, %v1102
        %1104 = vst [vmem:[#allocation4 + $0x10] sm:$0x3f] %v1103
        %v1105 = vld [vmem:[#allocation4] ss:$2 sm:$0xff]
        %s1106 = scalar_lea.vmem [#allocation4], 16
        %v1107 = vld [vmem:[%s1106] ss:$2 sm:$0xf]
        %s1108 = scalar_lea.vmem [#allocation4], 1
        %v1109 = vld [vmem:[%s1108] ss:$2 sm:$0xff]
        %s1110 = scalar_lea.vmem [#allocation4], 17
        %v1111 = vld [vmem:[%s1110] ss:$2 sm:$0xf]
        %s1112 = scalar_lea.vmem [#allocation4], 2
        %v1113 = vld [vmem:[%s1112] ss:$2 sm:$0xff]
        %s1114 = scalar_lea.vmem [#allocation4], 18
        %v1115 = vld [vmem:[%s1114] ss:$2 sm:$0xf]
        %s1116 = scalar_lea.vmem [#allocation4], 3
        %v1117 = vld [vmem:[%s1116] ss:$2 sm:$0xff]
        %s1118 = scalar_lea.vmem [#allocation4], 19
        %v1119 = vld [vmem:[%s1118] ss:$2 sm:$0xf]
        %s1120 = scalar_lea.vmem [#allocation4], 4
        %v1121 = vld [vmem:[%s1120] ss:$2 sm:$0xff]
        %s1122 = scalar_lea.vmem [#allocation4], 20
        %v1123 = vld [vmem:[%s1122] ss:$2 sm:$0xf]
        %s1124 = scalar_lea.vmem [#allocation4], 5
        %v1125 = vld [vmem:[%s1124] ss:$2 sm:$0xff]
        %s1126 = scalar_lea.vmem [#allocation4], 21
        %v1127 = vld [vmem:[%s1126] ss:$2 sm:$0xf]
        %s1128 = scalar_lea.vmem [#allocation4], 6
        %v1129 = vld [vmem:[%s1128] ss:$2 sm:$0xff]
        %s1130 = scalar_lea.vmem [#allocation4], 22
        %v1131 = vld [vmem:[%s1130] ss:$2 sm:$0xf]
        %s1132 = scalar_lea.vmem [#allocation4], 7
        %v1133 = vld [vmem:[%s1132] ss:$2 sm:$0xff]
        %s1134 = scalar_lea.vmem [#allocation4], 23
        %v1135 = vld [vmem:[%s1134] ss:$2 sm:$0xf]
        %s1136 = scalar_lea.vmem [#allocation4], 8
        %v1137 = vld [vmem:[%s1136] ss:$2 sm:$0xff]
        %s1138 = scalar_lea.vmem [#allocation4], 24
        %v1139 = vld [vmem:[%s1138] ss:$2 sm:$0xf]
        %s1140 = scalar_lea.vmem [#allocation4], 9
        %v1141 = vld [vmem:[%s1140] ss:$2 sm:$0xff]
        %s1142 = scalar_lea.vmem [#allocation4], 25
        %v1143 = vld [vmem:[%s1142] ss:$2 sm:$0xf]
        %s1144 = scalar_lea.vmem [#allocation4], 10
        %v1145 = vld [vmem:[%s1144] ss:$2 sm:$0xff]
        %s1146 = scalar_lea.vmem [#allocation4], 26
        %v1147 = vld [vmem:[%s1146] ss:$2 sm:$0xf]
        %s1148 = scalar_lea.vmem [#allocation4], 11
        %v1149 = vld [vmem:[%s1148] ss:$2 sm:$0xff]
        %s1150 = scalar_lea.vmem [#allocation4], 27
        %v1151 = vld [vmem:[%s1150] ss:$2 sm:$0xf]
        %s1152 = scalar_lea.vmem [#allocation4], 12
        %v1153 = vld [vmem:[%s1152] ss:$2 sm:$0xff]
        %s1154 = scalar_lea.vmem [#allocation4], 28
        %v1155 = vld [vmem:[%s1154] ss:$2 sm:$0xf]
        %s1156 = scalar_lea.vmem [#allocation4], 13
        %v1157 = vld [vmem:[%s1156] ss:$2 sm:$0xff]
        %s1158 = scalar_lea.vmem [#allocation4], 29
        %v1159 = vld [vmem:[%s1158] ss:$2 sm:$0xf]
        %s1160 = scalar_lea.vmem [#allocation4], 14
        %v1161 = vld [vmem:[%s1160] ss:$2 sm:$0xff]
        %s1162 = scalar_lea.vmem [#allocation4], 30
        %v1163 = vld [vmem:[%s1162] ss:$2 sm:$0xf]
        %s1164 = scalar_lea.vmem [#allocation4], 15
        %v1165 = vld [vmem:[%s1164] ss:$2 sm:$0xff]
        %s1166 = scalar_lea.vmem [#allocation4], 31
        %v1167 = vld [vmem:[%s1166] ss:$2 sm:$0xf]
        %v1168 = vld [vmem:[#allocation6] sm:$0xff]
        %v1169 = vld [vmem:[#allocation6 + $0x8] sm:$0xff]
        %v1170 = vld [vmem:[#allocation6 + $0x10] sm:$0xff]
        %v1171 = vld [vmem:[#allocation6 + $0x18] sm:$0xff]
        %v1172 = vld [vmem:[#allocation6 + $0x20] sm:$0xff]
        %v1173 = vld [vmem:[#allocation6 + $0x28] sm:$0xff]
        %v1174 = vld [vmem:[#allocation6 + $0x30] sm:$0xff]
        %v1175 = vld [vmem:[#allocation6 + $0x38] sm:$0xff]
        %v1176 = vld [vmem:[#allocation6 + $0x40] sm:$0xff]
        %v1177 = vld [vmem:[#allocation6 + $0x48] sm:$0xff]
        %v1178 = vld [vmem:[#allocation6 + $0x50] sm:$0xff]
        %v1179 = vld [vmem:[#allocation6 + $0x58] sm:$0xff]
        %v1180 = vld [vmem:[#allocation6 + $0x60] sm:$0xff]
        %v1181 = vld [vmem:[#allocation6 + $0x68] sm:$0xff]
        %v1182 = vld [vmem:[#allocation6 + $0x70] sm:$0xff]
        %v1183 = vld [vmem:[#allocation6 + $0x78] sm:$0xff]
        %v1184 = vld [vmem:[#allocation6 + $0x80] sm:$0xff]
        %v1185 = vld [vmem:[#allocation6 + $0x88] sm:$0xff]
        %v1186 = vld [vmem:[#allocation6 + $0x90] sm:$0xff]
        %v1187 = vld [vmem:[#allocation6 + $0x98] sm:$0xff]
        %v1188 = vld [vmem:[#allocation6 + $0xa0] sm:$0xff]
        %v1189 = vld [vmem:[#allocation6 + $0xa8] sm:$0xff]
        %v1190 = vld [vmem:[#allocation6 + $0xb0] sm:$0xff]
        %v1191 = vld [vmem:[#allocation6 + $0xb8] sm:$0xff]
        %v1192 = vld [vmem:[#allocation6 + $0xc0] sm:$0xff]
        %v1193 = vld [vmem:[#allocation6 + $0xc8] sm:$0xff]
        %v1194 = vld [vmem:[#allocation6 + $0xd0] sm:$0xff]
        %v1195 = vld [vmem:[#allocation6 + $0xd8] sm:$0xff]
        %v1196 = vld [vmem:[#allocation6 + $0xe0] sm:$0xff]
        %v1197 = vld [vmem:[#allocation6 + $0xe8] sm:$0xff]
        %v1198 = vld [vmem:[#allocation6 + $0xf0] sm:$0xff]
        %v1199 = vld [vmem:[#allocation6 + $0xf8] sm:$0xff]
        %v1200 = vld [vmem:[#allocation6 + $0x100] sm:$0xff]
        %v1201 = vld [vmem:[#allocation6 + $0x108] sm:$0xff]
        %v1202 = vld [vmem:[#allocation6 + $0x110] sm:$0xff]
        %v1203 = vld [vmem:[#allocation6 + $0x118] sm:$0xff]
        %v1204 = vld [vmem:[#allocation6 + $0x120] sm:$0xff]
        %v1205 = vld [vmem:[#allocation6 + $0x128] sm:$0xff]
        %v1206 = vld [vmem:[#allocation6 + $0x130] sm:$0xff]
        %v1207 = vld [vmem:[#allocation6 + $0x138] sm:$0xff]
        %v1208 = vld [vmem:[#allocation6 + $0x140] sm:$0xff]
        %v1209 = vld [vmem:[#allocation6 + $0x148] sm:$0xff]
        %v1210 = vld [vmem:[#allocation6 + $0x150] sm:$0xff]
        %v1211 = vld [vmem:[#allocation6 + $0x158] sm:$0xff]
        %v1212 = vld [vmem:[#allocation6 + $0x160] sm:$0xff]
        %v1213 = vld [vmem:[#allocation6 + $0x168] sm:$0xff]
        %v1214 = vld [vmem:[#allocation6 + $0x170] sm:$0xff]
        %v1215 = vld [vmem:[#allocation6 + $0x178] sm:$0xff]
        %v1216 = vld [vmem:[#allocation6 + $0x180] sm:$0xff]
        %v1217 = vld [vmem:[#allocation6 + $0x188] sm:$0xff]
        %v1218 = vld [vmem:[#allocation6 + $0x190] sm:$0xff]
        %v1219 = vld [vmem:[#allocation6 + $0x198] sm:$0xff]
        %v1220 = vld [vmem:[#allocation6 + $0x1a0] sm:$0xff]
        %v1221 = vld [vmem:[#allocation6 + $0x1a8] sm:$0xff]
        %v1222 = vld [vmem:[#allocation6 + $0x1b0] sm:$0xff]
        %v1223 = vld [vmem:[#allocation6 + $0x1b8] sm:$0xff]
        %v1224 = vld [vmem:[#allocation6 + $0x1c0] sm:$0xff]
        %v1225 = vld [vmem:[#allocation6 + $0x1c8] sm:$0xff]
        %v1226 = vld [vmem:[#allocation6 + $0x1d0] sm:$0xff]
        %v1227 = vld [vmem:[#allocation6 + $0x1d8] sm:$0xff]
        %v1228 = vld [vmem:[#allocation6 + $0x1e0] sm:$0xff]
        %v1229 = vld [vmem:[#allocation6 + $0x1e8] sm:$0xff]
        %v1230 = vld [vmem:[#allocation6 + $0x1f0] sm:$0xff]
        %v1231 = vld [vmem:[#allocation6 + $0x1f8] sm:$0xff]
        %v1232 = vld [vmem:[#allocation6 + $0x200] sm:$0xff]
        %v1233 = vld [vmem:[#allocation6 + $0x208] sm:$0xff]
        %v1234 = vld [vmem:[#allocation6 + $0x210] sm:$0xff]
        %v1235 = vld [vmem:[#allocation6 + $0x218] sm:$0xff]
        %v1236 = vld [vmem:[#allocation6 + $0x220] sm:$0xff]
        %v1237 = vld [vmem:[#allocation6 + $0x228] sm:$0xff]
        %v1238 = vld [vmem:[#allocation6 + $0x230] sm:$0xff]
        %v1239 = vld [vmem:[#allocation6 + $0x238] sm:$0xff]
        %v1240 = vld [vmem:[#allocation6 + $0x240] sm:$0xff]
        %v1241 = vld [vmem:[#allocation6 + $0x248] sm:$0xff]
        %v1242 = vld [vmem:[#allocation6 + $0x250] sm:$0xff]
        %v1243 = vld [vmem:[#allocation6 + $0x258] sm:$0xff]
        %v1244 = vld [vmem:[#allocation6 + $0x260] sm:$0xff]
        %v1245 = vld [vmem:[#allocation6 + $0x268] sm:$0xff]
        %v1246 = vld [vmem:[#allocation6 + $0x270] sm:$0xff]
        %v1247 = vld [vmem:[#allocation6 + $0x278] sm:$0xff]
        %v1248 = vld [vmem:[#allocation6 + $0x280] sm:$0xff]
        %v1249 = vld [vmem:[#allocation6 + $0x288] sm:$0xff]
        %v1250 = vld [vmem:[#allocation6 + $0x290] sm:$0xff]
        %v1251 = vld [vmem:[#allocation6 + $0x298] sm:$0xff]
        %v1252 = vld [vmem:[#allocation6 + $0x2a0] sm:$0xff]
        %v1253 = vld [vmem:[#allocation6 + $0x2a8] sm:$0xff]
        %v1254 = vld [vmem:[#allocation6 + $0x2b0] sm:$0xff]
        %v1255 = vld [vmem:[#allocation6 + $0x2b8] sm:$0xff]
        %v1256 = vld [vmem:[#allocation6 + $0x2c0] sm:$0xff]
        %v1257 = vld [vmem:[#allocation6 + $0x2c8] sm:$0xff]
        %v1258 = vld [vmem:[#allocation6 + $0x2d0] sm:$0xff]
        %v1259 = vld [vmem:[#allocation6 + $0x2d8] sm:$0xff]
        %v1260 = vld [vmem:[#allocation6 + $0x2e0] sm:$0xff]
        %v1261 = vld [vmem:[#allocation6 + $0x2e8] sm:$0xff]
        %v1262 = vld [vmem:[#allocation6 + $0x2f0] sm:$0xff]
        %v1263 = vld [vmem:[#allocation6 + $0x2f8] sm:$0xff]
        %v1264 = vld [vmem:[#allocation6 + $0x300] sm:$0xff]
        %v1265 = vld [vmem:[#allocation6 + $0x308] sm:$0xff]
        %v1266 = vld [vmem:[#allocation6 + $0x310] sm:$0xff]
        %v1267 = vld [vmem:[#allocation6 + $0x318] sm:$0xff]
        %v1268 = vld [vmem:[#allocation6 + $0x320] sm:$0xff]
        %v1269 = vld [vmem:[#allocation6 + $0x328] sm:$0xff]
        %v1270 = vld [vmem:[#allocation6 + $0x330] sm:$0xff]
        %v1271 = vld [vmem:[#allocation6 + $0x338] sm:$0xff]
        %v1272 = vld [vmem:[#allocation6 + $0x340] sm:$0xff]
        %v1273 = vld [vmem:[#allocation6 + $0x348] sm:$0xff]
        %v1274 = vld [vmem:[#allocation6 + $0x350] sm:$0xff]
        %v1275 = vld [vmem:[#allocation6 + $0x358] sm:$0xff]
        %v1276 = vld [vmem:[#allocation6 + $0x360] sm:$0xff]
        %v1277 = vld [vmem:[#allocation6 + $0x368] sm:$0xff]
        %v1278 = vld [vmem:[#allocation6 + $0x370] sm:$0xff]
        %v1279 = vld [vmem:[#allocation6 + $0x378] sm:$0xff]
        %v1280 = vld [vmem:[#allocation6 + $0x380] sm:$0xff]
        %v1281 = vld [vmem:[#allocation6 + $0x388] sm:$0xff]
        %v1282 = vld [vmem:[#allocation6 + $0x390] sm:$0xff]
        %v1283 = vld [vmem:[#allocation6 + $0x398] sm:$0xff]
        %v1284 = vld [vmem:[#allocation6 + $0x3a0] sm:$0xff]
        %v1285 = vld [vmem:[#allocation6 + $0x3a8] sm:$0xff]
        %v1286 = vld [vmem:[#allocation6 + $0x3b0] sm:$0xff]
        %v1287 = vld [vmem:[#allocation6 + $0x3b8] sm:$0xff]
        %v1288 = vld [vmem:[#allocation6 + $0x3c0] sm:$0xff]
        %v1289 = vld [vmem:[#allocation6 + $0x3c8] sm:$0xff]
        %v1290 = vld [vmem:[#allocation6 + $0x3d0] sm:$0xff]
        %v1291 = vld [vmem:[#allocation6 + $0x3d8] sm:$0xff]
        %v1292 = vld [vmem:[#allocation6 + $0x3e0] sm:$0xff]
        %v1293 = vld [vmem:[#allocation6 + $0x3e8] sm:$0xff]
        %v1294 = vld [vmem:[#allocation6 + $0x3f0] sm:$0xff]
        %v1295 = vld [vmem:[#allocation6 + $0x3f8] sm:$0xff]
        %v1296 = vld [vmem:[#allocation6 + $0x400] sm:$0xff]
        %v1297 = vld [vmem:[#allocation6 + $0x408] sm:$0xff]
        %v1298 = vld [vmem:[#allocation6 + $0x410] sm:$0xff]
        %v1299 = vld [vmem:[#allocation6 + $0x418] sm:$0xff]
        %v1300 = vld [vmem:[#allocation6 + $0x420] sm:$0xff]
        %v1301 = vld [vmem:[#allocation6 + $0x428] sm:$0xff]
        %v1302 = vld [vmem:[#allocation6 + $0x430] sm:$0xff]
        %v1303 = vld [vmem:[#allocation6 + $0x438] sm:$0xff]
        %v1304 = vld [vmem:[#allocation6 + $0x440] sm:$0xff]
        %v1305 = vld [vmem:[#allocation6 + $0x448] sm:$0xff]
        %v1306 = vld [vmem:[#allocation6 + $0x450] sm:$0xff]
        %v1307 = vld [vmem:[#allocation6 + $0x458] sm:$0xff]
        %v1308 = vld [vmem:[#allocation6 + $0x460] sm:$0xff]
        %v1309 = vld [vmem:[#allocation6 + $0x468] sm:$0xff]
        %v1310 = vld [vmem:[#allocation6 + $0x470] sm:$0xff]
        %v1311 = vld [vmem:[#allocation6 + $0x478] sm:$0xff]
        %v1312 = vld [vmem:[#allocation6 + $0x480] sm:$0xff]
        %v1313 = vld [vmem:[#allocation6 + $0x488] sm:$0xff]
        %v1314 = vld [vmem:[#allocation6 + $0x490] sm:$0xff]
        %v1315 = vld [vmem:[#allocation6 + $0x498] sm:$0xff]
        %v1316 = vld [vmem:[#allocation6 + $0x4a0] sm:$0xff]
        %v1317 = vld [vmem:[#allocation6 + $0x4a8] sm:$0xff]
        %v1318 = vld [vmem:[#allocation6 + $0x4b0] sm:$0xff]
        %v1319 = vld [vmem:[#allocation6 + $0x4b8] sm:$0xff]
        %v1320 = vld [vmem:[#allocation6 + $0x4c0] sm:$0xff]
        %v1321 = vld [vmem:[#allocation6 + $0x4c8] sm:$0xff]
        %v1322 = vld [vmem:[#allocation6 + $0x4d0] sm:$0xff]
        %v1323 = vld [vmem:[#allocation6 + $0x4d8] sm:$0xff]
        %v1324 = vld [vmem:[#allocation6 + $0x4e0] sm:$0xff]
        %v1325 = vld [vmem:[#allocation6 + $0x4e8] sm:$0xff]
        %v1326 = vld [vmem:[#allocation6 + $0x4f0] sm:$0xff]
        %v1327 = vld [vmem:[#allocation6 + $0x4f8] sm:$0xff]
        %v1328 = vld [vmem:[#allocation6 + $0x500] sm:$0xff]
        %v1329 = vld [vmem:[#allocation6 + $0x508] sm:$0xff]
        %v1330 = vld [vmem:[#allocation6 + $0x510] sm:$0xff]
        %v1331 = vld [vmem:[#allocation6 + $0x518] sm:$0xff]
        %v1332 = vld [vmem:[#allocation6 + $0x520] sm:$0xff]
        %v1333 = vld [vmem:[#allocation6 + $0x528] sm:$0xff]
        %v1334 = vld [vmem:[#allocation6 + $0x530] sm:$0xff]
        %v1335 = vld [vmem:[#allocation6 + $0x538] sm:$0xff]
        %v1336 = vld [vmem:[#allocation6 + $0x540] sm:$0xff]
        %v1337 = vld [vmem:[#allocation6 + $0x548] sm:$0xff]
        %v1338 = vld [vmem:[#allocation6 + $0x550] sm:$0xff]
        %v1339 = vld [vmem:[#allocation6 + $0x558] sm:$0xff]
        %v1340 = vld [vmem:[#allocation6 + $0x560] sm:$0xff]
        %v1341 = vld [vmem:[#allocation6 + $0x568] sm:$0xff]
        %v1342 = vld [vmem:[#allocation6 + $0x570] sm:$0xff]
        %v1343 = vld [vmem:[#allocation6 + $0x578] sm:$0xff]
        %v1344 = vld [vmem:[#allocation6 + $0x580] sm:$0xff]
        %v1345 = vld [vmem:[#allocation6 + $0x588] sm:$0xff]
        %v1346 = vld [vmem:[#allocation6 + $0x590] sm:$0xff]
        %v1347 = vld [vmem:[#allocation6 + $0x598] sm:$0xff]
        %v1348 = vld [vmem:[#allocation6 + $0x5a0] sm:$0xff]
        %v1349 = vld [vmem:[#allocation6 + $0x5a8] sm:$0xff]
        %v1350 = vld [vmem:[#allocation6 + $0x5b0] sm:$0xff]
        %v1351 = vld [vmem:[#allocation6 + $0x5b8] sm:$0xff]
        %v1352 = vld [vmem:[#allocation6 + $0x5c0] sm:$0xff]
        %v1353 = vld [vmem:[#allocation6 + $0x5c8] sm:$0xff]
        %v1354 = vld [vmem:[#allocation6 + $0x5d0] sm:$0xff]
        %v1355 = vld [vmem:[#allocation6 + $0x5d8] sm:$0xff]
        %v1356 = vld [vmem:[#allocation6 + $0x5e0] sm:$0xff]
        %v1357 = vld [vmem:[#allocation6 + $0x5e8] sm:$0xff]
        %v1358 = vld [vmem:[#allocation6 + $0x5f0] sm:$0xff]
        %v1359 = vld [vmem:[#allocation6 + $0x5f8] sm:$0xff]
        %v1360 = vld [vmem:[#allocation6 + $0x600] sm:$0xff]
        %v1361 = vld [vmem:[#allocation6 + $0x608] sm:$0xff]
        %v1362 = vld [vmem:[#allocation6 + $0x610] sm:$0xff]
        %v1363 = vld [vmem:[#allocation6 + $0x618] sm:$0xff]
        %v1364 = vld [vmem:[#allocation6 + $0x620] sm:$0xff]
        %v1365 = vld [vmem:[#allocation6 + $0x628] sm:$0xff]
        %v1366 = vld [vmem:[#allocation6 + $0x630] sm:$0xff]
        %v1367 = vld [vmem:[#allocation6 + $0x638] sm:$0xff]
        %v1368 = vld [vmem:[#allocation6 + $0x640] sm:$0xff]
        %v1369 = vld [vmem:[#allocation6 + $0x648] sm:$0xff]
        %v1370 = vld [vmem:[#allocation6 + $0x650] sm:$0xff]
        %v1371 = vld [vmem:[#allocation6 + $0x658] sm:$0xff]
        %v1372 = vld [vmem:[#allocation6 + $0x660] sm:$0xff]
        %v1373 = vld [vmem:[#allocation6 + $0x668] sm:$0xff]
        %v1374 = vld [vmem:[#allocation6 + $0x670] sm:$0xff]
        %v1375 = vld [vmem:[#allocation6 + $0x678] sm:$0xff]
        %v1376 = vld [vmem:[#allocation6 + $0x680] sm:$0xff]
        %v1377 = vld [vmem:[#allocation6 + $0x688] sm:$0xff]
        %v1378 = vld [vmem:[#allocation6 + $0x690] sm:$0xff]
        %v1379 = vld [vmem:[#allocation6 + $0x698] sm:$0xff]
        %v1380 = vld [vmem:[#allocation6 + $0x6a0] sm:$0xff]
        %v1381 = vld [vmem:[#allocation6 + $0x6a8] sm:$0xff]
        %v1382 = vld [vmem:[#allocation6 + $0x6b0] sm:$0xff]
        %v1383 = vld [vmem:[#allocation6 + $0x6b8] sm:$0xff]
        %v1384 = vld [vmem:[#allocation6 + $0x6c0] sm:$0xff]
        %v1385 = vld [vmem:[#allocation6 + $0x6c8] sm:$0xff]
        %v1386 = vld [vmem:[#allocation6 + $0x6d0] sm:$0xff]
        %v1387 = vld [vmem:[#allocation6 + $0x6d8] sm:$0xff]
        %v1388 = vld [vmem:[#allocation6 + $0x6e0] sm:$0xff]
        %v1389 = vld [vmem:[#allocation6 + $0x6e8] sm:$0xff]
        %v1390 = vld [vmem:[#allocation6 + $0x6f0] sm:$0xff]
        %v1391 = vld [vmem:[#allocation6 + $0x6f8] sm:$0xff]
        %v1392 = vld [vmem:[#allocation6 + $0x700] sm:$0xff]
        %v1393 = vld [vmem:[#allocation6 + $0x708] sm:$0xff]
        %v1394 = vld [vmem:[#allocation6 + $0x710] sm:$0xff]
        %v1395 = vld [vmem:[#allocation6 + $0x718] sm:$0xff]
        %v1396 = vld [vmem:[#allocation6 + $0x720] sm:$0xff]
        %v1397 = vld [vmem:[#allocation6 + $0x728] sm:$0xff]
        %v1398 = vld [vmem:[#allocation6 + $0x730] sm:$0xff]
        %v1399 = vld [vmem:[#allocation6 + $0x738] sm:$0xff]
        %v1400 = vld [vmem:[#allocation6 + $0x740] sm:$0xff]
        %v1401 = vld [vmem:[#allocation6 + $0x748] sm:$0xff]
        %v1402 = vld [vmem:[#allocation6 + $0x750] sm:$0xff]
        %v1403 = vld [vmem:[#allocation6 + $0x758] sm:$0xff]
        %v1404 = vld [vmem:[#allocation6 + $0x760] sm:$0xff]
        %v1405 = vld [vmem:[#allocation6 + $0x768] sm:$0xff]
        %v1406 = vld [vmem:[#allocation6 + $0x770] sm:$0xff]
        %v1407 = vld [vmem:[#allocation6 + $0x778] sm:$0xff]
        %v1408 = vld [vmem:[#allocation6 + $0x780] sm:$0xff]
        %v1409 = vld [vmem:[#allocation6 + $0x788] sm:$0xff]
        %v1410 = vld [vmem:[#allocation6 + $0x790] sm:$0xff]
        %v1411 = vld [vmem:[#allocation6 + $0x798] sm:$0xff]
        %v1412 = vld [vmem:[#allocation6 + $0x7a0] sm:$0xff]
        %v1413 = vld [vmem:[#allocation6 + $0x7a8] sm:$0xff]
        %v1414 = vld [vmem:[#allocation6 + $0x7b0] sm:$0xff]
        %v1415 = vld [vmem:[#allocation6 + $0x7b8] sm:$0xff]
        %v1416 = vld [vmem:[#allocation6 + $0x7c0] sm:$0xff]
        %v1417 = vld [vmem:[#allocation6 + $0x7c8] sm:$0xff]
        %v1418 = vld [vmem:[#allocation6 + $0x7d0] sm:$0xff]
        %v1419 = vld [vmem:[#allocation6 + $0x7d8] sm:$0xff]
        %v1420 = vld [vmem:[#allocation6 + $0x7e0] sm:$0xff]
        %v1421 = vld [vmem:[#allocation6 + $0x7e8] sm:$0xff]
        %v1422 = vld [vmem:[#allocation6 + $0x7f0] sm:$0xff]
        %v1423 = vld [vmem:[#allocation6 + $0x7f8] sm:$0xff]
        %v1424 = vld [vmem:[%s4] sm:$0x1]
        %v1426 = vlaneseq
        %v1427 = vshrl.u32 %v1426, 7
        %v1428 = vsub.s32 0, %v1427
        %v1429 = vrot.slane %v1424, %v1428
        %1431 = vmatprep.subr.mxu0 0.0
        %1432 = vmatpush1.msra.mxu0 %v1168
        %1433 = vmatprep.subr.mxu0 0.0
        %1434 = vmatpush1.msra.mxu0 %v1169
        %1435 = vmatprep.subr.mxu0 0.0
        %1436 = vmatpush1.msra.mxu0 %v1170
        %1437 = vmatprep.subr.mxu0 0.0
        %1438 = vmatpush1.msra.mxu0 %v1171
        %1439 = vmatprep.subr.mxu0 0.0
        %1440 = vmatpush1.msra.mxu0 %v1172
        %1441 = vmatprep.subr.mxu0 0.0
        %1442 = vmatpush1.msra.mxu0 %v1173
        %1443 = vmatprep.subr.mxu0 0.0
        %1444 = vmatpush1.msra.mxu0 %v1174
        %1445 = vmatprep.subr.mxu0 0.0
        %1446 = vmatpush1.msra.mxu0 %v1175
        %1447 = vmatprep.subr.mxu0 0.0
        %1448 = vmatpush1.msra.mxu0 %v1176
        %1449 = vmatprep.subr.mxu0 0.0
        %1450 = vmatpush1.msra.mxu0 %v1177
        %1451 = vmatprep.subr.mxu0 0.0
        %1452 = vmatpush1.msra.mxu0 %v1178
        %1453 = vmatprep.subr.mxu0 0.0
        %1454 = vmatpush1.msra.mxu0 %v1179
        %1455 = vmatprep.subr.mxu0 0.0
        %1456 = vmatpush1.msra.mxu0 %v1180
        %1457 = vmatprep.subr.mxu0 0.0
        %1458 = vmatpush1.msra.mxu0 %v1181
        %1459 = vmatprep.subr.mxu0 0.0
        %1460 = vmatpush1.msra.mxu0 %v1182
        %1461 = vmatprep.subr.mxu0 0.0
        %1462 = vmatpush1.msra.mxu0 %v1183
        %1463 = vmatprep.subr.mxu0 0.0
        %1464 = vmatpush1.msra.mxu0 %v1184
        %1465 = vmatprep.subr.mxu0 0.0
        %1466 = vmatpush1.msra.mxu0 %v1185
        %1467 = vmatprep.subr.mxu0 0.0
        %1468 = vmatpush1.msra.mxu0 %v1186
        %1469 = vmatprep.subr.mxu0 0.0
        %1470 = vmatpush1.msra.mxu0 %v1187
        %1471 = vmatprep.subr.mxu0 0.0
        %1472 = vmatpush1.msra.mxu0 %v1188
        %1473 = vmatprep.subr.mxu0 0.0
        %1474 = vmatpush1.msra.mxu0 %v1189
        %1475 = vmatprep.subr.mxu0 0.0
        %1476 = vmatpush1.msra.mxu0 %v1190
        %1477 = vmatprep.subr.mxu0 0.0
        %1478 = vmatpush1.msra.mxu0 %v1191
        %1479 = vmatprep.subr.mxu0 0.0
        %1480 = vmatpush1.msra.mxu0 %v1192
        %1481 = vmatprep.subr.mxu0 0.0
        %1482 = vmatpush1.msra.mxu0 %v1193
        %1483 = vmatprep.subr.mxu0 0.0
        %1484 = vmatpush1.msra.mxu0 %v1194
        %1485 = vmatprep.subr.mxu0 0.0
        %1486 = vmatpush1.msra.mxu0 %v1195
        %1487 = vmatprep.subr.mxu0 0.0
        %1488 = vmatpush1.msra.mxu0 %v1196
        %1489 = vmatprep.subr.mxu0 0.0
        %1490 = vmatpush1.msra.mxu0 %v1197
        %1491 = vmatprep.subr.mxu0 0.0
        %1492 = vmatpush1.msra.mxu0 %v1198
        %1493 = vmatprep.subr.mxu0 0.0
        %1494 = vmatpush1.msra.mxu0 %v1199
        %1495 = vmatprep.mubr.f32.mxu0 %v1109
        %1496 = vmatmul.mubr.f32.gmra.mrb[0].mxu0 %v1105
        %v1497 = vpop.f32.mrb[0].mxu0
        %v1498 = vadd.f32 %v1429, %v1497
        %v1499 = vpop.f32.mrb[0].mxu0
        %1500 = vmatprep.mubr.f32.mxu0 %v1111
        %1501 = vmatmul.mubr.f32.gmra.mrb[0].mxu0 %v1107
        %v1502 = vpop.f32.mrb[0].mxu0
        %v1503 = vadd.f32 %v1429, %v1502
        %v1504 = vpop.f32.mrb[0].mxu0
        %1505 = vdwg.mxu0
        %1506 = vmatprep.subr.mxu0 0.0
        %1507 = vmatpush1.msra.mxu0 %v1200
        %1508 = vmatprep.subr.mxu0 0.0
        %1509 = vmatpush1.msra.mxu0 %v1201
        %1510 = vmatprep.subr.mxu0 0.0
        %1511 = vmatpush1.msra.mxu0 %v1202
        %1512 = vmatprep.subr.mxu0 0.0
        %1513 = vmatpush1.msra.mxu0 %v1203
        %1514 = vmatprep.subr.mxu0 0.0
        %1515 = vmatpush1.msra.mxu0 %v1204
        %1516 = vmatprep.subr.mxu0 0.0
        %1517 = vmatpush1.msra.mxu0 %v1205
        %1518 = vmatprep.subr.mxu0 0.0
        %1519 = vmatpush1.msra.mxu0 %v1206
        %1520 = vmatprep.subr.mxu0 0.0
        %1521 = vmatpush1.msra.mxu0 %v1207
        %1522 = vmatprep.subr.mxu0 0.0
        %1523 = vmatpush1.msra.mxu0 %v1208
        %1524 = vmatprep.subr.mxu0 0.0
        %1525 = vmatpush1.msra.mxu0 %v1209
        %1526 = vmatprep.subr.mxu0 0.0
        %1527 = vmatpush1.msra.mxu0 %v1210
        %1528 = vmatprep.subr.mxu0 0.0
        %1529 = vmatpush1.msra.mxu0 %v1211
        %1530 = vmatprep.subr.mxu0 0.0
        %1531 = vmatpush1.msra.mxu0 %v1212
        %1532 = vmatprep.subr.mxu0 0.0
        %1533 = vmatpush1.msra.mxu0 %v1213
        %1534 = vmatprep.subr.mxu0 0.0
        %1535 = vmatpush1.msra.mxu0 %v1214
        %1536 = vmatprep.subr.mxu0 0.0
        %1537 = vmatpush1.msra.mxu0 %v1215
        %1538 = vmatprep.subr.mxu0 0.0
        %1539 = vmatpush1.msra.mxu0 %v1216
        %1540 = vmatprep.subr.mxu0 0.0
        %1541 = vmatpush1.msra.mxu0 %v1217
        %1542 = vmatprep.subr.mxu0 0.0
        %1543 = vmatpush1.msra.mxu0 %v1218
        %1544 = vmatprep.subr.mxu0 0.0
        %1545 = vmatpush1.msra.mxu0 %v1219
        %1546 = vmatprep.subr.mxu0 0.0
        %1547 = vmatpush1.msra.mxu0 %v1220
        %1548 = vmatprep.subr.mxu0 0.0
        %1549 = vmatpush1.msra.mxu0 %v1221
        %1550 = vmatprep.subr.mxu0 0.0
        %1551 = vmatpush1.msra.mxu0 %v1222
        %1552 = vmatprep.subr.mxu0 0.0
        %1553 = vmatpush1.msra.mxu0 %v1223
        %1554 = vmatprep.subr.mxu0 0.0
        %1555 = vmatpush1.msra.mxu0 %v1224
        %1556 = vmatprep.subr.mxu0 0.0
        %1557 = vmatpush1.msra.mxu0 %v1225
        %1558 = vmatprep.subr.mxu0 0.0
        %1559 = vmatpush1.msra.mxu0 %v1226
        %1560 = vmatprep.subr.mxu0 0.0
        %1561 = vmatpush1.msra.mxu0 %v1227
        %1562 = vmatprep.subr.mxu0 0.0
        %1563 = vmatpush1.msra.mxu0 %v1228
        %1564 = vmatprep.subr.mxu0 0.0
        %1565 = vmatpush1.msra.mxu0 %v1229
        %1566 = vmatprep.subr.mxu0 0.0
        %1567 = vmatpush1.msra.mxu0 %v1230
        %1568 = vmatprep.subr.mxu0 0.0
        %1569 = vmatpush1.msra.mxu0 %v1231
        %1570 = vmatprep.mubr.f32.mxu0 %v1117
        %1571 = vmatmul.mubr.f32.gmra.mrb[0].mxu0 %v1113
        %v1572 = vpop.f32.mrb[0].mxu0
        %v1573 = vadd.f32 %v1498, %v1572
        %v1574 = vpop.f32.mrb[0].mxu0
        %1575 = vmatprep.mubr.f32.mxu0 %v1119
        %1576 = vmatmul.mubr.f32.gmra.mrb[0].mxu0 %v1115
        %v1577 = vpop.f32.mrb[0].mxu0
        %v1578 = vadd.f32 %v1503, %v1577
        %v1579 = vpop.f32.mrb[0].mxu0
        %1580 = vdwg.mxu0
        %1581 = vmatprep.subr.mxu0 0.0
        %1582 = vmatpush1.msra.mxu0 %v1232
        %1583 = vmatprep.subr.mxu0 0.0
        %1584 = vmatpush1.msra.mxu0 %v1233
        %1585 = vmatprep.subr.mxu0 0.0
        %1586 = vmatpush1.msra.mxu0 %v1234
        %1587 = vmatprep.subr.mxu0 0.0
        %1588 = vmatpush1.msra.mxu0 %v1235
        %1589 = vmatprep.subr.mxu0 0.0
        %1590 = vmatpush1.msra.mxu0 %v1236
        %1591 = vmatprep.subr.mxu0 0.0
        %1592 = vmatpush1.msra.mxu0 %v1237
        %1593 = vmatprep.subr.mxu0 0.0
        %1594 = vmatpush1.msra.mxu0 %v1238
        %1595 = vmatprep.subr.mxu0 0.0
        %1596 = vmatpush1.msra.mxu0 %v1239
        %1597 = vmatprep.subr.mxu0 0.0
        %1598 = vmatpush1.msra.mxu0 %v1240
        %1599 = vmatprep.subr.mxu0 0.0
        %1600 = vmatpush1.msra.mxu0 %v1241
        %1601 = vmatprep.subr.mxu0 0.0
        %1602 = vmatpush1.msra.mxu0 %v1242
        %1603 = vmatprep.subr.mxu0 0.0
        %1604 = vmatpush1.msra.mxu0 %v1243
        %1605 = vmatprep.subr.mxu0 0.0
        %1606 = vmatpush1.msra.mxu0 %v1244
        %1607 = vmatprep.subr.mxu0 0.0
        %1608 = vmatpush1.msra.mxu0 %v1245
        %1609 = vmatprep.subr.mxu0 0.0
        %1610 = vmatpush1.msra.mxu0 %v1246
        %1611 = vmatprep.subr.mxu0 0.0
        %1612 = vmatpush1.msra.mxu0 %v1247
        %1613 = vmatprep.subr.mxu0 0.0
        %1614 = vmatpush1.msra.mxu0 %v1248
        %1615 = vmatprep.subr.mxu0 0.0
        %1616 = vmatpush1.msra.mxu0 %v1249
        %1617 = vmatprep.subr.mxu0 0.0
        %1618 = vmatpush1.msra.mxu0 %v1250
        %1619 = vmatprep.subr.mxu0 0.0
        %1620 = vmatpush1.msra.mxu0 %v1251
        %1621 = vmatprep.subr.mxu0 0.0
        %1622 = vmatpush1.msra.mxu0 %v1252
        %1623 = vmatprep.subr.mxu0 0.0
        %1624 = vmatpush1.msra.mxu0 %v1253
        %1625 = vmatprep.subr.mxu0 0.0
        %1626 = vmatpush1.msra.mxu0 %v1254
        %1627 = vmatprep.subr.mxu0 0.0
        %1628 = vmatpush1.msra.mxu0 %v1255
        %1629 = vmatprep.subr.mxu0 0.0
        %1630 = vmatpush1.msra.mxu0 %v1256
        %1631 = vmatprep.subr.mxu0 0.0
        %1632 = vmatpush1.msra.mxu0 %v1257
        %1633 = vmatprep.subr.mxu0 0.0
        %1634 = vmatpush1.msra.mxu0 %v1258
        %1635 = vmatprep.subr.mxu0 0.0
        %1636 = vmatpush1.msra.mxu0 %v1259
        %1637 = vmatprep.subr.mxu0 0.0
        %1638 = vmatpush1.msra.mxu0 %v1260
        %1639 = vmatprep.subr.mxu0 0.0
        %1640 = vmatpush1.msra.mxu0 %v1261
        %1641 = vmatprep.subr.mxu0 0.0
        %1642 = vmatpush1.msra.mxu0 %v1262
        %1643 = vmatprep.subr.mxu0 0.0
        %1644 = vmatpush1.msra.mxu0 %v1263
        %1645 = vmatprep.mubr.f32.mxu0 %v1125
        %1646 = vmatmul.mubr.f32.gmra.mrb[0].mxu0 %v1121
        %v1647 = vpop.f32.mrb[0].mxu0
        %v1648 = vadd.f32 %v1573, %v1647
        %v1649 = vpop.f32.mrb[0].mxu0
        %1650 = vmatprep.mubr.f32.mxu0 %v1127
        %1651 = vmatmul.mubr.f32.gmra.mrb[0].mxu0 %v1123
        %v1652 = vpop.f32.mrb[0].mxu0
        %v1653 = vadd.f32 %v1578, %v1652
        %v1654 = vpop.f32.mrb[0].mxu0
        %1655 = vdwg.mxu0
        %1656 = vmatprep.subr.mxu0 0.0
        %1657 = vmatpush1.msra.mxu0 %v1264
        %1658 = vmatprep.subr.mxu0 0.0
        %1659 = vmatpush1.msra.mxu0 %v1265
        %1660 = vmatprep.subr.mxu0 0.0
        %1661 = vmatpush1.msra.mxu0 %v1266
        %1662 = vmatprep.subr.mxu0 0.0
        %1663 = vmatpush1.msra.mxu0 %v1267
        %1664 = vmatprep.subr.mxu0 0.0
        %1665 = vmatpush1.msra.mxu0 %v1268
        %1666 = vmatprep.subr.mxu0 0.0
        %1667 = vmatpush1.msra.mxu0 %v1269
        %1668 = vmatprep.subr.mxu0 0.0
        %1669 = vmatpush1.msra.mxu0 %v1270
        %1670 = vmatprep.subr.mxu0 0.0
        %1671 = vmatpush1.msra.mxu0 %v1271
        %1672 = vmatprep.subr.mxu0 0.0
        %1673 = vmatpush1.msra.mxu0 %v1272
        %1674 = vmatprep.subr.mxu0 0.0
        %1675 = vmatpush1.msra.mxu0 %v1273
        %1676 = vmatprep.subr.mxu0 0.0
        %1677 = vmatpush1.msra.mxu0 %v1274
        %1678 = vmatprep.subr.mxu0 0.0
        %1679 = vmatpush1.msra.mxu0 %v1275
        %1680 = vmatprep.subr.mxu0 0.0
        %1681 = vmatpush1.msra.mxu0 %v1276
        %1682 = vmatprep.subr.mxu0 0.0
        %1683 = vmatpush1.msra.mxu0 %v1277
        %1684 = vmatprep.subr.mxu0 0.0
        %1685 = vmatpush1.msra.mxu0 %v1278
        %1686 = vmatprep.subr.mxu0 0.0
        %1687 = vmatpush1.msra.mxu0 %v1279
        %1688 = vmatprep.subr.mxu0 0.0
        %1689 = vmatpush1.msra.mxu0 %v1280
        %1690 = vmatprep.subr.mxu0 0.0
        %1691 = vmatpush1.msra.mxu0 %v1281
        %1692 = vmatprep.subr.mxu0 0.0
        %1693 = vmatpush1.msra.mxu0 %v1282
        %1694 = vmatprep.subr.mxu0 0.0
        %1695 = vmatpush1.msra.mxu0 %v1283
        %1696 = vmatprep.subr.mxu0 0.0
        %1697 = vmatpush1.msra.mxu0 %v1284
        %1698 = vmatprep.subr.mxu0 0.0
        %1699 = vmatpush1.msra.mxu0 %v1285
        %1700 = vmatprep.subr.mxu0 0.0
        %1701 = vmatpush1.msra.mxu0 %v1286
        %1702 = vmatprep.subr.mxu0 0.0
        %1703 = vmatpush1.msra.mxu0 %v1287
        %1704 = vmatprep.subr.mxu0 0.0
        %1705 = vmatpush1.msra.mxu0 %v1288
        %1706 = vmatprep.subr.mxu0 0.0
        %1707 = vmatpush1.msra.mxu0 %v1289
        %1708 = vmatprep.subr.mxu0 0.0
        %1709 = vmatpush1.msra.mxu0 %v1290
        %1710 = vmatprep.subr.mxu0 0.0
        %1711 = vmatpush1.msra.mxu0 %v1291
        %1712 = vmatprep.subr.mxu0 0.0
        %1713 = vmatpush1.msra.mxu0 %v1292
        %1714 = vmatprep.subr.mxu0 0.0
        %1715 = vmatpush1.msra.mxu0 %v1293
        %1716 = vmatprep.subr.mxu0 0.0
        %1717 = vmatpush1.msra.mxu0 %v1294
        %1718 = vmatprep.subr.mxu0 0.0
        %1719 = vmatpush1.msra.mxu0 %v1295
        %1720 = vmatprep.mubr.f32.mxu0 %v1133
        %1721 = vmatmul.mubr.f32.gmra.mrb[0].mxu0 %v1129
        %v1722 = vpop.f32.mrb[0].mxu0
        %v1723 = vadd.f32 %v1648, %v1722
        %v1724 = vpop.f32.mrb[0].mxu0
        %1725 = vmatprep.mubr.f32.mxu0 %v1135
        %1726 = vmatmul.mubr.f32.gmra.mrb[0].mxu0 %v1131
        %v1727 = vpop.f32.mrb[0].mxu0
        %v1728 = vadd.f32 %v1653, %v1727
        %v1729 = vpop.f32.mrb[0].mxu0
        %1730 = vdwg.mxu0
        %1731 = vmatprep.subr.mxu0 0.0
        %1732 = vmatpush1.msra.mxu0 %v1296
        %1733 = vmatprep.subr.mxu0 0.0
        %1734 = vmatpush1.msra.mxu0 %v1297
        %1735 = vmatprep.subr.mxu0 0.0
        %1736 = vmatpush1.msra.mxu0 %v1298
        %1737 = vmatprep.subr.mxu0 0.0
        %1738 = vmatpush1.msra.mxu0 %v1299
        %1739 = vmatprep.subr.mxu0 0.0
        %1740 = vmatpush1.msra.mxu0 %v1300
        %1741 = vmatprep.subr.mxu0 0.0
        %1742 = vmatpush1.msra.mxu0 %v1301
        %1743 = vmatprep.subr.mxu0 0.0
        %1744 = vmatpush1.msra.mxu0 %v1302
        %1745 = vmatprep.subr.mxu0 0.0
        %1746 = vmatpush1.msra.mxu0 %v1303
        %1747 = vmatprep.subr.mxu0 0.0
        %1748 = vmatpush1.msra.mxu0 %v1304
        %1749 = vmatprep.subr.mxu0 0.0
        %1750 = vmatpush1.msra.mxu0 %v1305
        %1751 = vmatprep.subr.mxu0 0.0
        %1752 = vmatpush1.msra.mxu0 %v1306
        %1753 = vmatprep.subr.mxu0 0.0
        %1754 = vmatpush1.msra.mxu0 %v1307
        %1755 = vmatprep.subr.mxu0 0.0
        %1756 = vmatpush1.msra.mxu0 %v1308
        %1757 = vmatprep.subr.mxu0 0.0
        %1758 = vmatpush1.msra.mxu0 %v1309
        %1759 = vmatprep.subr.mxu0 0.0
        %1760 = vmatpush1.msra.mxu0 %v1310
        %1761 = vmatprep.subr.mxu0 0.0
        %1762 = vmatpush1.msra.mxu0 %v1311
        %1763 = vmatprep.subr.mxu0 0.0
        %1764 = vmatpush1.msra.mxu0 %v1312
        %1765 = vmatprep.subr.mxu0 0.0
        %1766 = vmatpush1.msra.mxu0 %v1313
        %1767 = vmatprep.subr.mxu0 0.0
        %1768 = vmatpush1.msra.mxu0 %v1314
        %1769 = vmatprep.subr.mxu0 0.0
        %1770 = vmatpush1.msra.mxu0 %v1315
        %1771 = vmatprep.subr.mxu0 0.0
        %1772 = vmatpush1.msra.mxu0 %v1316
        %1773 = vmatprep.subr.mxu0 0.0
        %1774 = vmatpush1.msra.mxu0 %v1317
        %1775 = vmatprep.subr.mxu0 0.0
        %1776 = vmatpush1.msra.mxu0 %v1318
        %1777 = vmatprep.subr.mxu0 0.0
        %1778 = vmatpush1.msra.mxu0 %v1319
        %1779 = vmatprep.subr.mxu0 0.0
        %1780 = vmatpush1.msra.mxu0 %v1320
        %1781 = vmatprep.subr.mxu0 0.0
        %1782 = vmatpush1.msra.mxu0 %v1321
        %1783 = vmatprep.subr.mxu0 0.0
        %1784 = vmatpush1.msra.mxu0 %v1322
        %1785 = vmatprep.subr.mxu0 0.0
        %1786 = vmatpush1.msra.mxu0 %v1323
        %1787 = vmatprep.subr.mxu0 0.0
        %1788 = vmatpush1.msra.mxu0 %v1324
        %1789 = vmatprep.subr.mxu0 0.0
        %1790 = vmatpush1.msra.mxu0 %v1325
        %1791 = vmatprep.subr.mxu0 0.0
        %1792 = vmatpush1.msra.mxu0 %v1326
        %1793 = vmatprep.subr.mxu0 0.0
        %1794 = vmatpush1.msra.mxu0 %v1327
        %1795 = vmatprep.mubr.f32.mxu0 %v1141
        %1796 = vmatmul.mubr.f32.gmra.mrb[0].mxu0 %v1137
        %v1797 = vpop.f32.mrb[0].mxu0
        %v1798 = vadd.f32 %v1723, %v1797
        %v1799 = vpop.f32.mrb[0].mxu0
        %1800 = vmatprep.mubr.f32.mxu0 %v1143
        %1801 = vmatmul.mubr.f32.gmra.mrb[0].mxu0 %v1139
        %v1802 = vpop.f32.mrb[0].mxu0
        %v1803 = vadd.f32 %v1728, %v1802
        %v1804 = vpop.f32.mrb[0].mxu0
        %1805 = vdwg.mxu0
        %1806 = vmatprep.subr.mxu0 0.0
        %1807 = vmatpush1.msra.mxu0 %v1328
        %1808 = vmatprep.subr.mxu0 0.0
        %1809 = vmatpush1.msra.mxu0 %v1329
        %1810 = vmatprep.subr.mxu0 0.0
        %1811 = vmatpush1.msra.mxu0 %v1330
        %1812 = vmatprep.subr.mxu0 0.0
        %1813 = vmatpush1.msra.mxu0 %v1331
        %1814 = vmatprep.subr.mxu0 0.0
        %1815 = vmatpush1.msra.mxu0 %v1332
        %1816 = vmatprep.subr.mxu0 0.0
        %1817 = vmatpush1.msra.mxu0 %v1333
        %1818 = vmatprep.subr.mxu0 0.0
        %1819 = vmatpush1.msra.mxu0 %v1334
        %1820 = vmatprep.subr.mxu0 0.0
        %1821 = vmatpush1.msra.mxu0 %v1335
        %1822 = vmatprep.subr.mxu0 0.0
        %1823 = vmatpush1.msra.mxu0 %v1336
        %1824 = vmatprep.subr.mxu0 0.0
        %1825 = vmatpush1.msra.mxu0 %v1337
        %1826 = vmatprep.subr.mxu0 0.0
        %1827 = vmatpush1.msra.mxu0 %v1338
        %1828 = vmatprep.subr.mxu0 0.0
        %1829 = vmatpush1.msra.mxu0 %v1339
        %1830 = vmatprep.subr.mxu0 0.0
        %1831 = vmatpush1.msra.mxu0 %v1340
        %1832 = vmatprep.subr.mxu0 0.0
        %1833 = vmatpush1.msra.mxu0 %v1341
        %1834 = vmatprep.subr.mxu0 0.0
        %1835 = vmatpush1.msra.mxu0 %v1342
        %1836 = vmatprep.subr.mxu0 0.0
        %1837 = vmatpush1.msra.mxu0 %v1343
        %1838 = vmatprep.subr.mxu0 0.0
        %1839 = vmatpush1.msra.mxu0 %v1344
        %1840 = vmatprep.subr.mxu0 0.0
        %1841 = vmatpush1.msra.mxu0 %v1345
        %1842 = vmatprep.subr.mxu0 0.0
        %1843 = vmatpush1.msra.mxu0 %v1346
        %1844 = vmatprep.subr.mxu0 0.0
        %1845 = vmatpush1.msra.mxu0 %v1347
        %1846 = vmatprep.subr.mxu0 0.0
        %1847 = vmatpush1.msra.mxu0 %v1348
        %1848 = vmatprep.subr.mxu0 0.0
        %1849 = vmatpush1.msra.mxu0 %v1349
        %1850 = vmatprep.subr.mxu0 0.0
        %1851 = vmatpush1.msra.mxu0 %v1350
        %1852 = vmatprep.subr.mxu0 0.0
        %1853 = vmatpush1.msra.mxu0 %v1351
        %1854 = vmatprep.subr.mxu0 0.0
        %1855 = vmatpush1.msra.mxu0 %v1352
        %1856 = vmatprep.subr.mxu0 0.0
        %1857 = vmatpush1.msra.mxu0 %v1353
        %1858 = vmatprep.subr.mxu0 0.0
        %1859 = vmatpush1.msra.mxu0 %v1354
        %1860 = vmatprep.subr.mxu0 0.0
        %1861 = vmatpush1.msra.mxu0 %v1355
        %1862 = vmatprep.subr.mxu0 0.0
        %1863 = vmatpush1.msra.mxu0 %v1356
        %1864 = vmatprep.subr.mxu0 0.0
        %1865 = vmatpush1.msra.mxu0 %v1357
        %1866 = vmatprep.subr.mxu0 0.0
        %1867 = vmatpush1.msra.mxu0 %v1358
        %1868 = vmatprep.subr.mxu0 0.0
        %1869 = vmatpush1.msra.mxu0 %v1359
        %1870 = vmatprep.mubr.f32.mxu0 %v1149
        %1871 = vmatmul.mubr.f32.gmra.mrb[0].mxu0 %v1145
        %v1872 = vpop.f32.mrb[0].mxu0
        %v1873 = vadd.f32 %v1798, %v1872
        %v1874 = vpop.f32.mrb[0].mxu0
        %1875 = vmatprep.mubr.f32.mxu0 %v1151
        %1876 = vmatmul.mubr.f32.gmra.mrb[0].mxu0 %v1147
        %v1877 = vpop.f32.mrb[0].mxu0
        %v1878 = vadd.f32 %v1803, %v1877
        %v1879 = vpop.f32.mrb[0].mxu0
        %1880 = vdwg.mxu0
        %1881 = vmatprep.subr.mxu0 0.0
        %1882 = vmatpush1.msra.mxu0 %v1360
        %1883 = vmatprep.subr.mxu0 0.0
        %1884 = vmatpush1.msra.mxu0 %v1361
        %1885 = vmatprep.subr.mxu0 0.0
        %1886 = vmatpush1.msra.mxu0 %v1362
        %1887 = vmatprep.subr.mxu0 0.0
        %1888 = vmatpush1.msra.mxu0 %v1363
        %1889 = vmatprep.subr.mxu0 0.0
        %1890 = vmatpush1.msra.mxu0 %v1364
        %1891 = vmatprep.subr.mxu0 0.0
        %1892 = vmatpush1.msra.mxu0 %v1365
        %1893 = vmatprep.subr.mxu0 0.0
        %1894 = vmatpush1.msra.mxu0 %v1366
        %1895 = vmatprep.subr.mxu0 0.0
        %1896 = vmatpush1.msra.mxu0 %v1367
        %1897 = vmatprep.subr.mxu0 0.0
        %1898 = vmatpush1.msra.mxu0 %v1368
        %1899 = vmatprep.subr.mxu0 0.0
        %1900 = vmatpush1.msra.mxu0 %v1369
        %1901 = vmatprep.subr.mxu0 0.0
        %1902 = vmatpush1.msra.mxu0 %v1370
        %1903 = vmatprep.subr.mxu0 0.0
        %1904 = vmatpush1.msra.mxu0 %v1371
        %1905 = vmatprep.subr.mxu0 0.0
        %1906 = vmatpush1.msra.mxu0 %v1372
        %1907 = vmatprep.subr.mxu0 0.0
        %1908 = vmatpush1.msra.mxu0 %v1373
        %1909 = vmatprep.subr.mxu0 0.0
        %1910 = vmatpush1.msra.mxu0 %v1374
        %1911 = vmatprep.subr.mxu0 0.0
        %1912 = vmatpush1.msra.mxu0 %v1375
        %1913 = vmatprep.subr.mxu0 0.0
        %1914 = vmatpush1.msra.mxu0 %v1376
        %1915 = vmatprep.subr.mxu0 0.0
        %1916 = vmatpush1.msra.mxu0 %v1377
        %1917 = vmatprep.subr.mxu0 0.0
        %1918 = vmatpush1.msra.mxu0 %v1378
        %1919 = vmatprep.subr.mxu0 0.0
        %1920 = vmatpush1.msra.mxu0 %v1379
        %1921 = vmatprep.subr.mxu0 0.0
        %1922 = vmatpush1.msra.mxu0 %v1380
        %1923 = vmatprep.subr.mxu0 0.0
        %1924 = vmatpush1.msra.mxu0 %v1381
        %1925 = vmatprep.subr.mxu0 0.0
        %1926 = vmatpush1.msra.mxu0 %v1382
        %1927 = vmatprep.subr.mxu0 0.0
        %1928 = vmatpush1.msra.mxu0 %v1383
        %1929 = vmatprep.subr.mxu0 0.0
        %1930 = vmatpush1.msra.mxu0 %v1384
        %1931 = vmatprep.subr.mxu0 0.0
        %1932 = vmatpush1.msra.mxu0 %v1385
        %1933 = vmatprep.subr.mxu0 0.0
        %1934 = vmatpush1.msra.mxu0 %v1386
        %1935 = vmatprep.subr.mxu0 0.0
        %1936 = vmatpush1.msra.mxu0 %v1387
        %1937 = vmatprep.subr.mxu0 0.0
        %1938 = vmatpush1.msra.mxu0 %v1388
        %1939 = vmatprep.subr.mxu0 0.0
        %1940 = vmatpush1.msra.mxu0 %v1389
        %1941 = vmatprep.subr.mxu0 0.0
        %1942 = vmatpush1.msra.mxu0 %v1390
        %1943 = vmatprep.subr.mxu0 0.0
        %1944 = vmatpush1.msra.mxu0 %v1391
        %1945 = vmatprep.mubr.f32.mxu0 %v1157
        %1946 = vmatmul.mubr.f32.gmra.mrb[0].mxu0 %v1153
        %v1947 = vpop.f32.mrb[0].mxu0
        %v1948 = vadd.f32 %v1873, %v1947
        %v1949 = vpop.f32.mrb[0].mxu0
        %1950 = vmatprep.mubr.f32.mxu0 %v1159
        %1951 = vmatmul.mubr.f32.gmra.mrb[0].mxu0 %v1155
        %v1952 = vpop.f32.mrb[0].mxu0
        %v1953 = vadd.f32 %v1878, %v1952
        %v1954 = vpop.f32.mrb[0].mxu0
        %1955 = vdwg.mxu0
        %1956 = vmatprep.subr.mxu0 0.0
        %1957 = vmatpush1.msra.mxu0 %v1392
        %1958 = vmatprep.subr.mxu0 0.0
        %1959 = vmatpush1.msra.mxu0 %v1393
        %1960 = vmatprep.subr.mxu0 0.0
        %1961 = vmatpush1.msra.mxu0 %v1394
        %1962 = vmatprep.subr.mxu0 0.0
        %1963 = vmatpush1.msra.mxu0 %v1395
        %1964 = vmatprep.subr.mxu0 0.0
        %1965 = vmatpush1.msra.mxu0 %v1396
        %1966 = vmatprep.subr.mxu0 0.0
        %1967 = vmatpush1.msra.mxu0 %v1397
        %1968 = vmatprep.subr.mxu0 0.0
        %1969 = vmatpush1.msra.mxu0 %v1398
        %1970 = vmatprep.subr.mxu0 0.0
        %1971 = vmatpush1.msra.mxu0 %v1399
        %1972 = vmatprep.subr.mxu0 0.0
        %1973 = vmatpush1.msra.mxu0 %v1400
        %1974 = vmatprep.subr.mxu0 0.0
        %1975 = vmatpush1.msra.mxu0 %v1401
        %1976 = vmatprep.subr.mxu0 0.0
        %1977 = vmatpush1.msra.mxu0 %v1402
        %1978 = vmatprep.subr.mxu0 0.0
        %1979 = vmatpush1.msra.mxu0 %v1403
        %1980 = vmatprep.subr.mxu0 0.0
        %1981 = vmatpush1.msra.mxu0 %v1404
        %1982 = vmatprep.subr.mxu0 0.0
        %1983 = vmatpush1.msra.mxu0 %v1405
        %1984 = vmatprep.subr.mxu0 0.0
        %1985 = vmatpush1.msra.mxu0 %v1406
        %1986 = vmatprep.subr.mxu0 0.0
        %1987 = vmatpush1.msra.mxu0 %v1407
        %1988 = vmatprep.subr.mxu0 0.0
        %1989 = vmatpush1.msra.mxu0 %v1408
        %1990 = vmatprep.subr.mxu0 0.0
        %1991 = vmatpush1.msra.mxu0 %v1409
        %1992 = vmatprep.subr.mxu0 0.0
        %1993 = vmatpush1.msra.mxu0 %v1410
        %1994 = vmatprep.subr.mxu0 0.0
        %1995 = vmatpush1.msra.mxu0 %v1411
        %1996 = vmatprep.subr.mxu0 0.0
        %1997 = vmatpush1.msra.mxu0 %v1412
        %1998 = vmatprep.subr.mxu0 0.0
        %1999 = vmatpush1.msra.mxu0 %v1413
        %2000 = vmatprep.subr.mxu0 0.0
        %2001 = vmatpush1.msra.mxu0 %v1414
        %2002 = vmatprep.subr.mxu0 0.0
        %2003 = vmatpush1.msra.mxu0 %v1415
        %2004 = vmatprep.subr.mxu0 0.0
        %2005 = vmatpush1.msra.mxu0 %v1416
        %2006 = vmatprep.subr.mxu0 0.0
        %2007 = vmatpush1.msra.mxu0 %v1417
        %2008 = vmatprep.subr.mxu0 0.0
        %2009 = vmatpush1.msra.mxu0 %v1418
        %2010 = vmatprep.subr.mxu0 0.0
        %2011 = vmatpush1.msra.mxu0 %v1419
        %2012 = vmatprep.subr.mxu0 0.0
        %2013 = vmatpush1.msra.mxu0 %v1420
        %2014 = vmatprep.subr.mxu0 0.0
        %2015 = vmatpush1.msra.mxu0 %v1421
        %2016 = vmatprep.subr.mxu0 0.0
        %2017 = vmatpush1.msra.mxu0 %v1422
        %2018 = vmatprep.subr.mxu0 0.0
        %2019 = vmatpush1.msra.mxu0 %v1423
        %2020 = vmatprep.mubr.f32.mxu0 %v1165
        %2021 = vmatmul.mubr.f32.gmra.mrb[0].mxu0 %v1161
        %v2022 = vpop.f32.mrb[0].mxu0
        %v2023 = vadd.f32 %v1948, %v2022
        %v2024 = vpop.f32.mrb[0].mxu0
        %2025 = vmatprep.mubr.f32.mxu0 %v1167
        %2026 = vmatmul.mubr.f32.gmra.mrb[0].mxu0 %v1163
        %v2027 = vpop.f32.mrb[0].mxu0
        %v2028 = vadd.f32 %v1953, %v2027
        %v2029 = vpop.f32.mrb[0].mxu0
        %2030 = vdwg.mxu0
        %v2031 = vmax.f32 %v2023, 0.0
        %v2032 = vmax.f32 %v2028, 0.0
        %2033 = vst [vmem:[#allocation5] sm:$0xff] %v2031
        %2034 = vst [vmem:[#allocation5 + $0x8] sm:$0xf] %v2032
        %v2035 = vld [vmem:[#allocation5] ss:$2 sm:$0x1f]
        %s2036 = scalar_lea.vmem [#allocation5], 1
        %v2037 = vld [vmem:[%s2036] ss:$2 sm:$0x1f]
        %v2038 = vmax.f32 %v2035, %v2037
        %s2039 = scalar_lea.vmem [#allocation5], 2
        %v2040 = vld [vmem:[%s2039] ss:$2 sm:$0x1f]
        %v2041 = vmax.f32 %v2038, %v2040
        %v2042 = vld [vmem:[#allocation9] sm:$0xff]
        %v2043 = vld [vmem:[#allocation9 + $0x8] sm:$0xff]
        %v2044 = vld [vmem:[#allocation9 + $0x10] sm:$0xff]
        %v2045 = vld [vmem:[#allocation9 + $0x18] sm:$0xff]
        %v2046 = vld [vmem:[#allocation9 + $0x20] sm:$0xff]
        %v2047 = vld [vmem:[#allocation9 + $0x28] sm:$0xff]
        %v2048 = vld [vmem:[#allocation9 + $0x30] sm:$0xff]
        %v2049 = vld [vmem:[#allocation9 + $0x38] sm:$0xff]
        %v2050 = vld [vmem:[#allocation9 + $0x40] sm:$0xff]
        %v2051 = vld [vmem:[#allocation9 + $0x48] sm:$0xff]
        %v2052 = vld [vmem:[#allocation9 + $0x50] sm:$0xff]
        %v2053 = vld [vmem:[#allocation9 + $0x58] sm:$0xff]
        %v2054 = vld [vmem:[#allocation9 + $0x60] sm:$0xff]
        %v2055 = vld [vmem:[#allocation9 + $0x68] sm:$0xff]
        %v2056 = vld [vmem:[#allocation9 + $0x70] sm:$0xff]
        %v2057 = vld [vmem:[#allocation9 + $0x78] sm:$0xff]
        %v2058 = vld [vmem:[#allocation9 + $0x80] sm:$0xff]
        %v2059 = vld [vmem:[#allocation9 + $0x88] sm:$0xff]
        %v2060 = vld [vmem:[#allocation9 + $0x90] sm:$0xff]
        %v2061 = vld [vmem:[#allocation9 + $0x98] sm:$0xff]
        %v2062 = vld [vmem:[#allocation9 + $0xa0] sm:$0xff]
        %v2063 = vld [vmem:[#allocation9 + $0xa8] sm:$0xff]
        %v2064 = vld [vmem:[#allocation9 + $0xb0] sm:$0xff]
        %v2065 = vld [vmem:[#allocation9 + $0xb8] sm:$0xff]
        %v2066 = vld [vmem:[#allocation9 + $0xc0] sm:$0xff]
        %v2067 = vld [vmem:[#allocation9 + $0xc8] sm:$0xff]
        %v2068 = vld [vmem:[#allocation9 + $0xd0] sm:$0xff]
        %v2069 = vld [vmem:[#allocation9 + $0xd8] sm:$0xff]
        %v2070 = vld [vmem:[#allocation9 + $0xe0] sm:$0xff]
        %v2071 = vld [vmem:[#allocation9 + $0xe8] sm:$0xff]
        %v2072 = vld [vmem:[#allocation9 + $0xf0] sm:$0xff]
        %v2073 = vld [vmem:[#allocation9 + $0xf8] sm:$0xff]
        %s2074 = scalar_lea.vmem [#allocation9], 256
        %v2075 = vld [vmem:[%s2074] sm:$0xff]
        %v2076 = vld [vmem:[%s2074 + $0x8] sm:$0xff]
        %v2077 = vld [vmem:[%s2074 + $0x10] sm:$0xff]
        %v2078 = vld [vmem:[%s2074 + $0x18] sm:$0xff]
        %v2079 = vld [vmem:[%s2074 + $0x20] sm:$0xff]
        %v2080 = vld [vmem:[%s2074 + $0x28] sm:$0xff]
        %v2081 = vld [vmem:[%s2074 + $0x30] sm:$0xff]
        %v2082 = vld [vmem:[%s2074 + $0x38] sm:$0xff]
        %v2083 = vld [vmem:[%s2074 + $0x40] sm:$0xff]
        %v2084 = vld [vmem:[%s2074 + $0x48] sm:$0xff]
        %v2085 = vld [vmem:[%s2074 + $0x50] sm:$0xff]
        %v2086 = vld [vmem:[%s2074 + $0x58] sm:$0xff]
        %v2087 = vld [vmem:[%s2074 + $0x60] sm:$0xff]
        %v2088 = vld [vmem:[%s2074 + $0x68] sm:$0xff]
        %v2089 = vld [vmem:[%s2074 + $0x70] sm:$0xff]
        %v2090 = vld [vmem:[%s2074 + $0x78] sm:$0xff]
        %v2091 = vld [vmem:[%s2074 + $0x80] sm:$0xff]
        %v2092 = vld [vmem:[%s2074 + $0x88] sm:$0xff]
        %v2093 = vld [vmem:[%s2074 + $0x90] sm:$0xff]
        %v2094 = vld [vmem:[%s2074 + $0x98] sm:$0xff]
        %v2095 = vld [vmem:[%s2074 + $0xa0] sm:$0xff]
        %v2096 = vld [vmem:[%s2074 + $0xa8] sm:$0xff]
        %v2097 = vld [vmem:[%s2074 + $0xb0] sm:$0xff]
        %v2098 = vld [vmem:[%s2074 + $0xb8] sm:$0xff]
        %v2099 = vld [vmem:[%s2074 + $0xc0] sm:$0xff]
        %v2100 = vld [vmem:[%s2074 + $0xc8] sm:$0xff]
        %v2101 = vld [vmem:[%s2074 + $0xd0] sm:$0xff]
        %v2102 = vld [vmem:[%s2074 + $0xd8] sm:$0xff]
        %v2103 = vld [vmem:[%s2074 + $0xe0] sm:$0xff]
        %v2104 = vld [vmem:[%s2074 + $0xe8] sm:$0xff]
        %v2105 = vld [vmem:[%s2074 + $0xf0] sm:$0xff]
        %v2106 = vld [vmem:[%s2074 + $0xf8] sm:$0xff]
        %v2108 = vrot.slane %v2041, 1
        %2110 = vmatprep.subr.mxu0 %v2076
        %2111 = vmatpush1.msra.mxu0 %v2075
        %2112 = vmatprep.subr.mxu0 %v2078
        %2113 = vmatpush1.msra.mxu0 %v2077
        %2114 = vmatprep.subr.mxu0 %v2080
        %2115 = vmatpush1.msra.mxu0 %v2079
        %2116 = vmatprep.subr.mxu0 %v2082
        %2117 = vmatpush1.msra.mxu0 %v2081
        %2118 = vmatprep.subr.mxu0 %v2084
        %2119 = vmatpush1.msra.mxu0 %v2083
        %2120 = vmatprep.subr.mxu0 %v2086
        %2121 = vmatpush1.msra.mxu0 %v2085
        %2122 = vmatprep.subr.mxu0 %v2088
        %2123 = vmatpush1.msra.mxu0 %v2087
        %2124 = vmatprep.subr.mxu0 %v2090
        %2125 = vmatpush1.msra.mxu0 %v2089
        %2126 = vmatprep.subr.mxu0 %v2092
        %2127 = vmatpush1.msra.mxu0 %v2091
        %2128 = vmatprep.subr.mxu0 %v2094
        %2129 = vmatpush1.msra.mxu0 %v2093
        %2130 = vmatprep.subr.mxu0 %v2096
        %2131 = vmatpush1.msra.mxu0 %v2095
        %2132 = vmatprep.subr.mxu0 %v2098
        %2133 = vmatpush1.msra.mxu0 %v2097
        %2134 = vmatprep.subr.mxu0 %v2100
        %2135 = vmatpush1.msra.mxu0 %v2099
        %2136 = vmatprep.subr.mxu0 %v2102
        %2137 = vmatpush1.msra.mxu0 %v2101
        %2138 = vmatprep.subr.mxu0 %v2104
        %2139 = vmatpush1.msra.mxu0 %v2103
        %2140 = vmatprep.subr.mxu0 %v2106
        %2141 = vmatpush1.msra.mxu0 %v2105
        %2142 = vmatprep.subr.mxu0 0.0
        %2143 = vmatpush1.msra.mxu0 0.0
        %2144 = vmatprep.subr.mxu0 0.0
        %2145 = vmatpush1.msra.mxu0 0.0
        %2146 = vmatprep.subr.mxu0 0.0
        %2147 = vmatpush1.msra.mxu0 0.0
        %2148 = vmatprep.subr.mxu0 0.0
        %2149 = vmatpush1.msra.mxu0 0.0
        %2150 = vmatprep.subr.mxu0 0.0
        %2151 = vmatpush1.msra.mxu0 0.0
        %2152 = vmatprep.subr.mxu0 0.0
        %2153 = vmatpush1.msra.mxu0 0.0
        %2154 = vmatprep.subr.mxu0 0.0
        %2155 = vmatpush1.msra.mxu0 0.0
        %2156 = vmatprep.subr.mxu0 0.0
        %2157 = vmatpush1.msra.mxu0 0.0
        %2158 = vmatprep.subr.mxu0 0.0
        %2159 = vmatpush1.msra.mxu0 0.0
        %2160 = vmatprep.subr.mxu0 0.0
        %2161 = vmatpush1.msra.mxu0 0.0
        %2162 = vmatprep.subr.mxu0 0.0
        %2163 = vmatpush1.msra.mxu0 0.0
        %2164 = vmatprep.subr.mxu0 0.0
        %2165 = vmatpush1.msra.mxu0 0.0
        %2166 = vmatprep.subr.mxu0 0.0
        %2167 = vmatpush1.msra.mxu0 0.0
        %2168 = vmatprep.subr.mxu0 0.0
        %2169 = vmatpush1.msra.mxu0 0.0
        %2170 = vmatprep.subr.mxu0 0.0
        %2171 = vmatpush1.msra.mxu0 0.0
        %2172 = vmatprep.subr.mxu0 0.0
        %2173 = vmatpush1.msra.mxu0 0.0
        %2174 = vmatprep.mubr.f32.mxu0 0.0
        %2175 = vmatmul.mubr.f32.gmra.mrb[0].mxu0 %v2108
        %v2176 = vpop.f32.mrb[0].mxu0
        %v2177 = vadd.f32 0.0, %v2176
        %v2178 = vpop.f32.mrb[0].mxu0
        %v2179 = vadd.f32 0.0, %v2178
        %2180 = vdwg.mxu0
        %2181 = vmatprep.subr.mxu0 %v2043
        %2182 = vmatpush1.msra.mxu0 %v2042
        %2183 = vmatprep.subr.mxu0 %v2045
        %2184 = vmatpush1.msra.mxu0 %v2044
        %2185 = vmatprep.subr.mxu0 %v2047
        %2186 = vmatpush1.msra.mxu0 %v2046
        %2187 = vmatprep.subr.mxu0 %v2049
        %2188 = vmatpush1.msra.mxu0 %v2048
        %2189 = vmatprep.subr.mxu0 %v2051
        %2190 = vmatpush1.msra.mxu0 %v2050
        %2191 = vmatprep.subr.mxu0 %v2053
        %2192 = vmatpush1.msra.mxu0 %v2052
        %2193 = vmatprep.subr.mxu0 %v2055
        %2194 = vmatpush1.msra.mxu0 %v2054
        %2195 = vmatprep.subr.mxu0 %v2057
        %2196 = vmatpush1.msra.mxu0 %v2056
        %2197 = vmatprep.subr.mxu0 %v2059
        %2198 = vmatpush1.msra.mxu0 %v2058
        %2199 = vmatprep.subr.mxu0 %v2061
        %2200 = vmatpush1.msra.mxu0 %v2060
        %2201 = vmatprep.subr.mxu0 %v2063
        %2202 = vmatpush1.msra.mxu0 %v2062
        %2203 = vmatprep.subr.mxu0 %v2065
        %2204 = vmatpush1.msra.mxu0 %v2064
        %2205 = vmatprep.subr.mxu0 %v2067
        %2206 = vmatpush1.msra.mxu0 %v2066
        %2207 = vmatprep.subr.mxu0 %v2069
        %2208 = vmatpush1.msra.mxu0 %v2068
        %2209 = vmatprep.subr.mxu0 %v2071
        %2210 = vmatpush1.msra.mxu0 %v2070
        %2211 = vmatprep.subr.mxu0 %v2073
        %2212 = vmatpush1.msra.mxu0 %v2072
        %2213 = vmatprep.subr.mxu0 0.0
        %2214 = vmatpush1.msra.mxu0 0.0
        %2215 = vmatprep.subr.mxu0 0.0
        %2216 = vmatpush1.msra.mxu0 0.0
        %2217 = vmatprep.subr.mxu0 0.0
        %2218 = vmatpush1.msra.mxu0 0.0
        %2219 = vmatprep.subr.mxu0 0.0
        %2220 = vmatpush1.msra.mxu0 0.0
        %2221 = vmatprep.subr.mxu0 0.0
        %2222 = vmatpush1.msra.mxu0 0.0
        %2223 = vmatprep.subr.mxu0 0.0
        %2224 = vmatpush1.msra.mxu0 0.0
        %2225 = vmatprep.subr.mxu0 0.0
        %2226 = vmatpush1.msra.mxu0 0.0
        %2227 = vmatprep.subr.mxu0 0.0
        %2228 = vmatpush1.msra.mxu0 0.0
        %2229 = vmatprep.subr.mxu0 0.0
        %2230 = vmatpush1.msra.mxu0 0.0
        %2231 = vmatprep.subr.mxu0 0.0
        %2232 = vmatpush1.msra.mxu0 0.0
        %2233 = vmatprep.subr.mxu0 0.0
        %2234 = vmatpush1.msra.mxu0 0.0
        %2235 = vmatprep.subr.mxu0 0.0
        %2236 = vmatpush1.msra.mxu0 0.0
        %2237 = vmatprep.subr.mxu0 0.0
        %2238 = vmatpush1.msra.mxu0 0.0
        %2239 = vmatprep.subr.mxu0 0.0
        %2240 = vmatpush1.msra.mxu0 0.0
        %2241 = vmatprep.subr.mxu0 0.0
        %2242 = vmatpush1.msra.mxu0 0.0
        %2243 = vmatprep.subr.mxu0 0.0
        %2244 = vmatpush1.msra.mxu0 0.0
        %2245 = vmatprep.mubr.f32.mxu0 0.0
        %2246 = vmatmul.mubr.f32.gmra.mrb[0].mxu0 %v2041
        %v2247 = vpop.f32.mrb[0].mxu0
        %v2248 = vadd.f32 %v2177, %v2247
        %v2249 = vpop.f32.mrb[0].mxu0
        %v2250 = vadd.f32 %v2179, %v2249
        %2251 = vdwg.mxu0
        %s2252 = scalar_lea.vmem [#allocation9], 512
        %v2253 = vld [vmem:[%s2252] sm:$0xff]
        %v2254 = vld [vmem:[%s2252 + $0x8] sm:$0xff]
        %v2255 = vld [vmem:[%s2252 + $0x10] sm:$0xff]
        %v2256 = vld [vmem:[%s2252 + $0x18] sm:$0xff]
        %v2257 = vld [vmem:[%s2252 + $0x20] sm:$0xff]
        %v2258 = vld [vmem:[%s2252 + $0x28] sm:$0xff]
        %v2259 = vld [vmem:[%s2252 + $0x30] sm:$0xff]
        %v2260 = vld [vmem:[%s2252 + $0x38] sm:$0xff]
        %v2261 = vld [vmem:[%s2252 + $0x40] sm:$0xff]
        %v2262 = vld [vmem:[%s2252 + $0x48] sm:$0xff]
        %v2263 = vld [vmem:[%s2252 + $0x50] sm:$0xff]
        %v2264 = vld [vmem:[%s2252 + $0x58] sm:$0xff]
        %v2265 = vld [vmem:[%s2252 + $0x60] sm:$0xff]
        %v2266 = vld [vmem:[%s2252 + $0x68] sm:$0xff]
        %v2267 = vld [vmem:[%s2252 + $0x70] sm:$0xff]
        %v2268 = vld [vmem:[%s2252 + $0x78] sm:$0xff]
        %v2269 = vld [vmem:[%s2252 + $0x80] sm:$0xff]
        %v2270 = vld [vmem:[%s2252 + $0x88] sm:$0xff]
        %v2271 = vld [vmem:[%s2252 + $0x90] sm:$0xff]
        %v2272 = vld [vmem:[%s2252 + $0x98] sm:$0xff]
        %v2273 = vld [vmem:[%s2252 + $0xa0] sm:$0xff]
        %v2274 = vld [vmem:[%s2252 + $0xa8] sm:$0xff]
        %v2275 = vld [vmem:[%s2252 + $0xb0] sm:$0xff]
        %v2276 = vld [vmem:[%s2252 + $0xb8] sm:$0xff]
        %v2277 = vld [vmem:[%s2252 + $0xc0] sm:$0xff]
        %v2278 = vld [vmem:[%s2252 + $0xc8] sm:$0xff]
        %v2279 = vld [vmem:[%s2252 + $0xd0] sm:$0xff]
        %v2280 = vld [vmem:[%s2252 + $0xd8] sm:$0xff]
        %v2281 = vld [vmem:[%s2252 + $0xe0] sm:$0xff]
        %v2282 = vld [vmem:[%s2252 + $0xe8] sm:$0xff]
        %v2283 = vld [vmem:[%s2252 + $0xf0] sm:$0xff]
        %v2284 = vld [vmem:[%s2252 + $0xf8] sm:$0xff]
        %v2285 = vrot.slane %v2041, 2
        %2287 = vmatprep.subr.mxu0 %v2254
        %2288 = vmatpush1.msra.mxu0 %v2253
        %2289 = vmatprep.subr.mxu0 %v2256
        %2290 = vmatpush1.msra.mxu0 %v2255
        %2291 = vmatprep.subr.mxu0 %v2258
        %2292 = vmatpush1.msra.mxu0 %v2257
        %2293 = vmatprep.subr.mxu0 %v2260
        %2294 = vmatpush1.msra.mxu0 %v2259
        %2295 = vmatprep.subr.mxu0 %v2262
        %2296 = vmatpush1.msra.mxu0 %v2261
        %2297 = vmatprep.subr.mxu0 %v2264
        %2298 = vmatpush1.msra.mxu0 %v2263
        %2299 = vmatprep.subr.mxu0 %v2266
        %2300 = vmatpush1.msra.mxu0 %v2265
        %2301 = vmatprep.subr.mxu0 %v2268
        %2302 = vmatpush1.msra.mxu0 %v2267
        %2303 = vmatprep.subr.mxu0 %v2270
        %2304 = vmatpush1.msra.mxu0 %v2269
        %2305 = vmatprep.subr.mxu0 %v2272
        %2306 = vmatpush1.msra.mxu0 %v2271
        %2307 = vmatprep.subr.mxu0 %v2274
        %2308 = vmatpush1.msra.mxu0 %v2273
        %2309 = vmatprep.subr.mxu0 %v2276
        %2310 = vmatpush1.msra.mxu0 %v2275
        %2311 = vmatprep.subr.mxu0 %v2278
        %2312 = vmatpush1.msra.mxu0 %v2277
        %2313 = vmatprep.subr.mxu0 %v2280
        %2314 = vmatpush1.msra.mxu0 %v2279
        %2315 = vmatprep.subr.mxu0 %v2282
        %2316 = vmatpush1.msra.mxu0 %v2281
        %2317 = vmatprep.subr.mxu0 %v2284
        %2318 = vmatpush1.msra.mxu0 %v2283
        %2319 = vmatprep.subr.mxu0 0.0
        %2320 = vmatpush1.msra.mxu0 0.0
        %2321 = vmatprep.subr.mxu0 0.0
        %2322 = vmatpush1.msra.mxu0 0.0
        %2323 = vmatprep.subr.mxu0 0.0
        %2324 = vmatpush1.msra.mxu0 0.0
        %2325 = vmatprep.subr.mxu0 0.0
        %2326 = vmatpush1.msra.mxu0 0.0
        %2327 = vmatprep.subr.mxu0 0.0
        %2328 = vmatpush1.msra.mxu0 0.0
        %2329 = vmatprep.subr.mxu0 0.0
        %2330 = vmatpush1.msra.mxu0 0.0
        %2331 = vmatprep.subr.mxu0 0.0
        %2332 = vmatpush1.msra.mxu0 0.0
        %2333 = vmatprep.subr.mxu0 0.0
        %2334 = vmatpush1.msra.mxu0 0.0
        %2335 = vmatprep.subr.mxu0 0.0
        %2336 = vmatpush1.msra.mxu0 0.0
        %2337 = vmatprep.subr.mxu0 0.0
        %2338 = vmatpush1.msra.mxu0 0.0
        %2339 = vmatprep.subr.mxu0 0.0
        %2340 = vmatpush1.msra.mxu0 0.0
        %2341 = vmatprep.subr.mxu0 0.0
        %2342 = vmatpush1.msra.mxu0 0.0
        %2343 = vmatprep.subr.mxu0 0.0
        %2344 = vmatpush1.msra.mxu0 0.0
        %2345 = vmatprep.subr.mxu0 0.0
        %2346 = vmatpush1.msra.mxu0 0.0
        %2347 = vmatprep.subr.mxu0 0.0
        %2348 = vmatpush1.msra.mxu0 0.0
        %2349 = vmatprep.subr.mxu0 0.0
        %2350 = vmatpush1.msra.mxu0 0.0
        %2351 = vmatprep.mubr.f32.mxu0 0.0
        %2352 = vmatmul.mubr.f32.gmra.mrb[0].mxu0 %v2285
        %v2353 = vpop.f32.mrb[0].mxu0
        %v2354 = vadd.f32 0.0, %v2353
        %v2355 = vpop.f32.mrb[0].mxu0
        %v2356 = vadd.f32 0.0, %v2355
        %2357 = vdwg.mxu0
        %v2358 = vadd.f32 %v2248, %v2354
        %v2359 = vadd.f32 %v2250, %v2356
        %s2360 = scalar_lea.vmem [#allocation9], 768
        %v2361 = vld [vmem:[%s2360] sm:$0xff]
        %v2362 = vld [vmem:[%s2360 + $0x8] sm:$0xff]
        %v2363 = vld [vmem:[%s2360 + $0x10] sm:$0xff]
        %v2364 = vld [vmem:[%s2360 + $0x18] sm:$0xff]
        %v2365 = vld [vmem:[%s2360 + $0x20] sm:$0xff]
        %v2366 = vld [vmem:[%s2360 + $0x28] sm:$0xff]
        %v2367 = vld [vmem:[%s2360 + $0x30] sm:$0xff]
        %v2368 = vld [vmem:[%s2360 + $0x38] sm:$0xff]
        %v2369 = vld [vmem:[%s2360 + $0x40] sm:$0xff]
        %v2370 = vld [vmem:[%s2360 + $0x48] sm:$0xff]
        %v2371 = vld [vmem:[%s2360 + $0x50] sm:$0xff]
        %v2372 = vld [vmem:[%s2360 + $0x58] sm:$0xff]
        %v2373 = vld [vmem:[%s2360 + $0x60] sm:$0xff]
        %v2374 = vld [vmem:[%s2360 + $0x68] sm:$0xff]
        %v2375 = vld [vmem:[%s2360 + $0x70] sm:$0xff]
        %v2376 = vld [vmem:[%s2360 + $0x78] sm:$0xff]
        %v2377 = vld [vmem:[%s2360 + $0x80] sm:$0xff]
        %v2378 = vld [vmem:[%s2360 + $0x88] sm:$0xff]
        %v2379 = vld [vmem:[%s2360 + $0x90] sm:$0xff]
        %v2380 = vld [vmem:[%s2360 + $0x98] sm:$0xff]
        %v2381 = vld [vmem:[%s2360 + $0xa0] sm:$0xff]
        %v2382 = vld [vmem:[%s2360 + $0xa8] sm:$0xff]
        %v2383 = vld [vmem:[%s2360 + $0xb0] sm:$0xff]
        %v2384 = vld [vmem:[%s2360 + $0xb8] sm:$0xff]
        %v2385 = vld [vmem:[%s2360 + $0xc0] sm:$0xff]
        %v2386 = vld [vmem:[%s2360 + $0xc8] sm:$0xff]
        %v2387 = vld [vmem:[%s2360 + $0xd0] sm:$0xff]
        %v2388 = vld [vmem:[%s2360 + $0xd8] sm:$0xff]
        %v2389 = vld [vmem:[%s2360 + $0xe0] sm:$0xff]
        %v2390 = vld [vmem:[%s2360 + $0xe8] sm:$0xff]
        %v2391 = vld [vmem:[%s2360 + $0xf0] sm:$0xff]
        %v2392 = vld [vmem:[%s2360 + $0xf8] sm:$0xff]
        %v2393 = vrot.slane %v2041, 3
        %2395 = vmatprep.subr.mxu0 %v2362
        %2396 = vmatpush1.msra.mxu0 %v2361
        %2397 = vmatprep.subr.mxu0 %v2364
        %2398 = vmatpush1.msra.mxu0 %v2363
        %2399 = vmatprep.subr.mxu0 %v2366
        %2400 = vmatpush1.msra.mxu0 %v2365
        %2401 = vmatprep.subr.mxu0 %v2368
        %2402 = vmatpush1.msra.mxu0 %v2367
        %2403 = vmatprep.subr.mxu0 %v2370
        %2404 = vmatpush1.msra.mxu0 %v2369
        %2405 = vmatprep.subr.mxu0 %v2372
        %2406 = vmatpush1.msra.mxu0 %v2371
        %2407 = vmatprep.subr.mxu0 %v2374
        %2408 = vmatpush1.msra.mxu0 %v2373
        %2409 = vmatprep.subr.mxu0 %v2376
        %2410 = vmatpush1.msra.mxu0 %v2375
        %2411 = vmatprep.subr.mxu0 %v2378
        %2412 = vmatpush1.msra.mxu0 %v2377
        %2413 = vmatprep.subr.mxu0 %v2380
        %2414 = vmatpush1.msra.mxu0 %v2379
        %2415 = vmatprep.subr.mxu0 %v2382
        %2416 = vmatpush1.msra.mxu0 %v2381
        %2417 = vmatprep.subr.mxu0 %v2384
        %2418 = vmatpush1.msra.mxu0 %v2383
        %2419 = vmatprep.subr.mxu0 %v2386
        %2420 = vmatpush1.msra.mxu0 %v2385
        %2421 = vmatprep.subr.mxu0 %v2388
        %2422 = vmatpush1.msra.mxu0 %v2387
        %2423 = vmatprep.subr.mxu0 %v2390
        %2424 = vmatpush1.msra.mxu0 %v2389
        %2425 = vmatprep.subr.mxu0 %v2392
        %2426 = vmatpush1.msra.mxu0 %v2391
        %2427 = vmatprep.subr.mxu0 0.0
        %2428 = vmatpush1.msra.mxu0 0.0
        %2429 = vmatprep.subr.mxu0 0.0
        %2430 = vmatpush1.msra.mxu0 0.0
        %2431 = vmatprep.subr.mxu0 0.0
        %2432 = vmatpush1.msra.mxu0 0.0
        %2433 = vmatprep.subr.mxu0 0.0
        %2434 = vmatpush1.msra.mxu0 0.0
        %2435 = vmatprep.subr.mxu0 0.0
        %2436 = vmatpush1.msra.mxu0 0.0
        %2437 = vmatprep.subr.mxu0 0.0
        %2438 = vmatpush1.msra.mxu0 0.0
        %2439 = vmatprep.subr.mxu0 0.0
        %2440 = vmatpush1.msra.mxu0 0.0
        %2441 = vmatprep.subr.mxu0 0.0
        %2442 = vmatpush1.msra.mxu0 0.0
        %2443 = vmatprep.subr.mxu0 0.0
        %2444 = vmatpush1.msra.mxu0 0.0
        %2445 = vmatprep.subr.mxu0 0.0
        %2446 = vmatpush1.msra.mxu0 0.0
        %2447 = vmatprep.subr.mxu0 0.0
        %2448 = vmatpush1.msra.mxu0 0.0
        %2449 = vmatprep.subr.mxu0 0.0
        %2450 = vmatpush1.msra.mxu0 0.0
        %2451 = vmatprep.subr.mxu0 0.0
        %2452 = vmatpush1.msra.mxu0 0.0
        %2453 = vmatprep.subr.mxu0 0.0
        %2454 = vmatpush1.msra.mxu0 0.0
        %2455 = vmatprep.subr.mxu0 0.0
        %2456 = vmatpush1.msra.mxu0 0.0
        %2457 = vmatprep.subr.mxu0 0.0
        %2458 = vmatpush1.msra.mxu0 0.0
        %2459 = vmatprep.mubr.f32.mxu0 0.0
        %2460 = vmatmul.mubr.f32.gmra.mrb[0].mxu0 %v2393
        %v2461 = vpop.f32.mrb[0].mxu0
        %v2462 = vadd.f32 0.0, %v2461
        %v2463 = vpop.f32.mrb[0].mxu0
        %v2464 = vadd.f32 0.0, %v2463
        %2465 = vdwg.mxu0
        %v2466 = vadd.f32 %v2358, %v2462
        %v2467 = vadd.f32 %v2359, %v2464
        %s2468 = scalar_lea.vmem [#allocation9], 1024
        %v2469 = vld [vmem:[%s2468] sm:$0xff]
        %v2470 = vld [vmem:[%s2468 + $0x8] sm:$0xff]
        %v2471 = vld [vmem:[%s2468 + $0x10] sm:$0xff]
        %v2472 = vld [vmem:[%s2468 + $0x18] sm:$0xff]
        %v2473 = vld [vmem:[%s2468 + $0x20] sm:$0xff]
        %v2474 = vld [vmem:[%s2468 + $0x28] sm:$0xff]
        %v2475 = vld [vmem:[%s2468 + $0x30] sm:$0xff]
        %v2476 = vld [vmem:[%s2468 + $0x38] sm:$0xff]
        %v2477 = vld [vmem:[%s2468 + $0x40] sm:$0xff]
        %v2478 = vld [vmem:[%s2468 + $0x48] sm:$0xff]
        %v2479 = vld [vmem:[%s2468 + $0x50] sm:$0xff]
        %v2480 = vld [vmem:[%s2468 + $0x58] sm:$0xff]
        %v2481 = vld [vmem:[%s2468 + $0x60] sm:$0xff]
        %v2482 = vld [vmem:[%s2468 + $0x68] sm:$0xff]
        %v2483 = vld [vmem:[%s2468 + $0x70] sm:$0xff]
        %v2484 = vld [vmem:[%s2468 + $0x78] sm:$0xff]
        %v2485 = vld [vmem:[%s2468 + $0x80] sm:$0xff]
        %v2486 = vld [vmem:[%s2468 + $0x88] sm:$0xff]
        %v2487 = vld [vmem:[%s2468 + $0x90] sm:$0xff]
        %v2488 = vld [vmem:[%s2468 + $0x98] sm:$0xff]
        %v2489 = vld [vmem:[%s2468 + $0xa0] sm:$0xff]
        %v2490 = vld [vmem:[%s2468 + $0xa8] sm:$0xff]
        %v2491 = vld [vmem:[%s2468 + $0xb0] sm:$0xff]
        %v2492 = vld [vmem:[%s2468 + $0xb8] sm:$0xff]
        %v2493 = vld [vmem:[%s2468 + $0xc0] sm:$0xff]
        %v2494 = vld [vmem:[%s2468 + $0xc8] sm:$0xff]
        %v2495 = vld [vmem:[%s2468 + $0xd0] sm:$0xff]
        %v2496 = vld [vmem:[%s2468 + $0xd8] sm:$0xff]
        %v2497 = vld [vmem:[%s2468 + $0xe0] sm:$0xff]
        %v2498 = vld [vmem:[%s2468 + $0xe8] sm:$0xff]
        %v2499 = vld [vmem:[%s2468 + $0xf0] sm:$0xff]
        %v2500 = vld [vmem:[%s2468 + $0xf8] sm:$0xff]
        %v2501 = vrot.slane %v2041, 4
        %2503 = vmatprep.subr.mxu0 %v2470
        %2504 = vmatpush1.msra.mxu0 %v2469
        %2505 = vmatprep.subr.mxu0 %v2472
        %2506 = vmatpush1.msra.mxu0 %v2471
        %2507 = vmatprep.subr.mxu0 %v2474
        %2508 = vmatpush1.msra.mxu0 %v2473
        %2509 = vmatprep.subr.mxu0 %v2476
        %2510 = vmatpush1.msra.mxu0 %v2475
        %2511 = vmatprep.subr.mxu0 %v2478
        %2512 = vmatpush1.msra.mxu0 %v2477
        %2513 = vmatprep.subr.mxu0 %v2480
        %2514 = vmatpush1.msra.mxu0 %v2479
        %2515 = vmatprep.subr.mxu0 %v2482
        %2516 = vmatpush1.msra.mxu0 %v2481
        %2517 = vmatprep.subr.mxu0 %v2484
        %2518 = vmatpush1.msra.mxu0 %v2483
        %2519 = vmatprep.subr.mxu0 %v2486
        %2520 = vmatpush1.msra.mxu0 %v2485
        %2521 = vmatprep.subr.mxu0 %v2488
        %2522 = vmatpush1.msra.mxu0 %v2487
        %2523 = vmatprep.subr.mxu0 %v2490
        %2524 = vmatpush1.msra.mxu0 %v2489
        %2525 = vmatprep.subr.mxu0 %v2492
        %2526 = vmatpush1.msra.mxu0 %v2491
        %2527 = vmatprep.subr.mxu0 %v2494
        %2528 = vmatpush1.msra.mxu0 %v2493
        %2529 = vmatprep.subr.mxu0 %v2496
        %2530 = vmatpush1.msra.mxu0 %v2495
        %2531 = vmatprep.subr.mxu0 %v2498
        %2532 = vmatpush1.msra.mxu0 %v2497
        %2533 = vmatprep.subr.mxu0 %v2500
        %2534 = vmatpush1.msra.mxu0 %v2499
        %2535 = vmatprep.subr.mxu0 0.0
        %2536 = vmatpush1.msra.mxu0 0.0
        %2537 = vmatprep.subr.mxu0 0.0
        %2538 = vmatpush1.msra.mxu0 0.0
        %2539 = vmatprep.subr.mxu0 0.0
        %2540 = vmatpush1.msra.mxu0 0.0
        %2541 = vmatprep.subr.mxu0 0.0
        %2542 = vmatpush1.msra.mxu0 0.0
        %2543 = vmatprep.subr.mxu0 0.0
        %2544 = vmatpush1.msra.mxu0 0.0
        %2545 = vmatprep.subr.mxu0 0.0
        %2546 = vmatpush1.msra.mxu0 0.0
        %2547 = vmatprep.subr.mxu0 0.0
        %2548 = vmatpush1.msra.mxu0 0.0
        %2549 = vmatprep.subr.mxu0 0.0
        %2550 = vmatpush1.msra.mxu0 0.0
        %2551 = vmatprep.subr.mxu0 0.0
        %2552 = vmatpush1.msra.mxu0 0.0
        %2553 = vmatprep.subr.mxu0 0.0
        %2554 = vmatpush1.msra.mxu0 0.0
        %2555 = vmatprep.subr.mxu0 0.0
        %2556 = vmatpush1.msra.mxu0 0.0
        %2557 = vmatprep.subr.mxu0 0.0
        %2558 = vmatpush1.msra.mxu0 0.0
        %2559 = vmatprep.subr.mxu0 0.0
        %2560 = vmatpush1.msra.mxu0 0.0
        %2561 = vmatprep.subr.mxu0 0.0
        %2562 = vmatpush1.msra.mxu0 0.0
        %2563 = vmatprep.subr.mxu0 0.0
        %2564 = vmatpush1.msra.mxu0 0.0
        %2565 = vmatprep.subr.mxu0 0.0
        %2566 = vmatpush1.msra.mxu0 0.0
        %2567 = vmatprep.mubr.f32.mxu0 0.0
        %2568 = vmatmul.mubr.f32.gmra.mrb[0].mxu0 %v2501
        %v2569 = vpop.f32.mrb[0].mxu0
        %v2570 = vadd.f32 0.0, %v2569
        %v2571 = vpop.f32.mrb[0].mxu0
        %v2572 = vadd.f32 0.0, %v2571
        %2573 = vdwg.mxu0
        %v2574 = vadd.f32 %v2466, %v2570
        %v2575 = vadd.f32 %v2467, %v2572
        %v2576 = vld [vmem:[%s6] sm:$0x3]
        %v2578 = vlaneseq
        %v2579 = vshrl.u32 %v2578, 7
        %v2580 = vsub.s32 0, %v2579
        %v2581 = vrot.slane %v2576, %v2580
        %v2582 = vlaneseq
        %v2583 = vshrl.u32 %v2582, 7
        %v2584 = vsub.s32 1, %v2583
        %v2585 = vrot.slane %v2576, %v2584
        %v2588 = vadd.f32 %v2574, %v2581
        %v2589 = vadd.f32 %v2575, %v2585
        %v2590 = vmax.f32 %v2588, 0.0
        %v2591 = vmax.f32 %v2589, 0.0
        %v2592 = vld [vmem:[%s7] sm:$0xff]
        %v2593 = vld [vmem:[%s7 + $0x8] sm:$0xff]
        %v2594 = vld [vmem:[%s7 + $0x10] sm:$0xff]
        %v2595 = vld [vmem:[%s7 + $0x18] sm:$0xff]
        %v2596 = vld [vmem:[%s7 + $0x20] sm:$0xff]
        %v2597 = vld [vmem:[%s7 + $0x28] sm:$0xff]
        %v2598 = vld [vmem:[%s7 + $0x30] sm:$0xff]
        %v2599 = vld [vmem:[%s7 + $0x38] sm:$0xff]
        %v2600 = vld [vmem:[%s7 + $0x40] sm:$0xff]
        %v2601 = vld [vmem:[%s7 + $0x48] sm:$0xff]
        %v2602 = vld [vmem:[%s7 + $0x50] sm:$0xff]
        %v2603 = vld [vmem:[%s7 + $0x58] sm:$0xff]
        %v2604 = vld [vmem:[%s7 + $0x60] sm:$0xff]
        %v2605 = vld [vmem:[%s7 + $0x68] sm:$0xff]
        %v2606 = vld [vmem:[%s7 + $0x70] sm:$0xff]
        %v2607 = vld [vmem:[%s7 + $0x78] sm:$0xff]
        %v2608 = vld [vmem:[%s7 + $0x80] sm:$0xff]
        %v2609 = vld [vmem:[%s7 + $0x88] sm:$0xff]
        %v2610 = vld [vmem:[%s7 + $0x90] sm:$0xff]
        %v2611 = vld [vmem:[%s7 + $0x98] sm:$0xff]
        %v2612 = vld [vmem:[%s7 + $0xa0] sm:$0xff]
        %v2613 = vld [vmem:[%s7 + $0xa8] sm:$0xff]
        %v2614 = vld [vmem:[%s7 + $0xb0] sm:$0xff]
        %v2615 = vld [vmem:[%s7 + $0xb8] sm:$0xff]
        %v2616 = vld [vmem:[%s7 + $0xc0] sm:$0xff]
        %v2617 = vld [vmem:[%s7 + $0xc8] sm:$0xff]
        %v2618 = vld [vmem:[%s7 + $0xd0] sm:$0xff]
        %v2619 = vld [vmem:[%s7 + $0xd8] sm:$0xff]
        %v2620 = vld [vmem:[%s7 + $0xe0] sm:$0xff]
        %v2621 = vld [vmem:[%s7 + $0xe8] sm:$0xff]
        %v2622 = vld [vmem:[%s7 + $0xf0] sm:$0xff]
        %v2623 = vld [vmem:[%s7 + $0xf8] sm:$0xff]
        %v2624 = vld [vmem:[%s8] sm:$0x1]
        %2625 = vmatprep.subr.mxu0 0.0
        %2626 = vmatpush1.msra.mxu0 %v2592
        %2627 = vmatprep.subr.mxu0 0.0
        %2628 = vmatpush1.msra.mxu0 %v2593
        %2629 = vmatprep.subr.mxu0 0.0
        %2630 = vmatpush1.msra.mxu0 %v2594
        %2631 = vmatprep.subr.mxu0 0.0
        %2632 = vmatpush1.msra.mxu0 %v2595
        %2633 = vmatprep.subr.mxu0 0.0
        %2634 = vmatpush1.msra.mxu0 %v2596
        %2635 = vmatprep.subr.mxu0 0.0
        %2636 = vmatpush1.msra.mxu0 %v2597
        %2637 = vmatprep.subr.mxu0 0.0
        %2638 = vmatpush1.msra.mxu0 %v2598
        %2639 = vmatprep.subr.mxu0 0.0
        %2640 = vmatpush1.msra.mxu0 %v2599
        %2641 = vmatprep.subr.mxu0 0.0
        %2642 = vmatpush1.msra.mxu0 %v2600
        %2643 = vmatprep.subr.mxu0 0.0
        %2644 = vmatpush1.msra.mxu0 %v2601
        %2645 = vmatprep.subr.mxu0 0.0
        %2646 = vmatpush1.msra.mxu0 %v2602
        %2647 = vmatprep.subr.mxu0 0.0
        %2648 = vmatpush1.msra.mxu0 %v2603
        %2649 = vmatprep.subr.mxu0 0.0
        %2650 = vmatpush1.msra.mxu0 %v2604
        %2651 = vmatprep.subr.mxu0 0.0
        %2652 = vmatpush1.msra.mxu0 %v2605
        %2653 = vmatprep.subr.mxu0 0.0
        %2654 = vmatpush1.msra.mxu0 %v2606
        %2655 = vmatprep.subr.mxu0 0.0
        %2656 = vmatpush1.msra.mxu0 %v2607
        %2657 = vmatprep.subr.mxu0 0.0
        %2658 = vmatpush1.msra.mxu0 %v2608
        %2659 = vmatprep.subr.mxu0 0.0
        %2660 = vmatpush1.msra.mxu0 %v2609
        %2661 = vmatprep.subr.mxu0 0.0
        %2662 = vmatpush1.msra.mxu0 %v2610
        %2663 = vmatprep.subr.mxu0 0.0
        %2664 = vmatpush1.msra.mxu0 %v2611
        %2665 = vmatprep.subr.mxu0 0.0
        %2666 = vmatpush1.msra.mxu0 %v2612
        %2667 = vmatprep.subr.mxu0 0.0
        %2668 = vmatpush1.msra.mxu0 %v2613
        %2669 = vmatprep.subr.mxu0 0.0
        %2670 = vmatpush1.msra.mxu0 %v2614
        %2671 = vmatprep.subr.mxu0 0.0
        %2672 = vmatpush1.msra.mxu0 %v2615
        %2673 = vmatprep.subr.mxu0 0.0
        %2674 = vmatpush1.msra.mxu0 %v2616
        %2675 = vmatprep.subr.mxu0 0.0
        %2676 = vmatpush1.msra.mxu0 %v2617
        %2677 = vmatprep.subr.mxu0 0.0
        %2678 = vmatpush1.msra.mxu0 %v2618
        %2679 = vmatprep.subr.mxu0 0.0
        %2680 = vmatpush1.msra.mxu0 %v2619
        %2681 = vmatprep.subr.mxu0 0.0
        %2682 = vmatpush1.msra.mxu0 %v2620
        %2683 = vmatprep.subr.mxu0 0.0
        %2684 = vmatpush1.msra.mxu0 %v2621
        %2685 = vmatprep.subr.mxu0 0.0
        %2686 = vmatpush1.msra.mxu0 %v2622
        %2687 = vmatprep.subr.mxu0 0.0
        %2688 = vmatpush1.msra.mxu0 %v2623
        %2689 = vmatprep.mubr.f32.mxu0 %v2591
        %2690 = vmatmul.mubr.f32.gmra.mrb[0].mxu0 %v2590
        %v2691 = vpop.f32.mrb[0].mxu0
        %v2692 = vadd.f32 %v2624, %v2691
        %v2693 = vpop.f32.mrb[0].mxu0
        %2694 = vdwg.mxu0
        %vm2695 = vcmask 8192
        %v2696 = vsel %vm2695, %v2692, -inf
        %2697 = vmax.xlane.f32.xlu0 %v2696
        %v2698 = vpop.xlane.xlu0 %2697
        %v2699 = vsub.f32 %v2692, %v2698
        %v2700 = vmul.f32 %v2699, 1.442695
        %v2701 = vpow.pop %v2700
        %v2702 = vsel %vm2695, %v2701, 0.0
        %2703 = vadd.xlane.f32.xlu0 %v2702
        %v2704 = vpop.xlane.xlu0 %2703
        %v2705 = vlog2.pop %v2704
        %v2706 = vmul.f32 %v2705, 0.6931472
        %v2707 = vsub.f32 %v2699, %v2706
        %2708 = vst.msk [vmem:[%s352] sm:$0x1] %vm2695, %v2707
        %s2709 = sand.u32 %s227, 1
        %s2710 = scalar_lea.sflag [#allocation8], %s2709
        %s2711 = sand.u32 %s227, 1
        %s2712 = scalar_lea.vmem [#allocation11], %s2711
        // Predicated region
        $region65: #{net_small_forward.1} parent=55 // pred_check
          %p2713 = pneg %p237
        $region66: #{net_small_forward.1} parent=55 // pred_check_branch
          %2715 = sbr.rel (%p2713) target = $region68
        $region67: #{net_small_forward.1} parent=55 // pred_region
          %s2717 = ssub.s32 16, 16
          %2718 = vsyncadd %s2710, %s2717
          %s2719 = smul.addr %s25, 16
          %s2720 = scalar_lea.hbm %s9, %s2719
          %s2722 = sshll.u32 %s2712, 4
          %s2723 = int_to_ptr.vmem [resolvable:$true] %s2722
          %2725 = dma.vmem_to_hbm [thread:$0]  %s2723, 16, %s2720, %s2710
        $region68: #{net_small_forward.1} parent=55 // pred_fallthru
          _
      $region56: #{net_small_forward.1} parent=5 // pred_fallthru
        _
      %p2726 = scmp.le.s32.totalorder 2, %s20
      // Predicated region
      $region69: #{net_small_forward.1} parent=5 // pred_check
        %p2727 = pneg %p2726
      $region70: #{net_small_forward.1} parent=5 // pred_check_branch
        %2729 = sbr.rel (%p2727) target = $region72
      $region71: #{net_small_forward.1} parent=5 // pred_region
        %s2730 = ssub.s32 %s20, 2
        // Predicated region
        $region73: #{net_small_forward.1} parent=71 // pred_check
          %p2731 = pneg %p243
        $region74: #{net_small_forward.1} parent=71 // pred_check_branch
          %2733 = sbr.rel (%p2731) target = $region76
        $region75: #{net_small_forward.1} parent=71 // pred_region
          %s2734 = sand.u32 %s228, 1
          %s2735 = scalar_lea.sflag [#allocation8], %s2734
          %s2736 = sand.u32 %s228, 1
          %s2737 = scalar_lea.vmem [#allocation11], %s2736
          %2738 = dma.done %s2735, 16
        $region76: #{net_small_forward.1} parent=71 // pred_fallthru
          _
      $region72: #{net_small_forward.1} parent=5 // pred_fallthru
        _
    $region6: #{net_small_forward.1} parent=1 // loop_footer
      %s24 = sadd.s32 1, %s20
    $region7: #{net_small_forward.1} parent=1 // loop_footer_branch
      %19 = sbr.rel target = $region3
    $region8: #{net_small_forward.1} parent=1 // loop_exit
      _
    %2739 = vsyncpa [#allocation7], 1
    %s2740 = scalar_lea.sflag [#allocation7], 1
    %2741 = vsyncpa %s2740, 1
    %2742 = vsyncpa [#allocation10], 1
    %2743 = vsyncpa [#allocation8], 1
    %s2744 = scalar_lea.sflag [#allocation8], 1
    %2745 = vsyncpa %s2744, 1

</llo_original>
